<compile_context>
chip_gen: v7x
topology: tpu7x:2x2x1
jax: 0.10.0
libtpu: 0.0.40
codegen_flags: <defaults>
</compile_context>

<pallas_src>
import jax
import jax.numpy as jnp
from jax.experimental import pallas as pl
from jax.experimental.pallas import tpu as pltpu


# ---------------------------------------------------------------------------
# Tiled linear kernel:  o = x @ w + b   (bf16 MXU compute, f32 accumulate)
# ---------------------------------------------------------------------------
def _linear_kernel(x_ref, w_ref, b_ref, o_ref):
    # Cast activations to the weight dtype (bf16) in VMEM: keeps HBM reads in
    # the source dtype (no extra pre-cast copy of the frames) while doubling
    # MXU throughput on v6e/v7x.
    x = x_ref[...].astype(w_ref.dtype)
    o_ref[...] = (
        jnp.dot(x, w_ref[...], preferred_element_type=jnp.float32) + b_ref[...]
    ).astype(o_ref.dtype)


def pallas_linear(x, w, b, *, tm=512):
    """x:(M,K) @ w:(K,N) + b:(1,N) -> f32 (M,N).

    M is tiled on a "parallel" grid axis (DMA pipelining; megacore split on
    v7x whenever the grid has >=2 steps).  N is lane-padded to a multiple of
    128 inside the wrapper so stores are unmasked; padding lanes are sliced
    off afterwards.
    TODO(synk): add a K-reduction grid axis ("arbitrary") with an f32 VMEM
                accumulator when tm*K + K*N tiles exceed the VMEM budget
                (v7x has only 64 MiB physical / 32 MiB scoped).
    """
    M, K = x.shape
    N = w.shape[1]
    n_pad = (-N) % 128
    if n_pad:
        w = jnp.pad(w, ((0, 0), (0, n_pad)))
        b = jnp.pad(b, ((0, 0), (0, n_pad)))
    Np = N + n_pad

    tm_eff = M if M <= tm else tm          # full-dim block when M is small
    grid = (pl.cdiv(M, tm_eff),)

    out = pl.pallas_call(
        _linear_kernel,
        out_shape=jax.ShapeDtypeStruct((M, Np), jnp.float32),
        grid=grid,
        in_specs=[
            pl.BlockSpec((tm_eff, K), lambda i: (i, 0)),
            pl.BlockSpec((K, Np), lambda i: (0, 0)),
            pl.BlockSpec((1, Np), lambda i: (0, 0)),
        ],
        out_specs=pl.BlockSpec((tm_eff, Np), lambda i: (i, 0)),
        compiler_params=pltpu.CompilerParams(
            dimension_semantics=("parallel",),      # 2 TCs split rows on v7x
            vmem_limit_bytes=32 * 1024 * 1024,      # headroom for v7x 64 MiB
        ),
    )(x, w, b)
    return out[:, :N] if n_pad else out


# ---------------------------------------------------------------------------
# GRU recurrence + fused prediction head (single invocation).
#
# gi_ref : (B, T*3H) gate pre-activations in lane-major-per-timestep layout.
#          gi already contains  x@W_ih + b_ih  with b_hr / b_hz folded in.
# whh_ref: (H, 3H) hidden-to-hidden weights, gate order [r | z | n].
# bhn_ref: (1, H)  b_hn only (it is gated by r, so it cannot be pre-folded).
# Epilogue: pred = h_last @ w_pred + b_pred   (MultiPrediction embedding).
# ---------------------------------------------------------------------------
def _gru_pred_kernel(gi_ref, whh_ref, bhn_ref, wp_ref, bp_ref, pred_ref):
    B, TG = gi_ref.shape
    Hc = whh_ref.shape[0]
    G = 3 * Hc
    T = TG // G

    whh = whh_ref[...]      # hoisted: loaded once, reused every timestep
    bhn = bhn_ref[...]      # (1, H), broadcast once per step (gated by r)

    h = jnp.zeros((B, Hc), jnp.float32)   # PyTorch default h0 = 0
    # TODO(synk): for production T, chunk the sequence over an "arbitrary"
    #             grid axis carrying h in VMEM scratch (pl.when init/finalize)
    #             so the full (B, T*3H) gi never has to be VMEM-resident on
    #             v7x; here T is tiny so a static unroll is optimal.
    for t in range(T):
        gi = gi_ref[:, t * G:(t + 1) * G]                     # static lane slice
        gh = jnp.dot(h, whh, preferred_element_type=jnp.float32)  # (B, 3H)
        r = jax.nn.sigmoid(gi[:, :Hc] + gh[:, :Hc])
        z = jax.nn.sigmoid(gi[:, Hc:2 * Hc] + gh[:, Hc:2 * Hc])
        n = jnp.tanh(gi[:, 2 * Hc:] + r * (gh[:, 2 * Hc:] + bhn))
        h = n + z * (h - n)                                   # == (1-z)n + z h

    pred_ref[...] = (
        jnp.dot(h, wp_ref[...], preferred_element_type=jnp.float32) + bp_ref[...]
    ).astype(pred_ref.dtype)


def pallas_gru_pred(gi, whh, bhn, w_pred, b_pred):
    """gi: (B, T*3H); returns pred = Linear(h_last)  of shape (B, E)."""
    B = gi.shape[0]
    E = w_pred.shape[1]
    return pl.pallas_call(
        _gru_pred_kernel,
        out_shape=jax.ShapeDtypeStruct((B, E), jnp.float32),
        in_specs=[pl.BlockSpec(memory_space=pltpu.MemorySpace.VMEM)] * 5,
        out_specs=pl.BlockSpec(memory_space=pltpu.MemorySpace.VMEM),
    )(gi, whh, bhn, w_pred, b_pred)


# ---------------------------------------------------------------------------
# CPC forward (glue in plain JAX, hot paths in Pallas)
# ---------------------------------------------------------------------------
@jax.jit
def cpc_forward(params, x_input, y_input):
    B, Tin, C, H, W = x_input.shape
    Tout = y_input.shape[1]
    D = C * H * W
    E = params["w_enc"].shape[1]
    Hc = params["whh"].shape[0]

    x_flat = x_input.reshape(B * Tin, D)
    y_flat = y_input.reshape(B * Tout, D)

    # --- y path: encoder only (bf16 MXU, f32 accumulate) --------------------
    w_enc_bf = params["w_enc"].astype(jnp.bfloat16)
    y_enc = pallas_linear(y_flat, w_enc_bf, params["b_enc"])        # (B*Tout, E)
    y_encoded = y_enc.reshape(B, Tout, E)                           # torch.stack(dim=1)

    # --- x path: encoder and GRU input projection folded into one GEMM ------
    #   gi = x @ (w_enc @ wih) + (b_enc @ wih + b_ih [+ b_hr | b_hz | 0])
    w_gi = jnp.dot(params["w_enc"], params["wih"]).astype(jnp.bfloat16)  # (D, 3H)
    b_gi = jnp.dot(params["b_enc"], params["wih"]) + params["bih"]       # (1, 3H)
    b_gi = b_gi.at[:, :2 * Hc].add(params["bhh"][:, :2 * Hc])            # fold b_hr, b_hz
    b_hn = params["bhh"][:, 2 * Hc:]                                     # (1, H) stays gated

    gi = pallas_linear(x_flat, w_gi, b_gi)                          # (B*Tin, 3H)
    gi = gi.reshape(B, Tin * 3 * Hc)          # lane-major per timestep (free view)

    # --- GRU recurrence + fused MultiPrediction embedding --------------------
    pred = pallas_gru_pred(gi, params["whh"], b_hn,
                           params["w_pred"], params["b_pred"])      # (B, E)

    # MultiPrediction applies the SAME Linear out_seqlen times -> broadcast.
    preds = jnp.broadcast_to(pred[:, None, :], (B, Tout, E))
    return preds, y_encoded


# ---------------------------------------------------------------------------
# Pure-JAX (f32) reference for validation
# ---------------------------------------------------------------------------
def cpc_reference(params, x_input, y_input):
    B, Tin, C, H, W = x_input.shape
    Tout = y_input.shape[1]
    D = C * H * W
    Hc = params["whh"].shape[0]

    x_enc = x_input.reshape(B * Tin, D) @ params["w_enc"] + params["b_enc"]
    y_enc = y_input.reshape(B * Tout, D) @ params["w_enc"] + params["b_enc"]
    x_enc = x_enc.reshape(B, Tin, -1)
    y_enc = y_enc.reshape(B, Tout, -1)

    h = jnp.zeros((B, Hc), jnp.float32)
    for t in range(Tin):
        gi = x_enc[:, t] @ params["wih"] + params["bih"]
        gh = h @ params["whh"] + params["bhh"]
        r = jax.nn.sigmoid(gi[:, :Hc] + gh[:, :Hc])
        z = jax.nn.sigmoid(gi[:, Hc:2 * Hc] + gh[:, Hc:2 * Hc])
        n = jnp.tanh(gi[:, 2 * Hc:] + r * gh[:, 2 * Hc:])
        h = (1.0 - z) * n + z * h

    pred = h @ params["w_pred"] + params["b_pred"]
    preds = jnp.broadcast_to(pred[:, None, :], (B, Tout, pred.shape[-1]))
    return preds, y_enc


# ---------------------------------------------------------------------------
# Deterministic parameter construction (synthetic weights, no checkpoint)
# ---------------------------------------------------------------------------
def make_params(key, in_dim, encoder_dim, context_dim):
    ks = jax.random.split(key, 8)
    s = 0.02
    G = 3 * context_dim  # fused gates [r | z | n], PyTorch gate order
    return {
        # synthetic linear encoder: Linear(C*H*W, encoder_dim)
        "w_enc": s * jax.random.normal(ks[0], (in_dim, encoder_dim), jnp.float32),
        "b_enc": s * jax.random.normal(ks[1], (1, encoder_dim), jnp.float32),
        # GRU(encoder_dim, context_dim), gate weights fused along last axis
        "wih": s * jax.random.normal(ks[2], (encoder_dim, G), jnp.float32),
        "bih": s * jax.random.normal(ks[3], (1, G), jnp.float32),
        "whh": s * jax.random.normal(ks[4], (context_dim, G), jnp.float32),
        "bhh": s * jax.random.normal(ks[5], (1, G), jnp.float32),
        # MultiPrediction embedding: Linear(context_dim, encoder_dim)
        "w_pred": s * jax.random.normal(ks[6], (context_dim, encoder_dim), jnp.float32),
        "b_pred": s * jax.random.normal(ks[7], (1, encoder_dim), jnp.float32),
    }


if __name__ == "__main__":
    # small shapes: batch=2, in_seqlen=4, out_seqlen=4, frames 4x16x16 (NCHW),
    # module-default encoder_dim=128, context_dim=256 (lane-aligned).
    B, Tin, Tout = 2, 4, 4
    C, H, W = 4, 16, 16
    encoder_dim, context_dim = 128, 256

    key = jax.random.PRNGKey(0)
    k_params, k_x, k_y = jax.random.split(key, 3)

    params = make_params(k_params, C * H * W, encoder_dim, context_dim)
    x_input = jax.random.normal(k_x, (B, Tin, C, H, W), jnp.float32)
    y_input = jax.random.normal(k_y, (B, Tout, C, H, W), jnp.float32)

    preds, y_encoded = cpc_forward(params, x_input, y_input)
    jax.block_until_ready((preds, y_encoded))

    assert preds.shape == (B, Tout, encoder_dim)
    assert y_encoded.shape == (B, Tout, encoder_dim)
    assert bool(jnp.all(jnp.isfinite(preds))) and bool(jnp.all(jnp.isfinite(y_encoded)))

    # correctness vs f32 pure-JAX reference (tolerance loosened for the bf16
    # encoder-path MXU compute, per review note).
    preds_ref, y_enc_ref = cpc_reference(params, x_input, y_input)
    assert jnp.allclose(y_encoded, y_enc_ref, atol=5e-2, rtol=5e-2)
    assert jnp.allclose(preds, preds_ref, atol=5e-2, rtol=5e-2)

    print("KERNEL_OK")
</pallas_src>

<mosaic_0001>
module attributes {stable_mosaic.version = 11 : i64} {
  func.func @_linear_kernel(%arg0: i32, %arg1: memref<8x1024xf32, #tpu.memory_space<vmem>>, %arg2: memref<1024x768xbf16, #tpu.memory_space<vmem>>, %arg3: memref<1x768xf32, #tpu.memory_space<vmem>>, %arg4: memref<8x768xf32, #tpu.memory_space<vmem>>) attributes {dimension_semantics = [#tpu.dimension_semantics<parallel>], iteration_bounds = array<i64: 1>, scalar_prefetch = 0 : i64, scratch_operands = 0 : i64, tpu.core_type = #tpu.core_type<tc>, window_params = [{transform_indices = @transform_0, window_bounds = array<i64: 8, 1024>}, {pipeline_mode = #tpu.pipeline_mode<synchronous>, transform_indices = @transform_1, window_bounds = array<i64: 1024, 768>}, {pipeline_mode = #tpu.pipeline_mode<synchronous>, transform_indices = @transform_2, window_bounds = array<i64: 1, 768>}, {transform_indices = @transform_3, window_bounds = array<i64: 8, 768>}]} {
    %c0 = arith.constant 0 : index
    %c0_0 = arith.constant 0 : index
    %0 = vector.load %arg1[%c0, %c0_0] : memref<8x1024xf32, #tpu.memory_space<vmem>>, vector<8x1024xf32>
    %1 = arith.truncf %0 : vector<8x1024xf32> to vector<8x1024xbf16>
    %c0_1 = arith.constant 0 : index
    %c0_2 = arith.constant 0 : index
    %2 = vector.load %arg2[%c0_1, %c0_2] : memref<1024x768xbf16, #tpu.memory_space<vmem>>, vector<1024x768xbf16>
    %cst = arith.constant dense<0.000000e+00> : vector<8x768xf32>
    %3 = tpu.matmul %1, %2, %cst {dimension_numbers = #tpu.dot_dimension_numbers<[1], [0], [0], [1], [0, 0, 1, 1], [], []>} : vector<8x1024xbf16>, vector<1024x768xbf16>, vector<8x768xf32> -> vector<8x768xf32>
    %c0_3 = arith.constant 0 : index
    %c0_4 = arith.constant 0 : index
    %4 = vector.load %arg3[%c0_3, %c0_4] : memref<1x768xf32, #tpu.memory_space<vmem>>, vector<1x768xf32>
    %5 = vector.broadcast %4 : vector<1x768xf32> to vector<8x768xf32>
    %6 = arith.addf %3, %5 : vector<8x768xf32>
    %c0_5 = arith.constant 0 : index
    %c0_6 = arith.constant 0 : index
    %7 = vector.load %arg4[%c0_5, %c0_6] : memref<8x768xf32, #tpu.memory_space<vmem>>, vector<8x768xf32>
    tpu.vector_store %arg4[%c0_5, %c0_6], %6 {strides = array<i32>} : memref<8x768xf32, #tpu.memory_space<vmem>>, vector<8x768xf32>,
    return
  }
  func.func @transform_0(%arg0: i32) -> (i32, i32) {
    %c0_i32 = arith.constant 0 : i32
    %c0_i32_0 = arith.constant 0 : i32
    return %arg0, %c0_i32 : i32, i32
  }
  func.func @transform_1(%arg0: i32) -> (i32, i32) {
    %c0_i32 = arith.constant 0 : i32
    %c0_i32_0 = arith.constant 0 : i32
    %c0_i32_1 = arith.constant 0 : i32
    return %c0_i32, %c0_i32_0 : i32, i32
  }
  func.func @transform_2(%arg0: i32) -> (i32, i32) {
    %c0_i32 = arith.constant 0 : i32
    %c0_i32_0 = arith.constant 0 : i32
    %c0_i32_1 = arith.constant 0 : i32
    return %c0_i32, %c0_i32_0 : i32, i32
  }
  func.func @transform_3(%arg0: i32) -> (i32, i32) {
    %c0_i32 = arith.constant 0 : i32
    %c0_i32_0 = arith.constant 0 : i32
    return %arg0, %c0_i32 : i32, i32
  }
}

module attributes {stable_mosaic.version = 11 : i64} {
  func.func @_gru_pred_kernel(%arg0: memref<2x3072xf32, #tpu.memory_space<vmem>>, %arg1: memref<256x768xf32, #tpu.memory_space<vmem>>, %arg2: memref<1x256xf32, #tpu.memory_space<vmem>>, %arg3: memref<256x128xf32, #tpu.memory_space<vmem>>, %arg4: memref<1x128xf32, #tpu.memory_space<vmem>>, %arg5: memref<2x128xf32, #tpu.memory_space<vmem>>) attributes {dimension_semantics = [], scalar_prefetch = 0 : i64, scratch_operands = 0 : i64, tpu.core_type = #tpu.core_type<tc>} {
    %c0 = arith.constant 0 : index
    %c0_0 = arith.constant 0 : index
    %0 = vector.load %arg1[%c0, %c0_0] : memref<256x768xf32, #tpu.memory_space<vmem>>, vector<256x768xf32>
    %c0_1 = arith.constant 0 : index
    %c0_2 = arith.constant 0 : index
    %1 = vector.load %arg2[%c0_1, %c0_2] : memref<1x256xf32, #tpu.memory_space<vmem>>, vector<1x256xf32>
    %cst = arith.constant 0.000000e+00 : f32
    %2 = vector.broadcast %cst : f32 to vector<2x256xf32>
    %c0_3 = arith.constant 0 : index
    %c0_4 = arith.constant 0 : index
    %3 = vector.load %arg0[%c0_3, %c0_4] : memref<2x3072xf32, #tpu.memory_space<vmem>>, vector<2x768xf32>
    %cst_5 = arith.constant dense<0.000000e+00> : vector<2x768xf32>
    %4 = tpu.matmul %2, %0, %cst_5 {dimension_numbers = #tpu.dot_dimension_numbers<[1], [0], [0], [1], [0, 0, 1, 1], [], []>} : vector<2x256xf32>, vector<256x768xf32>, vector<2x768xf32> -> vector<2x768xf32>
    %5 = vector.extract_strided_slice %3 {offsets = [0, 0], sizes = [2, 256], strides = [1, 1]} : vector<2x768xf32> to vector<2x256xf32>
    %6 = vector.extract_strided_slice %4 {offsets = [0, 0], sizes = [2, 256], strides = [1, 1]} : vector<2x768xf32> to vector<2x256xf32>
    %7 = arith.addf %5, %6 : vector<2x256xf32>
    %8 = arith.negf %7 : vector<2x256xf32>
    %9 = math.exp %8 : vector<2x256xf32>
    %cst_6 = arith.constant 1.000000e+00 : f32
    %10 = vector.broadcast %cst_6 : f32 to vector<2x256xf32>
    %11 = arith.addf %10, %9 : vector<2x256xf32>
    %12 = arith.divf %10, %11 : vector<2x256xf32>
    %13 = vector.extract_strided_slice %3 {offsets = [0, 256], sizes = [2, 256], strides = [1, 1]} : vector<2x768xf32> to vector<2x256xf32>
    %14 = vector.extract_strided_slice %4 {offsets = [0, 256], sizes = [2, 256], strides = [1, 1]} : vector<2x768xf32> to vector<2x256xf32>
    %15 = arith.addf %13, %14 : vector<2x256xf32>
    %16 = arith.negf %15 : vector<2x256xf32>
    %17 = math.exp %16 : vector<2x256xf32>
    %cst_7 = arith.constant 1.000000e+00 : f32
    %18 = vector.broadcast %cst_7 : f32 to vector<2x256xf32>
    %19 = arith.addf %18, %17 : vector<2x256xf32>
    %20 = arith.divf %18, %19 : vector<2x256xf32>
    %21 = vector.extract_strided_slice %3 {offsets = [0, 512], sizes = [2, 256], strides = [1, 1]} : vector<2x768xf32> to vector<2x256xf32>
    %22 = vector.extract_strided_slice %4 {offsets = [0, 512], sizes = [2, 256], strides = [1, 1]} : vector<2x768xf32> to vector<2x256xf32>
    %23 = vector.broadcast %1 : vector<1x256xf32> to vector<2x256xf32>
    %24 = arith.addf %22, %23 : vector<2x256xf32>
    %25 = arith.mulf %12, %24 : vector<2x256xf32>
    %26 = arith.addf %21, %25 : vector<2x256xf32>
    %27 = math.tanh %26 : vector<2x256xf32>
    %28 = arith.subf %2, %27 : vector<2x256xf32>
    %29 = arith.mulf %20, %28 : vector<2x256xf32>
    %30 = arith.addf %27, %29 : vector<2x256xf32>
    %c0_8 = arith.constant 0 : index
    %c768 = arith.constant 768 : index
    %31 = vector.load %arg0[%c0_8, %c768] : memref<2x3072xf32, #tpu.memory_space<vmem>>, vector<2x768xf32>
    %cst_9 = arith.constant dense<0.000000e+00> : vector<2x768xf32>
    %32 = tpu.matmul %30, %0, %cst_9 {dimension_numbers = #tpu.dot_dimension_numbers<[1], [0], [0], [1], [0, 0, 1, 1], [], []>} : vector<2x256xf32>, vector<256x768xf32>, vector<2x768xf32> -> vector<2x768xf32>
    %33 = vector.extract_strided_slice %31 {offsets = [0, 0], sizes = [2, 256], strides = [1, 1]} : vector<2x768xf32> to vector<2x256xf32>
    %34 = vector.extract_strided_slice %32 {offsets = [0, 0], sizes = [2, 256], strides = [1, 1]} : vector<2x768xf32> to vector<2x256xf32>
    %35 = arith.addf %33, %34 : vector<2x256xf32>
    %36 = arith.negf %35 : vector<2x256xf32>
    %37 = math.exp %36 : vector<2x256xf32>
    %cst_10 = arith.constant 1.000000e+00 : f32
    %38 = vector.broadcast %cst_10 : f32 to vector<2x256xf32>
    %39 = arith.addf %38, %37 : vector<2x256xf32>
    %40 = arith.divf %38, %39 : vector<2x256xf32>
    %41 = vector.extract_strided_slice %31 {offsets = [0, 256], sizes = [2, 256], strides = [1, 1]} : vector<2x768xf32> to vector<2x256xf32>
    %42 = vector.extract_strided_slice %32 {offsets = [0, 256], sizes = [2, 256], strides = [1, 1]} : vector<2x768xf32> to vector<2x256xf32>
    %43 = arith.addf %41, %42 : vector<2x256xf32>
    %44 = arith.negf %43 : vector<2x256xf32>
    %45 = math.exp %44 : vector<2x256xf32>
    %cst_11 = arith.constant 1.000000e+00 : f32
    %46 = vector.broadcast %cst_11 : f32 to vector<2x256xf32>
    %47 = arith.addf %46, %45 : vector<2x256xf32>
    %48 = arith.divf %46, %47 : vector<2x256xf32>
    %49 = vector.extract_strided_slice %31 {offsets = [0, 512], sizes = [2, 256], strides = [1, 1]} : vector<2x768xf32> to vector<2x256xf32>
    %50 = vector.extract_strided_slice %32 {offsets = [0, 512], sizes = [2, 256], strides = [1, 1]} : vector<2x768xf32> to vector<2x256xf32>
    %51 = vector.broadcast %1 : vector<1x256xf32> to vector<2x256xf32>
    %52 = arith.addf %50, %51 : vector<2x256xf32>
    %53 = arith.mulf %40, %52 : vector<2x256xf32>
    %54 = arith.addf %49, %53 : vector<2x256xf32>
    %55 = math.tanh %54 : vector<2x256xf32>
    %56 = arith.subf %30, %55 : vector<2x256xf32>
    %57 = arith.mulf %48, %56 : vector<2x256xf32>
    %58 = arith.addf %55, %57 : vector<2x256xf32>
    %c0_12 = arith.constant 0 : index
    %c1536 = arith.constant 1536 : index
    %59 = vector.load %arg0[%c0_12, %c1536] : memref<2x3072xf32, #tpu.memory_space<vmem>>, vector<2x768xf32>
    %cst_13 = arith.constant dense<0.000000e+00> : vector<2x768xf32>
    %60 = tpu.matmul %58, %0, %cst_13 {dimension_numbers = #tpu.dot_dimension_numbers<[1], [0], [0], [1], [0, 0, 1, 1], [], []>} : vector<2x256xf32>, vector<256x768xf32>, vector<2x768xf32> -> vector<2x768xf32>
    %61 = vector.extract_strided_slice %59 {offsets = [0, 0], sizes = [2, 256], strides = [1, 1]} : vector<2x768xf32> to vector<2x256xf32>
    %62 = vector.extract_strided_slice %60 {offsets = [0, 0], sizes = [2, 256], strides = [1, 1]} : vector<2x768xf32> to vector<2x256xf32>
    %63 = arith.addf %61, %62 : vector<2x256xf32>
    %64 = arith.negf %63 : vector<2x256xf32>
    %65 = math.exp %64 : vector<2x256xf32>
    %cst_14 = arith.constant 1.000000e+00 : f32
    %66 = vector.broadcast %cst_14 : f32 to vector<2x256xf32>
    %67 = arith.addf %66, %65 : vector<2x256xf32>
    %68 = arith.divf %66, %67 : vector<2x256xf32>
    %69 = vector.extract_strided_slice %59 {offsets = [0, 256], sizes = [2, 256], strides = [1, 1]} : vector<2x768xf32> to vector<2x256xf32>
    %70 = vector.extract_strided_slice %60 {offsets = [0, 256], sizes = [2, 256], strides = [1, 1]} : vector<2x768xf32> to vector<2x256xf32>
    %71 = arith.addf %69, %70 : vector<2x256xf32>
    %72 = arith.negf %71 : vector<2x256xf32>
    %73 = math.exp %72 : vector<2x256xf32>
    %cst_15 = arith.constant 1.000000e+00 : f32
    %74 = vector.broadcast %cst_15 : f32 to vector<2x256xf32>
    %75 = arith.addf %74, %73 : vector<2x256xf32>
    %76 = arith.divf %74, %75 : vector<2x256xf32>
    %77 = vector.extract_strided_slice %59 {offsets = [0, 512], sizes = [2, 256], strides = [1, 1]} : vector<2x768xf32> to vector<2x256xf32>
    %78 = vector.extract_strided_slice %60 {offsets = [0, 512], sizes = [2, 256], strides = [1, 1]} : vector<2x768xf32> to vector<2x256xf32>
    %79 = vector.broadcast %1 : vector<1x256xf32> to vector<2x256xf32>
    %80 = arith.addf %78, %79 : vector<2x256xf32>
    %81 = arith.mulf %68, %80 : vector<2x256xf32>
    %82 = arith.addf %77, %81 : vector<2x256xf32>
    %83 = math.tanh %82 : vector<2x256xf32>
    %84 = arith.subf %58, %83 : vector<2x256xf32>
    %85 = arith.mulf %76, %84 : vector<2x256xf32>
    %86 = arith.addf %83, %85 : vector<2x256xf32>
    %c0_16 = arith.constant 0 : index
    %c2304 = arith.constant 2304 : index
    %87 = vector.load %arg0[%c0_16, %c2304] : memref<2x3072xf32, #tpu.memory_space<vmem>>, vector<2x768xf32>
    %cst_17 = arith.constant dense<0.000000e+00> : vector<2x768xf32>
    %88 = tpu.matmul %86, %0, %cst_17 {dimension_numbers = #tpu.dot_dimension_numbers<[1], [0], [0], [1], [0, 0, 1, 1], [], []>} : vector<2x256xf32>, vector<256x768xf32>, vector<2x768xf32> -> vector<2x768xf32>
    %89 = vector.extract_strided_slice %87 {offsets = [0, 0], sizes = [2, 256], strides = [1, 1]} : vector<2x768xf32> to vector<2x256xf32>
    %90 = vector.extract_strided_slice %88 {offsets = [0, 0], sizes = [2, 256], strides = [1, 1]} : vector<2x768xf32> to vector<2x256xf32>
    %91 = arith.addf %89, %90 : vector<2x256xf32>
    %92 = arith.negf %91 : vector<2x256xf32>
    %93 = math.exp %92 : vector<2x256xf32>
    %cst_18 = arith.constant 1.000000e+00 : f32
    %94 = vector.broadcast %cst_18 : f32 to vector<2x256xf32>
    %95 = arith.addf %94, %93 : vector<2x256xf32>
    %96 = arith.divf %94, %95 : vector<2x256xf32>
    %97 = vector.extract_strided_slice %87 {offsets = [0, 256], sizes = [2, 256], strides = [1, 1]} : vector<2x768xf32> to vector<2x256xf32>
    %98 = vector.extract_strided_slice %88 {offsets = [0, 256], sizes = [2, 256], strides = [1, 1]} : vector<2x768xf32> to vector<2x256xf32>
    %99 = arith.addf %97, %98 : vector<2x256xf32>
    %100 = arith.negf %99 : vector<2x256xf32>
    %101 = math.exp %100 : vector<2x256xf32>
    %cst_19 = arith.constant 1.000000e+00 : f32
    %102 = vector.broadcast %cst_19 : f32 to vector<2x256xf32>
    %103 = arith.addf %102, %101 : vector<2x256xf32>
    %104 = arith.divf %102, %103 : vector<2x256xf32>
    %105 = vector.extract_strided_slice %87 {offsets = [0, 512], sizes = [2, 256], strides = [1, 1]} : vector<2x768xf32> to vector<2x256xf32>
    %106 = vector.extract_strided_slice %88 {offsets = [0, 512], sizes = [2, 256], strides = [1, 1]} : vector<2x768xf32> to vector<2x256xf32>
    %107 = vector.broadcast %1 : vector<1x256xf32> to vector<2x256xf32>
    %108 = arith.addf %106, %107 : vector<2x256xf32>
    %109 = arith.mulf %96, %108 : vector<2x256xf32>
    %110 = arith.addf %105, %109 : vector<2x256xf32>
    %111 = math.tanh %110 : vector<2x256xf32>
    %112 = arith.subf %86, %111 : vector<2x256xf32>
    %113 = arith.mulf %104, %112 : vector<2x256xf32>
    %114 = arith.addf %111, %113 : vector<2x256xf32>
    %c0_20 = arith.constant 0 : index
    %c0_21 = arith.constant 0 : index
    %115 = vector.load %arg3[%c0_20, %c0_21] : memref<256x128xf32, #tpu.memory_space<vmem>>, vector<256x128xf32>
    %cst_22 = arith.constant dense<0.000000e+00> : vector<2x128xf32>
    %116 = tpu.matmul %114, %115, %cst_22 {dimension_numbers = #tpu.dot_dimension_numbers<[1], [0], [0], [1], [0, 0, 1, 1], [], []>} : vector<2x256xf32>, vector<256x128xf32>, vector<2x128xf32> -> vector<2x128xf32>
    %c0_23 = arith.constant 0 : index
    %c0_24 = arith.constant 0 : index
    %117 = vector.load %arg4[%c0_23, %c0_24] : memref<1x128xf32, #tpu.memory_space<vmem>>, vector<1x128xf32>
    %118 = vector.broadcast %117 : vector<1x128xf32> to vector<2x128xf32>
    %119 = arith.addf %116, %118 : vector<2x128xf32>
    %c0_25 = arith.constant 0 : index
    %c0_26 = arith.constant 0 : index
    %120 = vector.load %arg5[%c0_25, %c0_26] : memref<2x128xf32, #tpu.memory_space<vmem>>, vector<2x128xf32>
    tpu.vector_store %arg5[%c0_25, %c0_26], %119 {strides = array<i32>} : memref<2x128xf32, #tpu.memory_space<vmem>>, vector<2x128xf32>,
    return
  }
}

module attributes {stable_mosaic.version = 11 : i64} {
  func.func @_linear_kernel(%arg0: i32, %arg1: memref<8x1024xf32, #tpu.memory_space<vmem>>, %arg2: memref<1024x128xbf16, #tpu.memory_space<vmem>>, %arg3: memref<1x128xf32, #tpu.memory_space<vmem>>, %arg4: memref<8x128xf32, #tpu.memory_space<vmem>>) attributes {dimension_semantics = [#tpu.dimension_semantics<parallel>], iteration_bounds = array<i64: 1>, scalar_prefetch = 0 : i64, scratch_operands = 0 : i64, tpu.core_type = #tpu.core_type<tc>, window_params = [{transform_indices = @transform_0, window_bounds = array<i64: 8, 1024>}, {pipeline_mode = #tpu.pipeline_mode<synchronous>, transform_indices = @transform_1, window_bounds = array<i64: 1024, 128>}, {pipeline_mode = #tpu.pipeline_mode<synchronous>, transform_indices = @transform_2, window_bounds = array<i64: 1, 128>}, {transform_indices = @transform_3, window_bounds = array<i64: 8, 128>}]} {
    %c0 = arith.constant 0 : index
    %c0_0 = arith.constant 0 : index
    %0 = vector.load %arg1[%c0, %c0_0] : memref<8x1024xf32, #tpu.memory_space<vmem>>, vector<8x1024xf32>
    %1 = arith.truncf %0 : vector<8x1024xf32> to vector<8x1024xbf16>
    %c0_1 = arith.constant 0 : index
    %c0_2 = arith.constant 0 : index
    %2 = vector.load %arg2[%c0_1, %c0_2] : memref<1024x128xbf16, #tpu.memory_space<vmem>>, vector<1024x128xbf16>
    %cst = arith.constant dense<0.000000e+00> : vector<8x128xf32>
    %3 = tpu.matmul %1, %2, %cst {dimension_numbers = #tpu.dot_dimension_numbers<[1], [0], [0], [1], [0, 0, 1, 1], [], []>} : vector<8x1024xbf16>, vector<1024x128xbf16>, vector<8x128xf32> -> vector<8x128xf32>
    %c0_3 = arith.constant 0 : index
    %c0_4 = arith.constant 0 : index
    %4 = vector.load %arg3[%c0_3, %c0_4] : memref<1x128xf32, #tpu.memory_space<vmem>>, vector<1x128xf32>
    %5 = vector.broadcast %4 : vector<1x128xf32> to vector<8x128xf32>
    %6 = arith.addf %3, %5 : vector<8x128xf32>
    %c0_5 = arith.constant 0 : index
    %c0_6 = arith.constant 0 : index
    %7 = vector.load %arg4[%c0_5, %c0_6] : memref<8x128xf32, #tpu.memory_space<vmem>>, vector<8x128xf32>
    tpu.vector_store %arg4[%c0_5, %c0_6], %6 {strides = array<i32>} : memref<8x128xf32, #tpu.memory_space<vmem>>, vector<8x128xf32>,
    return
  }
  func.func @transform_0(%arg0: i32) -> (i32, i32) {
    %c0_i32 = arith.constant 0 : i32
    %c0_i32_0 = arith.constant 0 : i32
    return %arg0, %c0_i32 : i32, i32
  }
  func.func @transform_1(%arg0: i32) -> (i32, i32) {
    %c0_i32 = arith.constant 0 : i32
    %c0_i32_0 = arith.constant 0 : i32
    %c0_i32_1 = arith.constant 0 : i32
    return %c0_i32, %c0_i32_0 : i32, i32
  }
  func.func @transform_2(%arg0: i32) -> (i32, i32) {
    %c0_i32 = arith.constant 0 : i32
    %c0_i32_0 = arith.constant 0 : i32
    %c0_i32_1 = arith.constant 0 : i32
    return %c0_i32, %c0_i32_0 : i32, i32
  }
  func.func @transform_3(%arg0: i32) -> (i32, i32) {
    %c0_i32 = arith.constant 0 : i32
    %c0_i32_0 = arith.constant 0 : i32
    return %arg0, %c0_i32 : i32, i32
  }
}

</mosaic_0001>

<llo_original>
// kernel: cpc_forward.3
$region0: #{cpc_forward.3}
  #allocation0 [shape = 'u32[]', space=smem, size = 0x4, offset = 0x4, fixed_abs, tag = 'smem constant byte address 0x4 - core index']
  #allocation1 [shape = 'u32[144,128]{1,0:T(1,128)}', space=vmem, size = 0x12000, scoped, tag = 'internal scratch']
  %s0 = inlined_call_operand.vmem [shape: f32[8,1024], index: 0, kind: input, shape index: {}]
  %s1 = inlined_call_operand.vmem [shape: bf16[1024,128], index: 1, kind: input, shape index: {}]
  %s2 = inlined_call_operand.vmem [shape: f32[1,128], index: 2, kind: input, shape index: {}]
  %s3 = inlined_call_operand.hbm [shape: f32[8,128], index: 3, kind: output, shape index: {}]
  %s4 = sld [smem:[#allocation0]]
  $region22: #{cpc_forward.3} parent=0
    _
  %s6 = ssub.s32 1, %s4
  %s7 = scalar_select 0, %s6, %s4
  $region1: #{cpc_forward.3} parent=0
    #allocation2 [shape = 'u8[4096]{0}', space=vmem, size = 0x1000, scoped, tag = 'output window, operand 0, single buffered']
    #allocation3 [shape = 's32[1]{0}', space=sflag, size = 0x4, scoped, tag = 'scoped memory for cpc_forward.3']
    %8 = vsyncpa [#allocation3], 0
    // Predicated region
    $region2: #{cpc_forward.3} parent=1 // pred_check
      _
    $region3: #{cpc_forward.3} parent=1 // pred_check_branch
      %10 = sbr.rel (0) target = $region5
    $region4: #{cpc_forward.3} parent=1 // pred_region
      _
    $region5: #{cpc_forward.3} parent=1 // pred_fallthru
      _
    // Predicated region
    $region6: #{cpc_forward.3} parent=1 // pred_check
      _
    $region7: #{cpc_forward.3} parent=1 // pred_check_branch
      %12 = sbr.rel (0) target = $region9
    $region8: #{cpc_forward.3} parent=1 // pred_region
      _
    $region9: #{cpc_forward.3} parent=1 // pred_fallthru
      _
    // Predicated region
    $region10: #{cpc_forward.3} parent=1 // pred_check
      _
    $region11: #{cpc_forward.3} parent=1 // pred_check_branch
      %14 = sbr.rel (0) target = $region13
    $region12: #{cpc_forward.3} parent=1 // pred_region
      _
    $region13: #{cpc_forward.3} parent=1 // pred_fallthru
      _
    %v16 = vld [vmem:[%s0] sm:$0xff]
    %v17 = vld [vmem:[%s0 + $0x8] sm:$0xff]
    %v18 = vld [vmem:[%s0 + $0x10] sm:$0xff]
    %v19 = vld [vmem:[%s0 + $0x18] sm:$0xff]
    %v20 = vld [vmem:[%s0 + $0x20] sm:$0xff]
    %v21 = vld [vmem:[%s0 + $0x28] sm:$0xff]
    %v22 = vld [vmem:[%s0 + $0x30] sm:$0xff]
    %v23 = vld [vmem:[%s0 + $0x38] sm:$0xff]
    %v24 = vpack.c.bf16 %v16, %v16
    %v25 = vpack.c.bf16 %v17, %v17
    %v26 = vpack.c.bf16 %v18, %v18
    %v27 = vpack.c.bf16 %v19, %v19
    %v28 = vpack.c.bf16 %v20, %v20
    %v29 = vpack.c.bf16 %v21, %v21
    %v30 = vpack.c.bf16 %v22, %v22
    %v31 = vpack.c.bf16 %v23, %v23
    %v32 = vld [vmem:[%s1] sm:$0xf]
    %v33 = vld [vmem:[%s1 + $0x4] sm:$0xf]
    %v34 = vld [vmem:[%s1 + $0x8] sm:$0xf]
    %v35 = vld [vmem:[%s1 + $0xc] sm:$0xf]
    %v36 = vld [vmem:[%s1 + $0x10] sm:$0xf]
    %v37 = vld [vmem:[%s1 + $0x14] sm:$0xf]
    %v38 = vld [vmem:[%s1 + $0x18] sm:$0xf]
    %v39 = vld [vmem:[%s1 + $0x1c] sm:$0xf]
    %v40 = vld [vmem:[%s1 + $0x20] sm:$0xf]
    %v41 = vld [vmem:[%s1 + $0x24] sm:$0xf]
    %v42 = vld [vmem:[%s1 + $0x28] sm:$0xf]
    %v43 = vld [vmem:[%s1 + $0x2c] sm:$0xf]
    %v44 = vld [vmem:[%s1 + $0x30] sm:$0xf]
    %v45 = vld [vmem:[%s1 + $0x34] sm:$0xf]
    %v46 = vld [vmem:[%s1 + $0x38] sm:$0xf]
    %v47 = vld [vmem:[%s1 + $0x3c] sm:$0xf]
    %v48 = vld [vmem:[%s1 + $0x40] sm:$0xf]
    %v49 = vld [vmem:[%s1 + $0x44] sm:$0xf]
    %v50 = vld [vmem:[%s1 + $0x48] sm:$0xf]
    %v51 = vld [vmem:[%s1 + $0x4c] sm:$0xf]
    %v52 = vld [vmem:[%s1 + $0x50] sm:$0xf]
    %v53 = vld [vmem:[%s1 + $0x54] sm:$0xf]
    %v54 = vld [vmem:[%s1 + $0x58] sm:$0xf]
    %v55 = vld [vmem:[%s1 + $0x5c] sm:$0xf]
    %v56 = vld [vmem:[%s1 + $0x60] sm:$0xf]
    %v57 = vld [vmem:[%s1 + $0x64] sm:$0xf]
    %v58 = vld [vmem:[%s1 + $0x68] sm:$0xf]
    %v59 = vld [vmem:[%s1 + $0x6c] sm:$0xf]
    %v60 = vld [vmem:[%s1 + $0x70] sm:$0xf]
    %v61 = vld [vmem:[%s1 + $0x74] sm:$0xf]
    %v62 = vld [vmem:[%s1 + $0x78] sm:$0xf]
    %v63 = vld [vmem:[%s1 + $0x7c] sm:$0xf]
    %v64 = vld [vmem:[%s1 + $0x80] sm:$0xf]
    %v65 = vld [vmem:[%s1 + $0x84] sm:$0xf]
    %v66 = vld [vmem:[%s1 + $0x88] sm:$0xf]
    %v67 = vld [vmem:[%s1 + $0x8c] sm:$0xf]
    %v68 = vld [vmem:[%s1 + $0x90] sm:$0xf]
    %v69 = vld [vmem:[%s1 + $0x94] sm:$0xf]
    %v70 = vld [vmem:[%s1 + $0x98] sm:$0xf]
    %v71 = vld [vmem:[%s1 + $0x9c] sm:$0xf]
    %v72 = vld [vmem:[%s1 + $0xa0] sm:$0xf]
    %v73 = vld [vmem:[%s1 + $0xa4] sm:$0xf]
    %v74 = vld [vmem:[%s1 + $0xa8] sm:$0xf]
    %v75 = vld [vmem:[%s1 + $0xac] sm:$0xf]
    %v76 = vld [vmem:[%s1 + $0xb0] sm:$0xf]
    %v77 = vld [vmem:[%s1 + $0xb4] sm:$0xf]
    %v78 = vld [vmem:[%s1 + $0xb8] sm:$0xf]
    %v79 = vld [vmem:[%s1 + $0xbc] sm:$0xf]
    %v80 = vld [vmem:[%s1 + $0xc0] sm:$0xf]
    %v81 = vld [vmem:[%s1 + $0xc4] sm:$0xf]
    %v82 = vld [vmem:[%s1 + $0xc8] sm:$0xf]
    %v83 = vld [vmem:[%s1 + $0xcc] sm:$0xf]
    %v84 = vld [vmem:[%s1 + $0xd0] sm:$0xf]
    %v85 = vld [vmem:[%s1 + $0xd4] sm:$0xf]
    %v86 = vld [vmem:[%s1 + $0xd8] sm:$0xf]
    %v87 = vld [vmem:[%s1 + $0xdc] sm:$0xf]
    %v88 = vld [vmem:[%s1 + $0xe0] sm:$0xf]
    %v89 = vld [vmem:[%s1 + $0xe4] sm:$0xf]
    %v90 = vld [vmem:[%s1 + $0xe8] sm:$0xf]
    %v91 = vld [vmem:[%s1 + $0xec] sm:$0xf]
    %v92 = vld [vmem:[%s1 + $0xf0] sm:$0xf]
    %v93 = vld [vmem:[%s1 + $0xf4] sm:$0xf]
    %v94 = vld [vmem:[%s1 + $0xf8] sm:$0xf]
    %v95 = vld [vmem:[%s1 + $0xfc] sm:$0xf]
    %v96 = vld [vmem:[%s1 + $0x100] sm:$0xf]
    %v97 = vld [vmem:[%s1 + $0x104] sm:$0xf]
    %v98 = vld [vmem:[%s1 + $0x108] sm:$0xf]
    %v99 = vld [vmem:[%s1 + $0x10c] sm:$0xf]
    %v100 = vld [vmem:[%s1 + $0x110] sm:$0xf]
    %v101 = vld [vmem:[%s1 + $0x114] sm:$0xf]
    %v102 = vld [vmem:[%s1 + $0x118] sm:$0xf]
    %v103 = vld [vmem:[%s1 + $0x11c] sm:$0xf]
    %v104 = vld [vmem:[%s1 + $0x120] sm:$0xf]
    %v105 = vld [vmem:[%s1 + $0x124] sm:$0xf]
    %v106 = vld [vmem:[%s1 + $0x128] sm:$0xf]
    %v107 = vld [vmem:[%s1 + $0x12c] sm:$0xf]
    %v108 = vld [vmem:[%s1 + $0x130] sm:$0xf]
    %v109 = vld [vmem:[%s1 + $0x134] sm:$0xf]
    %v110 = vld [vmem:[%s1 + $0x138] sm:$0xf]
    %v111 = vld [vmem:[%s1 + $0x13c] sm:$0xf]
    %v112 = vld [vmem:[%s1 + $0x140] sm:$0xf]
    %v113 = vld [vmem:[%s1 + $0x144] sm:$0xf]
    %v114 = vld [vmem:[%s1 + $0x148] sm:$0xf]
    %v115 = vld [vmem:[%s1 + $0x14c] sm:$0xf]
    %v116 = vld [vmem:[%s1 + $0x150] sm:$0xf]
    %v117 = vld [vmem:[%s1 + $0x154] sm:$0xf]
    %v118 = vld [vmem:[%s1 + $0x158] sm:$0xf]
    %v119 = vld [vmem:[%s1 + $0x15c] sm:$0xf]
    %v120 = vld [vmem:[%s1 + $0x160] sm:$0xf]
    %v121 = vld [vmem:[%s1 + $0x164] sm:$0xf]
    %v122 = vld [vmem:[%s1 + $0x168] sm:$0xf]
    %v123 = vld [vmem:[%s1 + $0x16c] sm:$0xf]
    %v124 = vld [vmem:[%s1 + $0x170] sm:$0xf]
    %v125 = vld [vmem:[%s1 + $0x174] sm:$0xf]
    %v126 = vld [vmem:[%s1 + $0x178] sm:$0xf]
    %v127 = vld [vmem:[%s1 + $0x17c] sm:$0xf]
    %v128 = vld [vmem:[%s1 + $0x180] sm:$0xf]
    %v129 = vld [vmem:[%s1 + $0x184] sm:$0xf]
    %v130 = vld [vmem:[%s1 + $0x188] sm:$0xf]
    %v131 = vld [vmem:[%s1 + $0x18c] sm:$0xf]
    %v132 = vld [vmem:[%s1 + $0x190] sm:$0xf]
    %v133 = vld [vmem:[%s1 + $0x194] sm:$0xf]
    %v134 = vld [vmem:[%s1 + $0x198] sm:$0xf]
    %v135 = vld [vmem:[%s1 + $0x19c] sm:$0xf]
    %v136 = vld [vmem:[%s1 + $0x1a0] sm:$0xf]
    %v137 = vld [vmem:[%s1 + $0x1a4] sm:$0xf]
    %v138 = vld [vmem:[%s1 + $0x1a8] sm:$0xf]
    %v139 = vld [vmem:[%s1 + $0x1ac] sm:$0xf]
    %v140 = vld [vmem:[%s1 + $0x1b0] sm:$0xf]
    %v141 = vld [vmem:[%s1 + $0x1b4] sm:$0xf]
    %v142 = vld [vmem:[%s1 + $0x1b8] sm:$0xf]
    %v143 = vld [vmem:[%s1 + $0x1bc] sm:$0xf]
    %v144 = vld [vmem:[%s1 + $0x1c0] sm:$0xf]
    %v145 = vld [vmem:[%s1 + $0x1c4] sm:$0xf]
    %v146 = vld [vmem:[%s1 + $0x1c8] sm:$0xf]
    %v147 = vld [vmem:[%s1 + $0x1cc] sm:$0xf]
    %v148 = vld [vmem:[%s1 + $0x1d0] sm:$0xf]
    %v149 = vld [vmem:[%s1 + $0x1d4] sm:$0xf]
    %v150 = vld [vmem:[%s1 + $0x1d8] sm:$0xf]
    %v151 = vld [vmem:[%s1 + $0x1dc] sm:$0xf]
    %v152 = vld [vmem:[%s1 + $0x1e0] sm:$0xf]
    %v153 = vld [vmem:[%s1 + $0x1e4] sm:$0xf]
    %v154 = vld [vmem:[%s1 + $0x1e8] sm:$0xf]
    %v155 = vld [vmem:[%s1 + $0x1ec] sm:$0xf]
    %v156 = vld [vmem:[%s1 + $0x1f0] sm:$0xf]
    %v157 = vld [vmem:[%s1 + $0x1f4] sm:$0xf]
    %v158 = vld [vmem:[%s1 + $0x1f8] sm:$0xf]
    %v159 = vld [vmem:[%s1 + $0x1fc] sm:$0xf]
    %v160 = vld [vmem:[%s2] sm:$0x1]
    %v162 = vlaneseq
    %v163 = vshrl.u32 %v162, 7
    %v164 = vsub.s32 0, %v163
    %v165 = vrot.slane %v160, %v164
    %v295 = vunpack.c.l.b16 %v32
    %v296 = vunpack.c.l.b16 %v33
    %v297 = vunpack.c.l.b16 %v34
    %v298 = vunpack.c.l.b16 %v35
    %v299 = vunpack.c.l.b16 %v36
    %v300 = vunpack.c.l.b16 %v37
    %v301 = vunpack.c.l.b16 %v38
    %v302 = vunpack.c.l.b16 %v39
    %v303 = vunpack.c.l.b16 %v40
    %v304 = vunpack.c.l.b16 %v41
    %v305 = vunpack.c.l.b16 %v42
    %v306 = vunpack.c.l.b16 %v43
    %v307 = vunpack.c.l.b16 %v44
    %v308 = vunpack.c.l.b16 %v45
    %v309 = vunpack.c.l.b16 %v46
    %v310 = vunpack.c.l.b16 %v47
    %v311 = vunpack.c.l.b16 %v48
    %v312 = vunpack.c.l.b16 %v49
    %v313 = vunpack.c.l.b16 %v50
    %v314 = vunpack.c.l.b16 %v51
    %v315 = vunpack.c.l.b16 %v52
    %v316 = vunpack.c.l.b16 %v53
    %v317 = vunpack.c.l.b16 %v54
    %v318 = vunpack.c.l.b16 %v55
    %v319 = vunpack.c.l.b16 %v56
    %v320 = vunpack.c.l.b16 %v57
    %v321 = vunpack.c.l.b16 %v58
    %v322 = vunpack.c.l.b16 %v59
    %v323 = vunpack.c.l.b16 %v60
    %v324 = vunpack.c.l.b16 %v61
    %v325 = vunpack.c.l.b16 %v62
    %v326 = vunpack.c.l.b16 %v63
    %v327 = vunpack.c.l.b16 %v64
    %v328 = vunpack.c.l.b16 %v65
    %v329 = vunpack.c.l.b16 %v66
    %v330 = vunpack.c.l.b16 %v67
    %v331 = vunpack.c.l.b16 %v68
    %v332 = vunpack.c.l.b16 %v69
    %v333 = vunpack.c.l.b16 %v70
    %v334 = vunpack.c.l.b16 %v71
    %v335 = vunpack.c.l.b16 %v72
    %v336 = vunpack.c.l.b16 %v73
    %v337 = vunpack.c.l.b16 %v74
    %v338 = vunpack.c.l.b16 %v75
    %v339 = vunpack.c.l.b16 %v76
    %v340 = vunpack.c.l.b16 %v77
    %v341 = vunpack.c.l.b16 %v78
    %v342 = vunpack.c.l.b16 %v79
    %v343 = vunpack.c.l.b16 %v80
    %v344 = vunpack.c.l.b16 %v81
    %v345 = vunpack.c.l.b16 %v82
    %v346 = vunpack.c.l.b16 %v83
    %v347 = vunpack.c.l.b16 %v84
    %v348 = vunpack.c.l.b16 %v85
    %v349 = vunpack.c.l.b16 %v86
    %v350 = vunpack.c.l.b16 %v87
    %v351 = vunpack.c.l.b16 %v88
    %v352 = vunpack.c.l.b16 %v89
    %v353 = vunpack.c.l.b16 %v90
    %v354 = vunpack.c.l.b16 %v91
    %v355 = vunpack.c.l.b16 %v92
    %v356 = vunpack.c.l.b16 %v93
    %v357 = vunpack.c.l.b16 %v94
    %v358 = vunpack.c.l.b16 %v95
    %v359 = vunpack.c.l.b16 %v96
    %v360 = vunpack.c.l.b16 %v97
    %v361 = vunpack.c.l.b16 %v98
    %v362 = vunpack.c.l.b16 %v99
    %v363 = vunpack.c.l.b16 %v100
    %v364 = vunpack.c.l.b16 %v101
    %v365 = vunpack.c.l.b16 %v102
    %v366 = vunpack.c.l.b16 %v103
    %v367 = vunpack.c.l.b16 %v104
    %v368 = vunpack.c.l.b16 %v105
    %v369 = vunpack.c.l.b16 %v106
    %v370 = vunpack.c.l.b16 %v107
    %v371 = vunpack.c.l.b16 %v108
    %v372 = vunpack.c.l.b16 %v109
    %v373 = vunpack.c.l.b16 %v110
    %v374 = vunpack.c.l.b16 %v111
    %v375 = vunpack.c.l.b16 %v112
    %v376 = vunpack.c.l.b16 %v113
    %v377 = vunpack.c.l.b16 %v114
    %v378 = vunpack.c.l.b16 %v115
    %v379 = vunpack.c.l.b16 %v116
    %v380 = vunpack.c.l.b16 %v117
    %v381 = vunpack.c.l.b16 %v118
    %v382 = vunpack.c.l.b16 %v119
    %v383 = vunpack.c.l.b16 %v120
    %v384 = vunpack.c.l.b16 %v121
    %v385 = vunpack.c.l.b16 %v122
    %v386 = vunpack.c.l.b16 %v123
    %v387 = vunpack.c.l.b16 %v124
    %v388 = vunpack.c.l.b16 %v125
    %v389 = vunpack.c.l.b16 %v126
    %v390 = vunpack.c.l.b16 %v127
    %v391 = vunpack.c.l.b16 %v128
    %v392 = vunpack.c.l.b16 %v129
    %v393 = vunpack.c.l.b16 %v130
    %v394 = vunpack.c.l.b16 %v131
    %v395 = vunpack.c.l.b16 %v132
    %v396 = vunpack.c.l.b16 %v133
    %v397 = vunpack.c.l.b16 %v134
    %v398 = vunpack.c.l.b16 %v135
    %v399 = vunpack.c.l.b16 %v136
    %v400 = vunpack.c.l.b16 %v137
    %v401 = vunpack.c.l.b16 %v138
    %v402 = vunpack.c.l.b16 %v139
    %v403 = vunpack.c.l.b16 %v140
    %v404 = vunpack.c.l.b16 %v141
    %v405 = vunpack.c.l.b16 %v142
    %v406 = vunpack.c.l.b16 %v143
    %v407 = vunpack.c.l.b16 %v144
    %v408 = vunpack.c.l.b16 %v145
    %v409 = vunpack.c.l.b16 %v146
    %v410 = vunpack.c.l.b16 %v147
    %v411 = vunpack.c.l.b16 %v148
    %v412 = vunpack.c.l.b16 %v149
    %v413 = vunpack.c.l.b16 %v150
    %v414 = vunpack.c.l.b16 %v151
    %v415 = vunpack.c.l.b16 %v152
    %v416 = vunpack.c.l.b16 %v153
    %v417 = vunpack.c.l.b16 %v154
    %v418 = vunpack.c.l.b16 %v155
    %v419 = vunpack.c.l.b16 %v156
    %v420 = vunpack.c.l.b16 %v157
    %v421 = vunpack.c.l.b16 %v158
    %v422 = vunpack.c.l.b16 %v159
    %v423 = vpack.c.b16 %v296, %v295
    %v424 = vpack.c.b16 %v298, %v297
    %v425 = vpack.c.b16 %v300, %v299
    %v426 = vpack.c.b16 %v302, %v301
    %v427 = vpack.c.b16 %v304, %v303
    %v428 = vpack.c.b16 %v306, %v305
    %v429 = vpack.c.b16 %v308, %v307
    %v430 = vpack.c.b16 %v310, %v309
    %v431 = vpack.c.b16 %v312, %v311
    %v432 = vpack.c.b16 %v314, %v313
    %v433 = vpack.c.b16 %v316, %v315
    %v434 = vpack.c.b16 %v318, %v317
    %v435 = vpack.c.b16 %v320, %v319
    %v436 = vpack.c.b16 %v322, %v321
    %v437 = vpack.c.b16 %v324, %v323
    %v438 = vpack.c.b16 %v326, %v325
    %v439 = vpack.c.b16 %v328, %v327
    %v440 = vpack.c.b16 %v330, %v329
    %v441 = vpack.c.b16 %v332, %v331
    %v442 = vpack.c.b16 %v334, %v333
    %v443 = vpack.c.b16 %v336, %v335
    %v444 = vpack.c.b16 %v338, %v337
    %v445 = vpack.c.b16 %v340, %v339
    %v446 = vpack.c.b16 %v342, %v341
    %v447 = vpack.c.b16 %v344, %v343
    %v448 = vpack.c.b16 %v346, %v345
    %v449 = vpack.c.b16 %v348, %v347
    %v450 = vpack.c.b16 %v350, %v349
    %v451 = vpack.c.b16 %v352, %v351
    %v452 = vpack.c.b16 %v354, %v353
    %v453 = vpack.c.b16 %v356, %v355
    %v454 = vpack.c.b16 %v358, %v357
    %v455 = vpack.c.b16 %v360, %v359
    %v456 = vpack.c.b16 %v362, %v361
    %v457 = vpack.c.b16 %v364, %v363
    %v458 = vpack.c.b16 %v366, %v365
    %v459 = vpack.c.b16 %v368, %v367
    %v460 = vpack.c.b16 %v370, %v369
    %v461 = vpack.c.b16 %v372, %v371
    %v462 = vpack.c.b16 %v374, %v373
    %v463 = vpack.c.b16 %v376, %v375
    %v464 = vpack.c.b16 %v378, %v377
    %v465 = vpack.c.b16 %v380, %v379
    %v466 = vpack.c.b16 %v382, %v381
    %v467 = vpack.c.b16 %v384, %v383
    %v468 = vpack.c.b16 %v386, %v385
    %v469 = vpack.c.b16 %v388, %v387
    %v470 = vpack.c.b16 %v390, %v389
    %v471 = vpack.c.b16 %v392, %v391
    %v472 = vpack.c.b16 %v394, %v393
    %v473 = vpack.c.b16 %v396, %v395
    %v474 = vpack.c.b16 %v398, %v397
    %v475 = vpack.c.b16 %v400, %v399
    %v476 = vpack.c.b16 %v402, %v401
    %v477 = vpack.c.b16 %v404, %v403
    %v478 = vpack.c.b16 %v406, %v405
    %v479 = vpack.c.b16 %v408, %v407
    %v480 = vpack.c.b16 %v410, %v409
    %v481 = vpack.c.b16 %v412, %v411
    %v482 = vpack.c.b16 %v414, %v413
    %v483 = vpack.c.b16 %v416, %v415
    %v484 = vpack.c.b16 %v418, %v417
    %v485 = vpack.c.b16 %v420, %v419
    %v486 = vpack.c.b16 %v422, %v421
    %551 = vmatprep.subr.bf16.mxu0 0
    %552 = vmatpush1.bf16.msra.mxu0 %v423
    %553 = vmatprep.subr.bf16.mxu0 0
    %554 = vmatpush1.bf16.msra.mxu0 %v424
    %555 = vmatprep.subr.bf16.mxu0 0
    %556 = vmatpush1.bf16.msra.mxu0 %v425
    %557 = vmatprep.subr.bf16.mxu0 0
    %558 = vmatpush1.bf16.msra.mxu0 %v426
    %559 = vmatprep.subr.bf16.mxu0 0
    %560 = vmatpush1.bf16.msra.mxu0 %v427
    %561 = vmatprep.subr.bf16.mxu0 0
    %562 = vmatpush1.bf16.msra.mxu0 %v428
    %563 = vmatprep.subr.bf16.mxu0 0
    %564 = vmatpush1.bf16.msra.mxu0 %v429
    %565 = vmatprep.subr.bf16.mxu0 0
    %566 = vmatpush1.bf16.msra.mxu0 %v430
    %567 = vmatprep.subr.bf16.mxu0 0
    %568 = vmatpush1.bf16.msra.mxu0 %v431
    %569 = vmatprep.subr.bf16.mxu0 0
    %570 = vmatpush1.bf16.msra.mxu0 %v432
    %571 = vmatprep.subr.bf16.mxu0 0
    %572 = vmatpush1.bf16.msra.mxu0 %v433
    %573 = vmatprep.subr.bf16.mxu0 0
    %574 = vmatpush1.bf16.msra.mxu0 %v434
    %575 = vmatprep.subr.bf16.mxu0 0
    %576 = vmatpush1.bf16.msra.mxu0 %v435
    %577 = vmatprep.subr.bf16.mxu0 0
    %578 = vmatpush1.bf16.msra.mxu0 %v436
    %579 = vmatprep.subr.bf16.mxu0 0
    %580 = vmatpush1.bf16.msra.mxu0 %v437
    %581 = vmatprep.subr.bf16.mxu0 0
    %582 = vmatpush1.bf16.msra.mxu0 %v438
    %583 = vmatprep.mubr.bf16.mxu0 %v25
    %584 = vmatmul.mubr.bf16.gmra.mrb[0].mxu0 %v24
    %v585 = vpop.f32.mrb[0].mxu0
    %v586 = vadd.f32 %v165, %v585
    %v587 = vpop.f32.mrb[0].mxu0
    %v588 = vpop.f32.mrb[0].mxu0
    %v589 = vpop.f32.mrb[0].mxu0
    %590 = vdwg.mxu0
    %591 = vmatprep.subr.bf16.mxu0 0
    %592 = vmatpush1.bf16.msra.mxu0 %v439
    %593 = vmatprep.subr.bf16.mxu0 0
    %594 = vmatpush1.bf16.msra.mxu0 %v440
    %595 = vmatprep.subr.bf16.mxu0 0
    %596 = vmatpush1.bf16.msra.mxu0 %v441
    %597 = vmatprep.subr.bf16.mxu0 0
    %598 = vmatpush1.bf16.msra.mxu0 %v442
    %599 = vmatprep.subr.bf16.mxu0 0
    %600 = vmatpush1.bf16.msra.mxu0 %v443
    %601 = vmatprep.subr.bf16.mxu0 0
    %602 = vmatpush1.bf16.msra.mxu0 %v444
    %603 = vmatprep.subr.bf16.mxu0 0
    %604 = vmatpush1.bf16.msra.mxu0 %v445
    %605 = vmatprep.subr.bf16.mxu0 0
    %606 = vmatpush1.bf16.msra.mxu0 %v446
    %607 = vmatprep.subr.bf16.mxu0 0
    %608 = vmatpush1.bf16.msra.mxu0 %v447
    %609 = vmatprep.subr.bf16.mxu0 0
    %610 = vmatpush1.bf16.msra.mxu0 %v448
    %611 = vmatprep.subr.bf16.mxu0 0
    %612 = vmatpush1.bf16.msra.mxu0 %v449
    %613 = vmatprep.subr.bf16.mxu0 0
    %614 = vmatpush1.bf16.msra.mxu0 %v450
    %615 = vmatprep.subr.bf16.mxu0 0
    %616 = vmatpush1.bf16.msra.mxu0 %v451
    %617 = vmatprep.subr.bf16.mxu0 0
    %618 = vmatpush1.bf16.msra.mxu0 %v452
    %619 = vmatprep.subr.bf16.mxu0 0
    %620 = vmatpush1.bf16.msra.mxu0 %v453
    %621 = vmatprep.subr.bf16.mxu0 0
    %622 = vmatpush1.bf16.msra.mxu0 %v454
    %623 = vmatprep.mubr.bf16.mxu0 %v27
    %624 = vmatmul.mubr.bf16.gmra.mrb[0].mxu0 %v26
    %v625 = vpop.f32.mrb[0].mxu0
    %v626 = vadd.f32 %v586, %v625
    %v627 = vpop.f32.mrb[0].mxu0
    %v628 = vpop.f32.mrb[0].mxu0
    %v629 = vpop.f32.mrb[0].mxu0
    %630 = vdwg.mxu0
    %631 = vmatprep.subr.bf16.mxu0 0
    %632 = vmatpush1.bf16.msra.mxu0 %v455
    %633 = vmatprep.subr.bf16.mxu0 0
    %634 = vmatpush1.bf16.msra.mxu0 %v456
    %635 = vmatprep.subr.bf16.mxu0 0
    %636 = vmatpush1.bf16.msra.mxu0 %v457
    %637 = vmatprep.subr.bf16.mxu0 0
    %638 = vmatpush1.bf16.msra.mxu0 %v458
    %639 = vmatprep.subr.bf16.mxu0 0
    %640 = vmatpush1.bf16.msra.mxu0 %v459
    %641 = vmatprep.subr.bf16.mxu0 0
    %642 = vmatpush1.bf16.msra.mxu0 %v460
    %643 = vmatprep.subr.bf16.mxu0 0
    %644 = vmatpush1.bf16.msra.mxu0 %v461
    %645 = vmatprep.subr.bf16.mxu0 0
    %646 = vmatpush1.bf16.msra.mxu0 %v462
    %647 = vmatprep.subr.bf16.mxu0 0
    %648 = vmatpush1.bf16.msra.mxu0 %v463
    %649 = vmatprep.subr.bf16.mxu0 0
    %650 = vmatpush1.bf16.msra.mxu0 %v464
    %651 = vmatprep.subr.bf16.mxu0 0
    %652 = vmatpush1.bf16.msra.mxu0 %v465
    %653 = vmatprep.subr.bf16.mxu0 0
    %654 = vmatpush1.bf16.msra.mxu0 %v466
    %655 = vmatprep.subr.bf16.mxu0 0
    %656 = vmatpush1.bf16.msra.mxu0 %v467
    %657 = vmatprep.subr.bf16.mxu0 0
    %658 = vmatpush1.bf16.msra.mxu0 %v468
    %659 = vmatprep.subr.bf16.mxu0 0
    %660 = vmatpush1.bf16.msra.mxu0 %v469
    %661 = vmatprep.subr.bf16.mxu0 0
    %662 = vmatpush1.bf16.msra.mxu0 %v470
    %663 = vmatprep.mubr.bf16.mxu0 %v29
    %664 = vmatmul.mubr.bf16.gmra.mrb[0].mxu0 %v28
    %v665 = vpop.f32.mrb[0].mxu0
    %v666 = vadd.f32 %v626, %v665
    %v667 = vpop.f32.mrb[0].mxu0
    %v668 = vpop.f32.mrb[0].mxu0
    %v669 = vpop.f32.mrb[0].mxu0
    %670 = vdwg.mxu0
    %671 = vmatprep.subr.bf16.mxu0 0
    %672 = vmatpush1.bf16.msra.mxu0 %v471
    %673 = vmatprep.subr.bf16.mxu0 0
    %674 = vmatpush1.bf16.msra.mxu0 %v472
    %675 = vmatprep.subr.bf16.mxu0 0
    %676 = vmatpush1.bf16.msra.mxu0 %v473
    %677 = vmatprep.subr.bf16.mxu0 0
    %678 = vmatpush1.bf16.msra.mxu0 %v474
    %679 = vmatprep.subr.bf16.mxu0 0
    %680 = vmatpush1.bf16.msra.mxu0 %v475
    %681 = vmatprep.subr.bf16.mxu0 0
    %682 = vmatpush1.bf16.msra.mxu0 %v476
    %683 = vmatprep.subr.bf16.mxu0 0
    %684 = vmatpush1.bf16.msra.mxu0 %v477
    %685 = vmatprep.subr.bf16.mxu0 0
    %686 = vmatpush1.bf16.msra.mxu0 %v478
    %687 = vmatprep.subr.bf16.mxu0 0
    %688 = vmatpush1.bf16.msra.mxu0 %v479
    %689 = vmatprep.subr.bf16.mxu0 0
    %690 = vmatpush1.bf16.msra.mxu0 %v480
    %691 = vmatprep.subr.bf16.mxu0 0
    %692 = vmatpush1.bf16.msra.mxu0 %v481
    %693 = vmatprep.subr.bf16.mxu0 0
    %694 = vmatpush1.bf16.msra.mxu0 %v482
    %695 = vmatprep.subr.bf16.mxu0 0
    %696 = vmatpush1.bf16.msra.mxu0 %v483
    %697 = vmatprep.subr.bf16.mxu0 0
    %698 = vmatpush1.bf16.msra.mxu0 %v484
    %699 = vmatprep.subr.bf16.mxu0 0
    %700 = vmatpush1.bf16.msra.mxu0 %v485
    %701 = vmatprep.subr.bf16.mxu0 0
    %702 = vmatpush1.bf16.msra.mxu0 %v486
    %703 = vmatprep.mubr.bf16.mxu0 %v31
    %704 = vmatmul.mubr.bf16.gmra.mrb[0].mxu0 %v30
    %v705 = vpop.f32.mrb[0].mxu0
    %v706 = vadd.f32 %v666, %v705
    %v707 = vpop.f32.mrb[0].mxu0
    %v708 = vpop.f32.mrb[0].mxu0
    %v709 = vpop.f32.mrb[0].mxu0
    %710 = vdwg.mxu0
    %711 = vst [vmem:[#allocation2] sm:$0xff] %v706
    // Predicated region
    $region14: #{cpc_forward.3} parent=1 // pred_check
      _
    $region15: #{cpc_forward.3} parent=1 // pred_check_branch
      %713 = sbr.rel (0) target = $region17
    $region16: #{cpc_forward.3} parent=1 // pred_region
      %s715 = ssub.s32 128, 128
      %716 = vsyncadd [#allocation3], %s715
      %s718 = sshll.u32 [#allocation2], 4
      %s719 = int_to_ptr.vmem [resolvable:$true] %s718
      %721 = dma.vmem_to_hbm [thread:$0]  %s719, 128, %s3, [#allocation3]
    $region17: #{cpc_forward.3} parent=1 // pred_fallthru
      _
    // Predicated region
    $region18: #{cpc_forward.3} parent=1 // pred_check
      _
    $region19: #{cpc_forward.3} parent=1 // pred_check_branch
      %723 = sbr.rel (0) target = $region21
    $region20: #{cpc_forward.3} parent=1 // pred_region
      %724 = dma.done [#allocation3], 128
    $region21: #{cpc_forward.3} parent=1 // pred_fallthru
      _
    %725 = vsyncpa [#allocation3], 1

// kernel: cpc_forward.5
$region0: #{cpc_forward.5}
  #allocation0 [shape = 'u32[]', space=smem, size = 0x4, offset = 0x4, fixed_abs, tag = 'smem constant byte address 0x4 - core index']
  #allocation1 [shape = 'u32[144,128]{1,0:T(1,128)}', space=vmem, size = 0x12000, scoped, tag = 'internal scratch']
  %s0 = inlined_call_operand.vmem [shape: f32[2,3072], index: 0, kind: input, shape index: {}]
  %s1 = inlined_call_operand.vmem [shape: f32[256,768], index: 1, kind: input, shape index: {}]
  %s2 = inlined_call_operand.vmem [shape: f32[1,256], index: 2, kind: input, shape index: {}]
  %s3 = inlined_call_operand.vmem [shape: f32[256,128], index: 3, kind: input, shape index: {}]
  %s4 = inlined_call_operand.vmem [shape: f32[1,128], index: 4, kind: input, shape index: {}]
  %s5 = inlined_call_operand.vmem [shape: f32[2,128], index: 5, kind: output, shape index: {}]
  %s6 = sld [smem:[#allocation0]]
  $region30: #{cpc_forward.5} parent=0
    _
  %s8 = ssub.s32 1, %s6
  %s9 = scalar_select 0, %s8, %s6
  // Predicated region
  $region2: #{cpc_forward.5} parent=0 // pred_check
    _
  $region3: #{cpc_forward.5} parent=0 // pred_check_branch
    %11 = sbr.rel (0) target = $region5
  $region4: #{cpc_forward.5} parent=0 // pred_region
    _
  $region5: #{cpc_forward.5} parent=0 // pred_fallthru
    _
  // Predicated region
  $region6: #{cpc_forward.5} parent=0 // pred_check
    _
  $region7: #{cpc_forward.5} parent=0 // pred_check_branch
    %13 = sbr.rel (0) target = $region9
  $region8: #{cpc_forward.5} parent=0 // pred_region
    _
  $region9: #{cpc_forward.5} parent=0 // pred_fallthru
    _
  // Predicated region
  $region10: #{cpc_forward.5} parent=0 // pred_check
    _
  $region11: #{cpc_forward.5} parent=0 // pred_check_branch
    %15 = sbr.rel (0) target = $region13
  $region12: #{cpc_forward.5} parent=0 // pred_region
    _
  $region13: #{cpc_forward.5} parent=0 // pred_fallthru
    _
  // Predicated region
  $region14: #{cpc_forward.5} parent=0 // pred_check
    _
  $region15: #{cpc_forward.5} parent=0 // pred_check_branch
    %17 = sbr.rel (0) target = $region17
  $region16: #{cpc_forward.5} parent=0 // pred_region
    _
  $region17: #{cpc_forward.5} parent=0 // pred_fallthru
    _
  // Predicated region
  $region18: #{cpc_forward.5} parent=0 // pred_check
    _
  $region19: #{cpc_forward.5} parent=0 // pred_check_branch
    %19 = sbr.rel (0) target = $region21
  $region20: #{cpc_forward.5} parent=0 // pred_region
    _
  $region21: #{cpc_forward.5} parent=0 // pred_fallthru
    _
  %v20 = vld [vmem:[%s1] sm:$0xff]
  %v21 = vld [vmem:[%s1 + $0x8] sm:$0xff]
  %v22 = vld [vmem:[%s1 + $0x10] sm:$0xff]
  %v23 = vld [vmem:[%s1 + $0x18] sm:$0xff]
  %v24 = vld [vmem:[%s1 + $0x20] sm:$0xff]
  %v25 = vld [vmem:[%s1 + $0x28] sm:$0xff]
  %v26 = vld [vmem:[%s1 + $0x30] sm:$0xff]
  %v27 = vld [vmem:[%s1 + $0x38] sm:$0xff]
  %v28 = vld [vmem:[%s1 + $0x40] sm:$0xff]
  %v29 = vld [vmem:[%s1 + $0x48] sm:$0xff]
  %v30 = vld [vmem:[%s1 + $0x50] sm:$0xff]
  %v31 = vld [vmem:[%s1 + $0x58] sm:$0xff]
  %v32 = vld [vmem:[%s1 + $0x60] sm:$0xff]
  %v33 = vld [vmem:[%s1 + $0x68] sm:$0xff]
  %v34 = vld [vmem:[%s1 + $0x70] sm:$0xff]
  %v35 = vld [vmem:[%s1 + $0x78] sm:$0xff]
  %v36 = vld [vmem:[%s1 + $0x80] sm:$0xff]
  %v37 = vld [vmem:[%s1 + $0x88] sm:$0xff]
  %v38 = vld [vmem:[%s1 + $0x90] sm:$0xff]
  %v39 = vld [vmem:[%s1 + $0x98] sm:$0xff]
  %v40 = vld [vmem:[%s1 + $0xa0] sm:$0xff]
  %v41 = vld [vmem:[%s1 + $0xa8] sm:$0xff]
  %v42 = vld [vmem:[%s1 + $0xb0] sm:$0xff]
  %v43 = vld [vmem:[%s1 + $0xb8] sm:$0xff]
  %v44 = vld [vmem:[%s1 + $0xc0] sm:$0xff]
  %v45 = vld [vmem:[%s1 + $0xc8] sm:$0xff]
  %v46 = vld [vmem:[%s1 + $0xd0] sm:$0xff]
  %v47 = vld [vmem:[%s1 + $0xd8] sm:$0xff]
  %v48 = vld [vmem:[%s1 + $0xe0] sm:$0xff]
  %v49 = vld [vmem:[%s1 + $0xe8] sm:$0xff]
  %v50 = vld [vmem:[%s1 + $0xf0] sm:$0xff]
  %v51 = vld [vmem:[%s1 + $0xf8] sm:$0xff]
  %v52 = vld [vmem:[%s1 + $0x100] sm:$0xff]
  %v53 = vld [vmem:[%s1 + $0x108] sm:$0xff]
  %v54 = vld [vmem:[%s1 + $0x110] sm:$0xff]
  %v55 = vld [vmem:[%s1 + $0x118] sm:$0xff]
  %v56 = vld [vmem:[%s1 + $0x120] sm:$0xff]
  %v57 = vld [vmem:[%s1 + $0x128] sm:$0xff]
  %v58 = vld [vmem:[%s1 + $0x130] sm:$0xff]
  %v59 = vld [vmem:[%s1 + $0x138] sm:$0xff]
  %v60 = vld [vmem:[%s1 + $0x140] sm:$0xff]
  %v61 = vld [vmem:[%s1 + $0x148] sm:$0xff]
  %v62 = vld [vmem:[%s1 + $0x150] sm:$0xff]
  %v63 = vld [vmem:[%s1 + $0x158] sm:$0xff]
  %v64 = vld [vmem:[%s1 + $0x160] sm:$0xff]
  %v65 = vld [vmem:[%s1 + $0x168] sm:$0xff]
  %v66 = vld [vmem:[%s1 + $0x170] sm:$0xff]
  %v67 = vld [vmem:[%s1 + $0x178] sm:$0xff]
  %v68 = vld [vmem:[%s1 + $0x180] sm:$0xff]
  %v69 = vld [vmem:[%s1 + $0x188] sm:$0xff]
  %v70 = vld [vmem:[%s1 + $0x190] sm:$0xff]
  %v71 = vld [vmem:[%s1 + $0x198] sm:$0xff]
  %v72 = vld [vmem:[%s1 + $0x1a0] sm:$0xff]
  %v73 = vld [vmem:[%s1 + $0x1a8] sm:$0xff]
  %v74 = vld [vmem:[%s1 + $0x1b0] sm:$0xff]
  %v75 = vld [vmem:[%s1 + $0x1b8] sm:$0xff]
  %v76 = vld [vmem:[%s1 + $0x1c0] sm:$0xff]
  %v77 = vld [vmem:[%s1 + $0x1c8] sm:$0xff]
  %v78 = vld [vmem:[%s1 + $0x1d0] sm:$0xff]
  %v79 = vld [vmem:[%s1 + $0x1d8] sm:$0xff]
  %v80 = vld [vmem:[%s1 + $0x1e0] sm:$0xff]
  %v81 = vld [vmem:[%s1 + $0x1e8] sm:$0xff]
  %v82 = vld [vmem:[%s1 + $0x1f0] sm:$0xff]
  %v83 = vld [vmem:[%s1 + $0x1f8] sm:$0xff]
  %v84 = vld [vmem:[%s1 + $0x200] sm:$0xff]
  %v85 = vld [vmem:[%s1 + $0x208] sm:$0xff]
  %v86 = vld [vmem:[%s1 + $0x210] sm:$0xff]
  %v87 = vld [vmem:[%s1 + $0x218] sm:$0xff]
  %v88 = vld [vmem:[%s1 + $0x220] sm:$0xff]
  %v89 = vld [vmem:[%s1 + $0x228] sm:$0xff]
  %v90 = vld [vmem:[%s1 + $0x230] sm:$0xff]
  %v91 = vld [vmem:[%s1 + $0x238] sm:$0xff]
  %v92 = vld [vmem:[%s1 + $0x240] sm:$0xff]
  %v93 = vld [vmem:[%s1 + $0x248] sm:$0xff]
  %v94 = vld [vmem:[%s1 + $0x250] sm:$0xff]
  %v95 = vld [vmem:[%s1 + $0x258] sm:$0xff]
  %v96 = vld [vmem:[%s1 + $0x260] sm:$0xff]
  %v97 = vld [vmem:[%s1 + $0x268] sm:$0xff]
  %v98 = vld [vmem:[%s1 + $0x270] sm:$0xff]
  %v99 = vld [vmem:[%s1 + $0x278] sm:$0xff]
  %v100 = vld [vmem:[%s1 + $0x280] sm:$0xff]
  %v101 = vld [vmem:[%s1 + $0x288] sm:$0xff]
  %v102 = vld [vmem:[%s1 + $0x290] sm:$0xff]
  %v103 = vld [vmem:[%s1 + $0x298] sm:$0xff]
  %v104 = vld [vmem:[%s1 + $0x2a0] sm:$0xff]
  %v105 = vld [vmem:[%s1 + $0x2a8] sm:$0xff]
  %v106 = vld [vmem:[%s1 + $0x2b0] sm:$0xff]
  %v107 = vld [vmem:[%s1 + $0x2b8] sm:$0xff]
  %v108 = vld [vmem:[%s1 + $0x2c0] sm:$0xff]
  %v109 = vld [vmem:[%s1 + $0x2c8] sm:$0xff]
  %v110 = vld [vmem:[%s1 + $0x2d0] sm:$0xff]
  %v111 = vld [vmem:[%s1 + $0x2d8] sm:$0xff]
  %v112 = vld [vmem:[%s1 + $0x2e0] sm:$0xff]
  %v113 = vld [vmem:[%s1 + $0x2e8] sm:$0xff]
  %v114 = vld [vmem:[%s1 + $0x2f0] sm:$0xff]
  %v115 = vld [vmem:[%s1 + $0x2f8] sm:$0xff]
  %v116 = vld [vmem:[%s1 + $0x300] sm:$0xff]
  %v117 = vld [vmem:[%s1 + $0x308] sm:$0xff]
  %v118 = vld [vmem:[%s1 + $0x310] sm:$0xff]
  %v119 = vld [vmem:[%s1 + $0x318] sm:$0xff]
  %v120 = vld [vmem:[%s1 + $0x320] sm:$0xff]
  %v121 = vld [vmem:[%s1 + $0x328] sm:$0xff]
  %v122 = vld [vmem:[%s1 + $0x330] sm:$0xff]
  %v123 = vld [vmem:[%s1 + $0x338] sm:$0xff]
  %v124 = vld [vmem:[%s1 + $0x340] sm:$0xff]
  %v125 = vld [vmem:[%s1 + $0x348] sm:$0xff]
  %v126 = vld [vmem:[%s1 + $0x350] sm:$0xff]
  %v127 = vld [vmem:[%s1 + $0x358] sm:$0xff]
  %v128 = vld [vmem:[%s1 + $0x360] sm:$0xff]
  %v129 = vld [vmem:[%s1 + $0x368] sm:$0xff]
  %v130 = vld [vmem:[%s1 + $0x370] sm:$0xff]
  %v131 = vld [vmem:[%s1 + $0x378] sm:$0xff]
  %v132 = vld [vmem:[%s1 + $0x380] sm:$0xff]
  %v133 = vld [vmem:[%s1 + $0x388] sm:$0xff]
  %v134 = vld [vmem:[%s1 + $0x390] sm:$0xff]
  %v135 = vld [vmem:[%s1 + $0x398] sm:$0xff]
  %v136 = vld [vmem:[%s1 + $0x3a0] sm:$0xff]
  %v137 = vld [vmem:[%s1 + $0x3a8] sm:$0xff]
  %v138 = vld [vmem:[%s1 + $0x3b0] sm:$0xff]
  %v139 = vld [vmem:[%s1 + $0x3b8] sm:$0xff]
  %v140 = vld [vmem:[%s1 + $0x3c0] sm:$0xff]
  %v141 = vld [vmem:[%s1 + $0x3c8] sm:$0xff]
  %v142 = vld [vmem:[%s1 + $0x3d0] sm:$0xff]
  %v143 = vld [vmem:[%s1 + $0x3d8] sm:$0xff]
  %v144 = vld [vmem:[%s1 + $0x3e0] sm:$0xff]
  %v145 = vld [vmem:[%s1 + $0x3e8] sm:$0xff]
  %v146 = vld [vmem:[%s1 + $0x3f0] sm:$0xff]
  %v147 = vld [vmem:[%s1 + $0x3f8] sm:$0xff]
  %v148 = vld [vmem:[%s1 + $0x400] sm:$0xff]
  %v149 = vld [vmem:[%s1 + $0x408] sm:$0xff]
  %v150 = vld [vmem:[%s1 + $0x410] sm:$0xff]
  %v151 = vld [vmem:[%s1 + $0x418] sm:$0xff]
  %v152 = vld [vmem:[%s1 + $0x420] sm:$0xff]
  %v153 = vld [vmem:[%s1 + $0x428] sm:$0xff]
  %v154 = vld [vmem:[%s1 + $0x430] sm:$0xff]
  %v155 = vld [vmem:[%s1 + $0x438] sm:$0xff]
  %v156 = vld [vmem:[%s1 + $0x440] sm:$0xff]
  %v157 = vld [vmem:[%s1 + $0x448] sm:$0xff]
  %v158 = vld [vmem:[%s1 + $0x450] sm:$0xff]
  %v159 = vld [vmem:[%s1 + $0x458] sm:$0xff]
  %v160 = vld [vmem:[%s1 + $0x460] sm:$0xff]
  %v161 = vld [vmem:[%s1 + $0x468] sm:$0xff]
  %v162 = vld [vmem:[%s1 + $0x470] sm:$0xff]
  %v163 = vld [vmem:[%s1 + $0x478] sm:$0xff]
  %v164 = vld [vmem:[%s1 + $0x480] sm:$0xff]
  %v165 = vld [vmem:[%s1 + $0x488] sm:$0xff]
  %v166 = vld [vmem:[%s1 + $0x490] sm:$0xff]
  %v167 = vld [vmem:[%s1 + $0x498] sm:$0xff]
  %v168 = vld [vmem:[%s1 + $0x4a0] sm:$0xff]
  %v169 = vld [vmem:[%s1 + $0x4a8] sm:$0xff]
  %v170 = vld [vmem:[%s1 + $0x4b0] sm:$0xff]
  %v171 = vld [vmem:[%s1 + $0x4b8] sm:$0xff]
  %v172 = vld [vmem:[%s1 + $0x4c0] sm:$0xff]
  %v173 = vld [vmem:[%s1 + $0x4c8] sm:$0xff]
  %v174 = vld [vmem:[%s1 + $0x4d0] sm:$0xff]
  %v175 = vld [vmem:[%s1 + $0x4d8] sm:$0xff]
  %v176 = vld [vmem:[%s1 + $0x4e0] sm:$0xff]
  %v177 = vld [vmem:[%s1 + $0x4e8] sm:$0xff]
  %v178 = vld [vmem:[%s1 + $0x4f0] sm:$0xff]
  %v179 = vld [vmem:[%s1 + $0x4f8] sm:$0xff]
  %v180 = vld [vmem:[%s1 + $0x500] sm:$0xff]
  %v181 = vld [vmem:[%s1 + $0x508] sm:$0xff]
  %v182 = vld [vmem:[%s1 + $0x510] sm:$0xff]
  %v183 = vld [vmem:[%s1 + $0x518] sm:$0xff]
  %v184 = vld [vmem:[%s1 + $0x520] sm:$0xff]
  %v185 = vld [vmem:[%s1 + $0x528] sm:$0xff]
  %v186 = vld [vmem:[%s1 + $0x530] sm:$0xff]
  %v187 = vld [vmem:[%s1 + $0x538] sm:$0xff]
  %v188 = vld [vmem:[%s1 + $0x540] sm:$0xff]
  %v189 = vld [vmem:[%s1 + $0x548] sm:$0xff]
  %v190 = vld [vmem:[%s1 + $0x550] sm:$0xff]
  %v191 = vld [vmem:[%s1 + $0x558] sm:$0xff]
  %v192 = vld [vmem:[%s1 + $0x560] sm:$0xff]
  %v193 = vld [vmem:[%s1 + $0x568] sm:$0xff]
  %v194 = vld [vmem:[%s1 + $0x570] sm:$0xff]
  %v195 = vld [vmem:[%s1 + $0x578] sm:$0xff]
  %v196 = vld [vmem:[%s1 + $0x580] sm:$0xff]
  %v197 = vld [vmem:[%s1 + $0x588] sm:$0xff]
  %v198 = vld [vmem:[%s1 + $0x590] sm:$0xff]
  %v199 = vld [vmem:[%s1 + $0x598] sm:$0xff]
  %v200 = vld [vmem:[%s1 + $0x5a0] sm:$0xff]
  %v201 = vld [vmem:[%s1 + $0x5a8] sm:$0xff]
  %v202 = vld [vmem:[%s1 + $0x5b0] sm:$0xff]
  %v203 = vld [vmem:[%s1 + $0x5b8] sm:$0xff]
  %v204 = vld [vmem:[%s1 + $0x5c0] sm:$0xff]
  %v205 = vld [vmem:[%s1 + $0x5c8] sm:$0xff]
  %v206 = vld [vmem:[%s1 + $0x5d0] sm:$0xff]
  %v207 = vld [vmem:[%s1 + $0x5d8] sm:$0xff]
  %v208 = vld [vmem:[%s1 + $0x5e0] sm:$0xff]
  %v209 = vld [vmem:[%s1 + $0x5e8] sm:$0xff]
  %v210 = vld [vmem:[%s1 + $0x5f0] sm:$0xff]
  %v211 = vld [vmem:[%s1 + $0x5f8] sm:$0xff]
  %v212 = vld [vmem:[%s2] sm:$0x3]
  %v213 = vld [vmem:[%s0] sm:$0xff]
  %v214 = vld [vmem:[%s0 + $0x8] sm:$0xf]
  %215 = vmatprep.subr.mxu0 %v21
  %216 = vmatpush1.msra.mxu0 %v20
  %217 = vmatprep.subr.mxu0 %v27
  %218 = vmatpush1.msra.mxu0 %v26
  %219 = vmatprep.subr.mxu0 %v33
  %220 = vmatpush1.msra.mxu0 %v32
  %221 = vmatprep.subr.mxu0 %v39
  %222 = vmatpush1.msra.mxu0 %v38
  %223 = vmatprep.subr.mxu0 %v45
  %224 = vmatpush1.msra.mxu0 %v44
  %225 = vmatprep.subr.mxu0 %v51
  %226 = vmatpush1.msra.mxu0 %v50
  %227 = vmatprep.subr.mxu0 %v57
  %228 = vmatpush1.msra.mxu0 %v56
  %229 = vmatprep.subr.mxu0 %v63
  %230 = vmatpush1.msra.mxu0 %v62
  %231 = vmatprep.subr.mxu0 %v69
  %232 = vmatpush1.msra.mxu0 %v68
  %233 = vmatprep.subr.mxu0 %v75
  %234 = vmatpush1.msra.mxu0 %v74
  %235 = vmatprep.subr.mxu0 %v81
  %236 = vmatpush1.msra.mxu0 %v80
  %237 = vmatprep.subr.mxu0 %v87
  %238 = vmatpush1.msra.mxu0 %v86
  %239 = vmatprep.subr.mxu0 %v93
  %240 = vmatpush1.msra.mxu0 %v92
  %241 = vmatprep.subr.mxu0 %v99
  %242 = vmatpush1.msra.mxu0 %v98
  %243 = vmatprep.subr.mxu0 %v105
  %244 = vmatpush1.msra.mxu0 %v104
  %245 = vmatprep.subr.mxu0 %v111
  %246 = vmatpush1.msra.mxu0 %v110
  %247 = vmatprep.subr.mxu0 %v117
  %248 = vmatpush1.msra.mxu0 %v116
  %249 = vmatprep.subr.mxu0 %v123
  %250 = vmatpush1.msra.mxu0 %v122
  %251 = vmatprep.subr.mxu0 %v129
  %252 = vmatpush1.msra.mxu0 %v128
  %253 = vmatprep.subr.mxu0 %v135
  %254 = vmatpush1.msra.mxu0 %v134
  %255 = vmatprep.subr.mxu0 %v141
  %256 = vmatpush1.msra.mxu0 %v140
  %257 = vmatprep.subr.mxu0 %v147
  %258 = vmatpush1.msra.mxu0 %v146
  %259 = vmatprep.subr.mxu0 %v153
  %260 = vmatpush1.msra.mxu0 %v152
  %261 = vmatprep.subr.mxu0 %v159
  %262 = vmatpush1.msra.mxu0 %v158
  %263 = vmatprep.subr.mxu0 %v165
  %264 = vmatpush1.msra.mxu0 %v164
  %265 = vmatprep.subr.mxu0 %v171
  %266 = vmatpush1.msra.mxu0 %v170
  %267 = vmatprep.subr.mxu0 %v177
  %268 = vmatpush1.msra.mxu0 %v176
  %269 = vmatprep.subr.mxu0 %v183
  %270 = vmatpush1.msra.mxu0 %v182
  %271 = vmatprep.subr.mxu0 %v189
  %272 = vmatpush1.msra.mxu0 %v188
  %273 = vmatprep.subr.mxu0 %v195
  %274 = vmatpush1.msra.mxu0 %v194
  %275 = vmatprep.subr.mxu0 %v201
  %276 = vmatpush1.msra.mxu0 %v200
  %277 = vmatprep.subr.mxu0 %v207
  %278 = vmatpush1.msra.mxu0 %v206
  %279 = vmatprep.mubr.f32.mxu0 0.0
  %280 = vmatmul.mubr.f32.gmra.mrb[0].mxu0 0.0
  %v281 = vpop.f32.mrb[0].mxu0
  %v282 = vadd.f32 0.0, %v281
  %v283 = vpop.f32.mrb[0].mxu0
  %v284 = vadd.f32 0.0, %v283
  %285 = vdwg.mxu0
  %286 = vmatprep.subr.mxu0 %v23
  %287 = vmatpush1.msra.mxu0 %v22
  %288 = vmatprep.subr.mxu0 %v29
  %289 = vmatpush1.msra.mxu0 %v28
  %290 = vmatprep.subr.mxu0 %v35
  %291 = vmatpush1.msra.mxu0 %v34
  %292 = vmatprep.subr.mxu0 %v41
  %293 = vmatpush1.msra.mxu0 %v40
  %294 = vmatprep.subr.mxu0 %v47
  %295 = vmatpush1.msra.mxu0 %v46
  %296 = vmatprep.subr.mxu0 %v53
  %297 = vmatpush1.msra.mxu0 %v52
  %298 = vmatprep.subr.mxu0 %v59
  %299 = vmatpush1.msra.mxu0 %v58
  %300 = vmatprep.subr.mxu0 %v65
  %301 = vmatpush1.msra.mxu0 %v64
  %302 = vmatprep.subr.mxu0 %v71
  %303 = vmatpush1.msra.mxu0 %v70
  %304 = vmatprep.subr.mxu0 %v77
  %305 = vmatpush1.msra.mxu0 %v76
  %306 = vmatprep.subr.mxu0 %v83
  %307 = vmatpush1.msra.mxu0 %v82
  %308 = vmatprep.subr.mxu0 %v89
  %309 = vmatpush1.msra.mxu0 %v88
  %310 = vmatprep.subr.mxu0 %v95
  %311 = vmatpush1.msra.mxu0 %v94
  %312 = vmatprep.subr.mxu0 %v101
  %313 = vmatpush1.msra.mxu0 %v100
  %314 = vmatprep.subr.mxu0 %v107
  %315 = vmatpush1.msra.mxu0 %v106
  %316 = vmatprep.subr.mxu0 %v113
  %317 = vmatpush1.msra.mxu0 %v112
  %318 = vmatprep.subr.mxu0 %v119
  %319 = vmatpush1.msra.mxu0 %v118
  %320 = vmatprep.subr.mxu0 %v125
  %321 = vmatpush1.msra.mxu0 %v124
  %322 = vmatprep.subr.mxu0 %v131
  %323 = vmatpush1.msra.mxu0 %v130
  %324 = vmatprep.subr.mxu0 %v137
  %325 = vmatpush1.msra.mxu0 %v136
  %326 = vmatprep.subr.mxu0 %v143
  %327 = vmatpush1.msra.mxu0 %v142
  %328 = vmatprep.subr.mxu0 %v149
  %329 = vmatpush1.msra.mxu0 %v148
  %330 = vmatprep.subr.mxu0 %v155
  %331 = vmatpush1.msra.mxu0 %v154
  %332 = vmatprep.subr.mxu0 %v161
  %333 = vmatpush1.msra.mxu0 %v160
  %334 = vmatprep.subr.mxu0 %v167
  %335 = vmatpush1.msra.mxu0 %v166
  %336 = vmatprep.subr.mxu0 %v173
  %337 = vmatpush1.msra.mxu0 %v172
  %338 = vmatprep.subr.mxu0 %v179
  %339 = vmatpush1.msra.mxu0 %v178
  %340 = vmatprep.subr.mxu0 %v185
  %341 = vmatpush1.msra.mxu0 %v184
  %342 = vmatprep.subr.mxu0 %v191
  %343 = vmatpush1.msra.mxu0 %v190
  %344 = vmatprep.subr.mxu0 %v197
  %345 = vmatpush1.msra.mxu0 %v196
  %346 = vmatprep.subr.mxu0 %v203
  %347 = vmatpush1.msra.mxu0 %v202
  %348 = vmatprep.subr.mxu0 %v209
  %349 = vmatpush1.msra.mxu0 %v208
  %350 = vmatprep.mubr.f32.mxu0 0.0
  %351 = vmatmul.mubr.f32.gmra.mrb[0].mxu0 0.0
  %v352 = vpop.f32.mrb[0].mxu0
  %v353 = vadd.f32 0.0, %v352
  %v354 = vpop.f32.mrb[0].mxu0
  %v355 = vadd.f32 0.0, %v354
  %356 = vdwg.mxu0
  %357 = vmatprep.subr.mxu0 %v25
  %358 = vmatpush1.msra.mxu0 %v24
  %359 = vmatprep.subr.mxu0 %v31
  %360 = vmatpush1.msra.mxu0 %v30
  %361 = vmatprep.subr.mxu0 %v37
  %362 = vmatpush1.msra.mxu0 %v36
  %363 = vmatprep.subr.mxu0 %v43
  %364 = vmatpush1.msra.mxu0 %v42
  %365 = vmatprep.subr.mxu0 %v49
  %366 = vmatpush1.msra.mxu0 %v48
  %367 = vmatprep.subr.mxu0 %v55
  %368 = vmatpush1.msra.mxu0 %v54
  %369 = vmatprep.subr.mxu0 %v61
  %370 = vmatpush1.msra.mxu0 %v60
  %371 = vmatprep.subr.mxu0 %v67
  %372 = vmatpush1.msra.mxu0 %v66
  %373 = vmatprep.subr.mxu0 %v73
  %374 = vmatpush1.msra.mxu0 %v72
  %375 = vmatprep.subr.mxu0 %v79
  %376 = vmatpush1.msra.mxu0 %v78
  %377 = vmatprep.subr.mxu0 %v85
  %378 = vmatpush1.msra.mxu0 %v84
  %379 = vmatprep.subr.mxu0 %v91
  %380 = vmatpush1.msra.mxu0 %v90
  %381 = vmatprep.subr.mxu0 %v97
  %382 = vmatpush1.msra.mxu0 %v96
  %383 = vmatprep.subr.mxu0 %v103
  %384 = vmatpush1.msra.mxu0 %v102
  %385 = vmatprep.subr.mxu0 %v109
  %386 = vmatpush1.msra.mxu0 %v108
  %387 = vmatprep.subr.mxu0 %v115
  %388 = vmatpush1.msra.mxu0 %v114
  %389 = vmatprep.subr.mxu0 %v121
  %390 = vmatpush1.msra.mxu0 %v120
  %391 = vmatprep.subr.mxu0 %v127
  %392 = vmatpush1.msra.mxu0 %v126
  %393 = vmatprep.subr.mxu0 %v133
  %394 = vmatpush1.msra.mxu0 %v132
  %395 = vmatprep.subr.mxu0 %v139
  %396 = vmatpush1.msra.mxu0 %v138
  %397 = vmatprep.subr.mxu0 %v145
  %398 = vmatpush1.msra.mxu0 %v144
  %399 = vmatprep.subr.mxu0 %v151
  %400 = vmatpush1.msra.mxu0 %v150
  %401 = vmatprep.subr.mxu0 %v157
  %402 = vmatpush1.msra.mxu0 %v156
  %403 = vmatprep.subr.mxu0 %v163
  %404 = vmatpush1.msra.mxu0 %v162
  %405 = vmatprep.subr.mxu0 %v169
  %406 = vmatpush1.msra.mxu0 %v168
  %407 = vmatprep.subr.mxu0 %v175
  %408 = vmatpush1.msra.mxu0 %v174
  %409 = vmatprep.subr.mxu0 %v181
  %410 = vmatpush1.msra.mxu0 %v180
  %411 = vmatprep.subr.mxu0 %v187
  %412 = vmatpush1.msra.mxu0 %v186
  %413 = vmatprep.subr.mxu0 %v193
  %414 = vmatpush1.msra.mxu0 %v192
  %415 = vmatprep.subr.mxu0 %v199
  %416 = vmatpush1.msra.mxu0 %v198
  %417 = vmatprep.subr.mxu0 %v205
  %418 = vmatpush1.msra.mxu0 %v204
  %419 = vmatprep.subr.mxu0 %v211
  %420 = vmatpush1.msra.mxu0 %v210
  %421 = vmatprep.mubr.f32.mxu0 0.0
  %422 = vmatmul.mubr.f32.gmra.mrb[0].mxu0 0.0
  %v423 = vpop.f32.mrb[0].mxu0
  %v424 = vadd.f32 0.0, %v423
  %v425 = vpop.f32.mrb[0].mxu0
  %v426 = vadd.f32 0.0, %v425
  %427 = vdwg.mxu0
  %v430 = vcombine.low %v282, %v284
  %v432 = vunpack.c.l.s4 1983009808
  %v433 = vunpack.c.0.s8 %v432
  %v434 = vlaneseq
  %v435 = vshrl.u32 %v434, 7
  %v436 = vsub.s32 %v433, %v435
  %v437 = vrot.slane %v430, %v436
  %v439 = vadd.f32 %v213, %v437
  %v440 = vxor.u32 %v439, 2147483648
  %v441 = vmul.f32 %v440, 1.442695
  %v442 = vpow.pop %v441
  %v443 = vadd.f32 %v442, 1.0
  %v444 = vrcp.pop %v443
  %v445 = vmul.f32 1.0, %v444
  %v447 = vrot.slane %v213, 4
  %v451 = vcombine.low %v353, %v355
  %v453 = vunpack.c.l.s4 1983009808
  %v454 = vunpack.c.0.s8 %v453
  %v455 = vlaneseq
  %v456 = vshrl.u32 %v455, 7
  %v457 = vsub.s32 %v454, %v456
  %v458 = vrot.slane %v451, %v457
  %v460 = vadd.f32 %v447, %v458
  %v461 = vxor.u32 %v460, 2147483648
  %v462 = vmul.f32 %v461, 1.442695
  %v463 = vpow.pop %v462
  %v464 = vadd.f32 %v463, 1.0
  %v465 = vrcp.pop %v464
  %v466 = vmul.f32 1.0, %v465
  %v468 = vlaneseq
  %v469 = vshrl.u32 %v468, 7
  %v470 = vsub.s32 0, %v469
  %v471 = vrot.slane %v212, %v470
  %v472 = vlaneseq
  %v473 = vshrl.u32 %v472, 7
  %v474 = vsub.s32 1, %v473
  %v475 = vrot.slane %v212, %v474
  %v478 = vadd.f32 %v424, %v471
  %v479 = vadd.f32 %v426, %v475
  %v482 = vcombine.low %v478, %v479
  %v484 = vunpack.c.l.s4 1983009808
  %v485 = vunpack.c.0.s8 %v484
  %v486 = vlaneseq
  %v487 = vshrl.u32 %v486, 7
  %v488 = vsub.s32 %v485, %v487
  %v489 = vrot.slane %v482, %v488
  %v491 = vmul.f32 %v445, %v489
  %v492 = vadd.f32 %v214, %v491
  %v493 = vtanh.pop %v492
  %v494 = vsub.f32 0.0, %v493
  %v495 = vmul.f32 %v466, %v494
  %v496 = vadd.f32 %v493, %v495
  %v497 = vld [vmem:[%s0 + $0xc] sm:$0xff]
  %v498 = vld [vmem:[%s0 + $0x14] sm:$0xf]
  %v501 = vunpack.c.l.s4 1983009808
  %v502 = vunpack.c.0.s8 %v501
  %v503 = vlaneseq
  %v504 = vshrl.u32 %v503, 7
  %v505 = vsub.s32 %v502, %v504
  %v506 = vrot.slane %v496, %v505
  %v507 = vcombine.high %v506, %v506
  %510 = vmatprep.subr.mxu0 %v21
  %511 = vmatpush1.msra.mxu0 %v20
  %512 = vmatprep.subr.mxu0 %v27
  %513 = vmatpush1.msra.mxu0 %v26
  %514 = vmatprep.subr.mxu0 %v33
  %515 = vmatpush1.msra.mxu0 %v32
  %516 = vmatprep.subr.mxu0 %v39
  %517 = vmatpush1.msra.mxu0 %v38
  %518 = vmatprep.subr.mxu0 %v45
  %519 = vmatpush1.msra.mxu0 %v44
  %520 = vmatprep.subr.mxu0 %v51
  %521 = vmatpush1.msra.mxu0 %v50
  %522 = vmatprep.subr.mxu0 %v57
  %523 = vmatpush1.msra.mxu0 %v56
  %524 = vmatprep.subr.mxu0 %v63
  %525 = vmatpush1.msra.mxu0 %v62
  %526 = vmatprep.subr.mxu0 %v69
  %527 = vmatpush1.msra.mxu0 %v68
  %528 = vmatprep.subr.mxu0 %v75
  %529 = vmatpush1.msra.mxu0 %v74
  %530 = vmatprep.subr.mxu0 %v81
  %531 = vmatpush1.msra.mxu0 %v80
  %532 = vmatprep.subr.mxu0 %v87
  %533 = vmatpush1.msra.mxu0 %v86
  %534 = vmatprep.subr.mxu0 %v93
  %535 = vmatpush1.msra.mxu0 %v92
  %536 = vmatprep.subr.mxu0 %v99
  %537 = vmatpush1.msra.mxu0 %v98
  %538 = vmatprep.subr.mxu0 %v105
  %539 = vmatpush1.msra.mxu0 %v104
  %540 = vmatprep.subr.mxu0 %v111
  %541 = vmatpush1.msra.mxu0 %v110
  %542 = vmatprep.subr.mxu0 %v117
  %543 = vmatpush1.msra.mxu0 %v116
  %544 = vmatprep.subr.mxu0 %v123
  %545 = vmatpush1.msra.mxu0 %v122
  %546 = vmatprep.subr.mxu0 %v129
  %547 = vmatpush1.msra.mxu0 %v128
  %548 = vmatprep.subr.mxu0 %v135
  %549 = vmatpush1.msra.mxu0 %v134
  %550 = vmatprep.subr.mxu0 %v141
  %551 = vmatpush1.msra.mxu0 %v140
  %552 = vmatprep.subr.mxu0 %v147
  %553 = vmatpush1.msra.mxu0 %v146
  %554 = vmatprep.subr.mxu0 %v153
  %555 = vmatpush1.msra.mxu0 %v152
  %556 = vmatprep.subr.mxu0 %v159
  %557 = vmatpush1.msra.mxu0 %v158
  %558 = vmatprep.subr.mxu0 %v165
  %559 = vmatpush1.msra.mxu0 %v164
  %560 = vmatprep.subr.mxu0 %v171
  %561 = vmatpush1.msra.mxu0 %v170
  %562 = vmatprep.subr.mxu0 %v177
  %563 = vmatpush1.msra.mxu0 %v176
  %564 = vmatprep.subr.mxu0 %v183
  %565 = vmatpush1.msra.mxu0 %v182
  %566 = vmatprep.subr.mxu0 %v189
  %567 = vmatpush1.msra.mxu0 %v188
  %568 = vmatprep.subr.mxu0 %v195
  %569 = vmatpush1.msra.mxu0 %v194
  %570 = vmatprep.subr.mxu0 %v201
  %571 = vmatpush1.msra.mxu0 %v200
  %572 = vmatprep.subr.mxu0 %v207
  %573 = vmatpush1.msra.mxu0 %v206
  %574 = vmatprep.mubr.f32.mxu0 %v507
  %575 = vmatmul.mubr.f32.gmra.mrb[0].mxu0 %v506
  %v576 = vpop.f32.mrb[0].mxu0
  %v577 = vadd.f32 0.0, %v576
  %v578 = vpop.f32.mrb[0].mxu0
  %v579 = vadd.f32 0.0, %v578
  %580 = vdwg.mxu0
  %581 = vmatprep.subr.mxu0 %v23
  %582 = vmatpush1.msra.mxu0 %v22
  %583 = vmatprep.subr.mxu0 %v29
  %584 = vmatpush1.msra.mxu0 %v28
  %585 = vmatprep.subr.mxu0 %v35
  %586 = vmatpush1.msra.mxu0 %v34
  %587 = vmatprep.subr.mxu0 %v41
  %588 = vmatpush1.msra.mxu0 %v40
  %589 = vmatprep.subr.mxu0 %v47
  %590 = vmatpush1.msra.mxu0 %v46
  %591 = vmatprep.subr.mxu0 %v53
  %592 = vmatpush1.msra.mxu0 %v52
  %593 = vmatprep.subr.mxu0 %v59
  %594 = vmatpush1.msra.mxu0 %v58
  %595 = vmatprep.subr.mxu0 %v65
  %596 = vmatpush1.msra.mxu0 %v64
  %597 = vmatprep.subr.mxu0 %v71
  %598 = vmatpush1.msra.mxu0 %v70
  %599 = vmatprep.subr.mxu0 %v77
  %600 = vmatpush1.msra.mxu0 %v76
  %601 = vmatprep.subr.mxu0 %v83
  %602 = vmatpush1.msra.mxu0 %v82
  %603 = vmatprep.subr.mxu0 %v89
  %604 = vmatpush1.msra.mxu0 %v88
  %605 = vmatprep.subr.mxu0 %v95
  %606 = vmatpush1.msra.mxu0 %v94
  %607 = vmatprep.subr.mxu0 %v101
  %608 = vmatpush1.msra.mxu0 %v100
  %609 = vmatprep.subr.mxu0 %v107
  %610 = vmatpush1.msra.mxu0 %v106
  %611 = vmatprep.subr.mxu0 %v113
  %612 = vmatpush1.msra.mxu0 %v112
  %613 = vmatprep.subr.mxu0 %v119
  %614 = vmatpush1.msra.mxu0 %v118
  %615 = vmatprep.subr.mxu0 %v125
  %616 = vmatpush1.msra.mxu0 %v124
  %617 = vmatprep.subr.mxu0 %v131
  %618 = vmatpush1.msra.mxu0 %v130
  %619 = vmatprep.subr.mxu0 %v137
  %620 = vmatpush1.msra.mxu0 %v136
  %621 = vmatprep.subr.mxu0 %v143
  %622 = vmatpush1.msra.mxu0 %v142
  %623 = vmatprep.subr.mxu0 %v149
  %624 = vmatpush1.msra.mxu0 %v148
  %625 = vmatprep.subr.mxu0 %v155
  %626 = vmatpush1.msra.mxu0 %v154
  %627 = vmatprep.subr.mxu0 %v161
  %628 = vmatpush1.msra.mxu0 %v160
  %629 = vmatprep.subr.mxu0 %v167
  %630 = vmatpush1.msra.mxu0 %v166
  %631 = vmatprep.subr.mxu0 %v173
  %632 = vmatpush1.msra.mxu0 %v172
  %633 = vmatprep.subr.mxu0 %v179
  %634 = vmatpush1.msra.mxu0 %v178
  %635 = vmatprep.subr.mxu0 %v185
  %636 = vmatpush1.msra.mxu0 %v184
  %637 = vmatprep.subr.mxu0 %v191
  %638 = vmatpush1.msra.mxu0 %v190
  %639 = vmatprep.subr.mxu0 %v197
  %640 = vmatpush1.msra.mxu0 %v196
  %641 = vmatprep.subr.mxu0 %v203
  %642 = vmatpush1.msra.mxu0 %v202
  %643 = vmatprep.subr.mxu0 %v209
  %644 = vmatpush1.msra.mxu0 %v208
  %645 = vmatprep.mubr.f32.mxu0 %v507
  %646 = vmatmul.mubr.f32.gmra.mrb[0].mxu0 %v506
  %v647 = vpop.f32.mrb[0].mxu0
  %v648 = vadd.f32 0.0, %v647
  %v649 = vpop.f32.mrb[0].mxu0
  %v650 = vadd.f32 0.0, %v649
  %651 = vdwg.mxu0
  %652 = vmatprep.subr.mxu0 %v25
  %653 = vmatpush1.msra.mxu0 %v24
  %654 = vmatprep.subr.mxu0 %v31
  %655 = vmatpush1.msra.mxu0 %v30
  %656 = vmatprep.subr.mxu0 %v37
  %657 = vmatpush1.msra.mxu0 %v36
  %658 = vmatprep.subr.mxu0 %v43
  %659 = vmatpush1.msra.mxu0 %v42
  %660 = vmatprep.subr.mxu0 %v49
  %661 = vmatpush1.msra.mxu0 %v48
  %662 = vmatprep.subr.mxu0 %v55
  %663 = vmatpush1.msra.mxu0 %v54
  %664 = vmatprep.subr.mxu0 %v61
  %665 = vmatpush1.msra.mxu0 %v60
  %666 = vmatprep.subr.mxu0 %v67
  %667 = vmatpush1.msra.mxu0 %v66
  %668 = vmatprep.subr.mxu0 %v73
  %669 = vmatpush1.msra.mxu0 %v72
  %670 = vmatprep.subr.mxu0 %v79
  %671 = vmatpush1.msra.mxu0 %v78
  %672 = vmatprep.subr.mxu0 %v85
  %673 = vmatpush1.msra.mxu0 %v84
  %674 = vmatprep.subr.mxu0 %v91
  %675 = vmatpush1.msra.mxu0 %v90
  %676 = vmatprep.subr.mxu0 %v97
  %677 = vmatpush1.msra.mxu0 %v96
  %678 = vmatprep.subr.mxu0 %v103
  %679 = vmatpush1.msra.mxu0 %v102
  %680 = vmatprep.subr.mxu0 %v109
  %681 = vmatpush1.msra.mxu0 %v108
  %682 = vmatprep.subr.mxu0 %v115
  %683 = vmatpush1.msra.mxu0 %v114
  %684 = vmatprep.subr.mxu0 %v121
  %685 = vmatpush1.msra.mxu0 %v120
  %686 = vmatprep.subr.mxu0 %v127
  %687 = vmatpush1.msra.mxu0 %v126
  %688 = vmatprep.subr.mxu0 %v133
  %689 = vmatpush1.msra.mxu0 %v132
  %690 = vmatprep.subr.mxu0 %v139
  %691 = vmatpush1.msra.mxu0 %v138
  %692 = vmatprep.subr.mxu0 %v145
  %693 = vmatpush1.msra.mxu0 %v144
  %694 = vmatprep.subr.mxu0 %v151
  %695 = vmatpush1.msra.mxu0 %v150
  %696 = vmatprep.subr.mxu0 %v157
  %697 = vmatpush1.msra.mxu0 %v156
  %698 = vmatprep.subr.mxu0 %v163
  %699 = vmatpush1.msra.mxu0 %v162
  %700 = vmatprep.subr.mxu0 %v169
  %701 = vmatpush1.msra.mxu0 %v168
  %702 = vmatprep.subr.mxu0 %v175
  %703 = vmatpush1.msra.mxu0 %v174
  %704 = vmatprep.subr.mxu0 %v181
  %705 = vmatpush1.msra.mxu0 %v180
  %706 = vmatprep.subr.mxu0 %v187
  %707 = vmatpush1.msra.mxu0 %v186
  %708 = vmatprep.subr.mxu0 %v193
  %709 = vmatpush1.msra.mxu0 %v192
  %710 = vmatprep.subr.mxu0 %v199
  %711 = vmatpush1.msra.mxu0 %v198
  %712 = vmatprep.subr.mxu0 %v205
  %713 = vmatpush1.msra.mxu0 %v204
  %714 = vmatprep.subr.mxu0 %v211
  %715 = vmatpush1.msra.mxu0 %v210
  %716 = vmatprep.mubr.f32.mxu0 %v507
  %717 = vmatmul.mubr.f32.gmra.mrb[0].mxu0 %v506
  %v718 = vpop.f32.mrb[0].mxu0
  %v719 = vadd.f32 0.0, %v718
  %v720 = vpop.f32.mrb[0].mxu0
  %v721 = vadd.f32 0.0, %v720
  %722 = vdwg.mxu0
  %v725 = vcombine.low %v577, %v579
  %v727 = vunpack.c.l.s4 1983009808
  %v728 = vunpack.c.0.s8 %v727
  %v729 = vlaneseq
  %v730 = vshrl.u32 %v729, 7
  %v731 = vsub.s32 %v728, %v730
  %v732 = vrot.slane %v725, %v731
  %v734 = vadd.f32 %v497, %v732
  %v735 = vxor.u32 %v734, 2147483648
  %v736 = vmul.f32 %v735, 1.442695
  %v737 = vpow.pop %v736
  %v738 = vadd.f32 %v737, 1.0
  %v739 = vrcp.pop %v738
  %v740 = vmul.f32 1.0, %v739
  %v742 = vrot.slane %v497, 4
  %v746 = vcombine.low %v648, %v650
  %v748 = vunpack.c.l.s4 1983009808
  %v749 = vunpack.c.0.s8 %v748
  %v750 = vlaneseq
  %v751 = vshrl.u32 %v750, 7
  %v752 = vsub.s32 %v749, %v751
  %v753 = vrot.slane %v746, %v752
  %v755 = vadd.f32 %v742, %v753
  %v756 = vxor.u32 %v755, 2147483648
  %v757 = vmul.f32 %v756, 1.442695
  %v758 = vpow.pop %v757
  %v759 = vadd.f32 %v758, 1.0
  %v760 = vrcp.pop %v759
  %v761 = vmul.f32 1.0, %v760
  %v762 = vadd.f32 %v719, %v471
  %v763 = vadd.f32 %v721, %v475
  %v766 = vcombine.low %v762, %v763
  %v768 = vunpack.c.l.s4 1983009808
  %v769 = vunpack.c.0.s8 %v768
  %v770 = vlaneseq
  %v771 = vshrl.u32 %v770, 7
  %v772 = vsub.s32 %v769, %v771
  %v773 = vrot.slane %v766, %v772
  %v775 = vmul.f32 %v740, %v773
  %v776 = vadd.f32 %v498, %v775
  %v777 = vtanh.pop %v776
  %v778 = vsub.f32 %v496, %v777
  %v779 = vmul.f32 %v761, %v778
  %v780 = vadd.f32 %v777, %v779
  %v781 = vld [vmem:[%s0 + $0x18] sm:$0xff]
  %v782 = vld [vmem:[%s0 + $0x20] sm:$0xf]
  %v785 = vunpack.c.l.s4 1983009808
  %v786 = vunpack.c.0.s8 %v785
  %v787 = vlaneseq
  %v788 = vshrl.u32 %v787, 7
  %v789 = vsub.s32 %v786, %v788
  %v790 = vrot.slane %v780, %v789
  %v791 = vcombine.high %v790, %v790
  %794 = vmatprep.subr.mxu0 %v21
  %795 = vmatpush1.msra.mxu0 %v20
  %796 = vmatprep.subr.mxu0 %v27
  %797 = vmatpush1.msra.mxu0 %v26
  %798 = vmatprep.subr.mxu0 %v33
  %799 = vmatpush1.msra.mxu0 %v32
  %800 = vmatprep.subr.mxu0 %v39
  %801 = vmatpush1.msra.mxu0 %v38
  %802 = vmatprep.subr.mxu0 %v45
  %803 = vmatpush1.msra.mxu0 %v44
  %804 = vmatprep.subr.mxu0 %v51
  %805 = vmatpush1.msra.mxu0 %v50
  %806 = vmatprep.subr.mxu0 %v57
  %807 = vmatpush1.msra.mxu0 %v56
  %808 = vmatprep.subr.mxu0 %v63
  %809 = vmatpush1.msra.mxu0 %v62
  %810 = vmatprep.subr.mxu0 %v69
  %811 = vmatpush1.msra.mxu0 %v68
  %812 = vmatprep.subr.mxu0 %v75
  %813 = vmatpush1.msra.mxu0 %v74
  %814 = vmatprep.subr.mxu0 %v81
  %815 = vmatpush1.msra.mxu0 %v80
  %816 = vmatprep.subr.mxu0 %v87
  %817 = vmatpush1.msra.mxu0 %v86
  %818 = vmatprep.subr.mxu0 %v93
  %819 = vmatpush1.msra.mxu0 %v92
  %820 = vmatprep.subr.mxu0 %v99
  %821 = vmatpush1.msra.mxu0 %v98
  %822 = vmatprep.subr.mxu0 %v105
  %823 = vmatpush1.msra.mxu0 %v104
  %824 = vmatprep.subr.mxu0 %v111
  %825 = vmatpush1.msra.mxu0 %v110
  %826 = vmatprep.subr.mxu0 %v117
  %827 = vmatpush1.msra.mxu0 %v116
  %828 = vmatprep.subr.mxu0 %v123
  %829 = vmatpush1.msra.mxu0 %v122
  %830 = vmatprep.subr.mxu0 %v129
  %831 = vmatpush1.msra.mxu0 %v128
  %832 = vmatprep.subr.mxu0 %v135
  %833 = vmatpush1.msra.mxu0 %v134
  %834 = vmatprep.subr.mxu0 %v141
  %835 = vmatpush1.msra.mxu0 %v140
  %836 = vmatprep.subr.mxu0 %v147
  %837 = vmatpush1.msra.mxu0 %v146
  %838 = vmatprep.subr.mxu0 %v153
  %839 = vmatpush1.msra.mxu0 %v152
  %840 = vmatprep.subr.mxu0 %v159
  %841 = vmatpush1.msra.mxu0 %v158
  %842 = vmatprep.subr.mxu0 %v165
  %843 = vmatpush1.msra.mxu0 %v164
  %844 = vmatprep.subr.mxu0 %v171
  %845 = vmatpush1.msra.mxu0 %v170
  %846 = vmatprep.subr.mxu0 %v177
  %847 = vmatpush1.msra.mxu0 %v176
  %848 = vmatprep.subr.mxu0 %v183
  %849 = vmatpush1.msra.mxu0 %v182
  %850 = vmatprep.subr.mxu0 %v189
  %851 = vmatpush1.msra.mxu0 %v188
  %852 = vmatprep.subr.mxu0 %v195
  %853 = vmatpush1.msra.mxu0 %v194
  %854 = vmatprep.subr.mxu0 %v201
  %855 = vmatpush1.msra.mxu0 %v200
  %856 = vmatprep.subr.mxu0 %v207
  %857 = vmatpush1.msra.mxu0 %v206
  %858 = vmatprep.mubr.f32.mxu0 %v791
  %859 = vmatmul.mubr.f32.gmra.mrb[0].mxu0 %v790
  %v860 = vpop.f32.mrb[0].mxu0
  %v861 = vadd.f32 0.0, %v860
  %v862 = vpop.f32.mrb[0].mxu0
  %v863 = vadd.f32 0.0, %v862
  %864 = vdwg.mxu0
  %865 = vmatprep.subr.mxu0 %v23
  %866 = vmatpush1.msra.mxu0 %v22
  %867 = vmatprep.subr.mxu0 %v29
  %868 = vmatpush1.msra.mxu0 %v28
  %869 = vmatprep.subr.mxu0 %v35
  %870 = vmatpush1.msra.mxu0 %v34
  %871 = vmatprep.subr.mxu0 %v41
  %872 = vmatpush1.msra.mxu0 %v40
  %873 = vmatprep.subr.mxu0 %v47
  %874 = vmatpush1.msra.mxu0 %v46
  %875 = vmatprep.subr.mxu0 %v53
  %876 = vmatpush1.msra.mxu0 %v52
  %877 = vmatprep.subr.mxu0 %v59
  %878 = vmatpush1.msra.mxu0 %v58
  %879 = vmatprep.subr.mxu0 %v65
  %880 = vmatpush1.msra.mxu0 %v64
  %881 = vmatprep.subr.mxu0 %v71
  %882 = vmatpush1.msra.mxu0 %v70
  %883 = vmatprep.subr.mxu0 %v77
  %884 = vmatpush1.msra.mxu0 %v76
  %885 = vmatprep.subr.mxu0 %v83
  %886 = vmatpush1.msra.mxu0 %v82
  %887 = vmatprep.subr.mxu0 %v89
  %888 = vmatpush1.msra.mxu0 %v88
  %889 = vmatprep.subr.mxu0 %v95
  %890 = vmatpush1.msra.mxu0 %v94
  %891 = vmatprep.subr.mxu0 %v101
  %892 = vmatpush1.msra.mxu0 %v100
  %893 = vmatprep.subr.mxu0 %v107
  %894 = vmatpush1.msra.mxu0 %v106
  %895 = vmatprep.subr.mxu0 %v113
  %896 = vmatpush1.msra.mxu0 %v112
  %897 = vmatprep.subr.mxu0 %v119
  %898 = vmatpush1.msra.mxu0 %v118
  %899 = vmatprep.subr.mxu0 %v125
  %900 = vmatpush1.msra.mxu0 %v124
  %901 = vmatprep.subr.mxu0 %v131
  %902 = vmatpush1.msra.mxu0 %v130
  %903 = vmatprep.subr.mxu0 %v137
  %904 = vmatpush1.msra.mxu0 %v136
  %905 = vmatprep.subr.mxu0 %v143
  %906 = vmatpush1.msra.mxu0 %v142
  %907 = vmatprep.subr.mxu0 %v149
  %908 = vmatpush1.msra.mxu0 %v148
  %909 = vmatprep.subr.mxu0 %v155
  %910 = vmatpush1.msra.mxu0 %v154
  %911 = vmatprep.subr.mxu0 %v161
  %912 = vmatpush1.msra.mxu0 %v160
  %913 = vmatprep.subr.mxu0 %v167
  %914 = vmatpush1.msra.mxu0 %v166
  %915 = vmatprep.subr.mxu0 %v173
  %916 = vmatpush1.msra.mxu0 %v172
  %917 = vmatprep.subr.mxu0 %v179
  %918 = vmatpush1.msra.mxu0 %v178
  %919 = vmatprep.subr.mxu0 %v185
  %920 = vmatpush1.msra.mxu0 %v184
  %921 = vmatprep.subr.mxu0 %v191
  %922 = vmatpush1.msra.mxu0 %v190
  %923 = vmatprep.subr.mxu0 %v197
  %924 = vmatpush1.msra.mxu0 %v196
  %925 = vmatprep.subr.mxu0 %v203
  %926 = vmatpush1.msra.mxu0 %v202
  %927 = vmatprep.subr.mxu0 %v209
  %928 = vmatpush1.msra.mxu0 %v208
  %929 = vmatprep.mubr.f32.mxu0 %v791
  %930 = vmatmul.mubr.f32.gmra.mrb[0].mxu0 %v790
  %v931 = vpop.f32.mrb[0].mxu0
  %v932 = vadd.f32 0.0, %v931
  %v933 = vpop.f32.mrb[0].mxu0
  %v934 = vadd.f32 0.0, %v933
  %935 = vdwg.mxu0
  %936 = vmatprep.subr.mxu0 %v25
  %937 = vmatpush1.msra.mxu0 %v24
  %938 = vmatprep.subr.mxu0 %v31
  %939 = vmatpush1.msra.mxu0 %v30
  %940 = vmatprep.subr.mxu0 %v37
  %941 = vmatpush1.msra.mxu0 %v36
  %942 = vmatprep.subr.mxu0 %v43
  %943 = vmatpush1.msra.mxu0 %v42
  %944 = vmatprep.subr.mxu0 %v49
  %945 = vmatpush1.msra.mxu0 %v48
  %946 = vmatprep.subr.mxu0 %v55
  %947 = vmatpush1.msra.mxu0 %v54
  %948 = vmatprep.subr.mxu0 %v61
  %949 = vmatpush1.msra.mxu0 %v60
  %950 = vmatprep.subr.mxu0 %v67
  %951 = vmatpush1.msra.mxu0 %v66
  %952 = vmatprep.subr.mxu0 %v73
  %953 = vmatpush1.msra.mxu0 %v72
  %954 = vmatprep.subr.mxu0 %v79
  %955 = vmatpush1.msra.mxu0 %v78
  %956 = vmatprep.subr.mxu0 %v85
  %957 = vmatpush1.msra.mxu0 %v84
  %958 = vmatprep.subr.mxu0 %v91
  %959 = vmatpush1.msra.mxu0 %v90
  %960 = vmatprep.subr.mxu0 %v97
  %961 = vmatpush1.msra.mxu0 %v96
  %962 = vmatprep.subr.mxu0 %v103
  %963 = vmatpush1.msra.mxu0 %v102
  %964 = vmatprep.subr.mxu0 %v109
  %965 = vmatpush1.msra.mxu0 %v108
  %966 = vmatprep.subr.mxu0 %v115
  %967 = vmatpush1.msra.mxu0 %v114
  %968 = vmatprep.subr.mxu0 %v121
  %969 = vmatpush1.msra.mxu0 %v120
  %970 = vmatprep.subr.mxu0 %v127
  %971 = vmatpush1.msra.mxu0 %v126
  %972 = vmatprep.subr.mxu0 %v133
  %973 = vmatpush1.msra.mxu0 %v132
  %974 = vmatprep.subr.mxu0 %v139
  %975 = vmatpush1.msra.mxu0 %v138
  %976 = vmatprep.subr.mxu0 %v145
  %977 = vmatpush1.msra.mxu0 %v144
  %978 = vmatprep.subr.mxu0 %v151
  %979 = vmatpush1.msra.mxu0 %v150
  %980 = vmatprep.subr.mxu0 %v157
  %981 = vmatpush1.msra.mxu0 %v156
  %982 = vmatprep.subr.mxu0 %v163
  %983 = vmatpush1.msra.mxu0 %v162
  %984 = vmatprep.subr.mxu0 %v169
  %985 = vmatpush1.msra.mxu0 %v168
  %986 = vmatprep.subr.mxu0 %v175
  %987 = vmatpush1.msra.mxu0 %v174
  %988 = vmatprep.subr.mxu0 %v181
  %989 = vmatpush1.msra.mxu0 %v180
  %990 = vmatprep.subr.mxu0 %v187
  %991 = vmatpush1.msra.mxu0 %v186
  %992 = vmatprep.subr.mxu0 %v193
  %993 = vmatpush1.msra.mxu0 %v192
  %994 = vmatprep.subr.mxu0 %v199
  %995 = vmatpush1.msra.mxu0 %v198
  %996 = vmatprep.subr.mxu0 %v205
  %997 = vmatpush1.msra.mxu0 %v204
  %998 = vmatprep.subr.mxu0 %v211
  %999 = vmatpush1.msra.mxu0 %v210
  %1000 = vmatprep.mubr.f32.mxu0 %v791
  %1001 = vmatmul.mubr.f32.gmra.mrb[0].mxu0 %v790
  %v1002 = vpop.f32.mrb[0].mxu0
  %v1003 = vadd.f32 0.0, %v1002
  %v1004 = vpop.f32.mrb[0].mxu0
  %v1005 = vadd.f32 0.0, %v1004
  %1006 = vdwg.mxu0
  %v1009 = vcombine.low %v861, %v863
  %v1011 = vunpack.c.l.s4 1983009808
  %v1012 = vunpack.c.0.s8 %v1011
  %v1013 = vlaneseq
  %v1014 = vshrl.u32 %v1013, 7
  %v1015 = vsub.s32 %v1012, %v1014
  %v1016 = vrot.slane %v1009, %v1015
  %v1018 = vadd.f32 %v781, %v1016
  %v1019 = vxor.u32 %v1018, 2147483648
  %v1020 = vmul.f32 %v1019, 1.442695
  %v1021 = vpow.pop %v1020
  %v1022 = vadd.f32 %v1021, 1.0
  %v1023 = vrcp.pop %v1022
  %v1024 = vmul.f32 1.0, %v1023
  %v1026 = vrot.slane %v781, 4
  %v1030 = vcombine.low %v932, %v934
  %v1032 = vunpack.c.l.s4 1983009808
  %v1033 = vunpack.c.0.s8 %v1032
  %v1034 = vlaneseq
  %v1035 = vshrl.u32 %v1034, 7
  %v1036 = vsub.s32 %v1033, %v1035
  %v1037 = vrot.slane %v1030, %v1036
  %v1039 = vadd.f32 %v1026, %v1037
  %v1040 = vxor.u32 %v1039, 2147483648
  %v1041 = vmul.f32 %v1040, 1.442695
  %v1042 = vpow.pop %v1041
  %v1043 = vadd.f32 %v1042, 1.0
  %v1044 = vrcp.pop %v1043
  %v1045 = vmul.f32 1.0, %v1044
  %v1046 = vadd.f32 %v1003, %v471
  %v1047 = vadd.f32 %v1005, %v475
  %v1050 = vcombine.low %v1046, %v1047
  %v1052 = vunpack.c.l.s4 1983009808
  %v1053 = vunpack.c.0.s8 %v1052
  %v1054 = vlaneseq
  %v1055 = vshrl.u32 %v1054, 7
  %v1056 = vsub.s32 %v1053, %v1055
  %v1057 = vrot.slane %v1050, %v1056
  %v1059 = vmul.f32 %v1024, %v1057
  %v1060 = vadd.f32 %v782, %v1059
  %v1061 = vtanh.pop %v1060
  %v1062 = vsub.f32 %v780, %v1061
  %v1063 = vmul.f32 %v1045, %v1062
  %v1064 = vadd.f32 %v1061, %v1063
  %v1065 = vld [vmem:[%s0 + $0x24] sm:$0xff]
  %v1066 = vld [vmem:[%s0 + $0x2c] sm:$0xf]
  %v1069 = vunpack.c.l.s4 1983009808
  %v1070 = vunpack.c.0.s8 %v1069
  %v1071 = vlaneseq
  %v1072 = vshrl.u32 %v1071, 7
  %v1073 = vsub.s32 %v1070, %v1072
  %v1074 = vrot.slane %v1064, %v1073
  %v1075 = vcombine.high %v1074, %v1074
  %1078 = vmatprep.subr.mxu0 %v21
  %1079 = vmatpush1.msra.mxu0 %v20
  %1080 = vmatprep.subr.mxu0 %v27
  %1081 = vmatpush1.msra.mxu0 %v26
  %1082 = vmatprep.subr.mxu0 %v33
  %1083 = vmatpush1.msra.mxu0 %v32
  %1084 = vmatprep.subr.mxu0 %v39
  %1085 = vmatpush1.msra.mxu0 %v38
  %1086 = vmatprep.subr.mxu0 %v45
  %1087 = vmatpush1.msra.mxu0 %v44
  %1088 = vmatprep.subr.mxu0 %v51
  %1089 = vmatpush1.msra.mxu0 %v50
  %1090 = vmatprep.subr.mxu0 %v57
  %1091 = vmatpush1.msra.mxu0 %v56
  %1092 = vmatprep.subr.mxu0 %v63
  %1093 = vmatpush1.msra.mxu0 %v62
  %1094 = vmatprep.subr.mxu0 %v69
  %1095 = vmatpush1.msra.mxu0 %v68
  %1096 = vmatprep.subr.mxu0 %v75
  %1097 = vmatpush1.msra.mxu0 %v74
  %1098 = vmatprep.subr.mxu0 %v81
  %1099 = vmatpush1.msra.mxu0 %v80
  %1100 = vmatprep.subr.mxu0 %v87
  %1101 = vmatpush1.msra.mxu0 %v86
  %1102 = vmatprep.subr.mxu0 %v93
  %1103 = vmatpush1.msra.mxu0 %v92
  %1104 = vmatprep.subr.mxu0 %v99
  %1105 = vmatpush1.msra.mxu0 %v98
  %1106 = vmatprep.subr.mxu0 %v105
  %1107 = vmatpush1.msra.mxu0 %v104
  %1108 = vmatprep.subr.mxu0 %v111
  %1109 = vmatpush1.msra.mxu0 %v110
  %1110 = vmatprep.subr.mxu0 %v117
  %1111 = vmatpush1.msra.mxu0 %v116
  %1112 = vmatprep.subr.mxu0 %v123
  %1113 = vmatpush1.msra.mxu0 %v122
  %1114 = vmatprep.subr.mxu0 %v129
  %1115 = vmatpush1.msra.mxu0 %v128
  %1116 = vmatprep.subr.mxu0 %v135
  %1117 = vmatpush1.msra.mxu0 %v134
  %1118 = vmatprep.subr.mxu0 %v141
  %1119 = vmatpush1.msra.mxu0 %v140
  %1120 = vmatprep.subr.mxu0 %v147
  %1121 = vmatpush1.msra.mxu0 %v146
  %1122 = vmatprep.subr.mxu0 %v153
  %1123 = vmatpush1.msra.mxu0 %v152
  %1124 = vmatprep.subr.mxu0 %v159
  %1125 = vmatpush1.msra.mxu0 %v158
  %1126 = vmatprep.subr.mxu0 %v165
  %1127 = vmatpush1.msra.mxu0 %v164
  %1128 = vmatprep.subr.mxu0 %v171
  %1129 = vmatpush1.msra.mxu0 %v170
  %1130 = vmatprep.subr.mxu0 %v177
  %1131 = vmatpush1.msra.mxu0 %v176
  %1132 = vmatprep.subr.mxu0 %v183
  %1133 = vmatpush1.msra.mxu0 %v182
  %1134 = vmatprep.subr.mxu0 %v189
  %1135 = vmatpush1.msra.mxu0 %v188
  %1136 = vmatprep.subr.mxu0 %v195
  %1137 = vmatpush1.msra.mxu0 %v194
  %1138 = vmatprep.subr.mxu0 %v201
  %1139 = vmatpush1.msra.mxu0 %v200
  %1140 = vmatprep.subr.mxu0 %v207
  %1141 = vmatpush1.msra.mxu0 %v206
  %1142 = vmatprep.mubr.f32.mxu0 %v1075
  %1143 = vmatmul.mubr.f32.gmra.mrb[0].mxu0 %v1074
  %v1144 = vpop.f32.mrb[0].mxu0
  %v1145 = vadd.f32 0.0, %v1144
  %v1146 = vpop.f32.mrb[0].mxu0
  %v1147 = vadd.f32 0.0, %v1146
  %1148 = vdwg.mxu0
  %1149 = vmatprep.subr.mxu0 %v23
  %1150 = vmatpush1.msra.mxu0 %v22
  %1151 = vmatprep.subr.mxu0 %v29
  %1152 = vmatpush1.msra.mxu0 %v28
  %1153 = vmatprep.subr.mxu0 %v35
  %1154 = vmatpush1.msra.mxu0 %v34
  %1155 = vmatprep.subr.mxu0 %v41
  %1156 = vmatpush1.msra.mxu0 %v40
  %1157 = vmatprep.subr.mxu0 %v47
  %1158 = vmatpush1.msra.mxu0 %v46
  %1159 = vmatprep.subr.mxu0 %v53
  %1160 = vmatpush1.msra.mxu0 %v52
  %1161 = vmatprep.subr.mxu0 %v59
  %1162 = vmatpush1.msra.mxu0 %v58
  %1163 = vmatprep.subr.mxu0 %v65
  %1164 = vmatpush1.msra.mxu0 %v64
  %1165 = vmatprep.subr.mxu0 %v71
  %1166 = vmatpush1.msra.mxu0 %v70
  %1167 = vmatprep.subr.mxu0 %v77
  %1168 = vmatpush1.msra.mxu0 %v76
  %1169 = vmatprep.subr.mxu0 %v83
  %1170 = vmatpush1.msra.mxu0 %v82
  %1171 = vmatprep.subr.mxu0 %v89
  %1172 = vmatpush1.msra.mxu0 %v88
  %1173 = vmatprep.subr.mxu0 %v95
  %1174 = vmatpush1.msra.mxu0 %v94
  %1175 = vmatprep.subr.mxu0 %v101
  %1176 = vmatpush1.msra.mxu0 %v100
  %1177 = vmatprep.subr.mxu0 %v107
  %1178 = vmatpush1.msra.mxu0 %v106
  %1179 = vmatprep.subr.mxu0 %v113
  %1180 = vmatpush1.msra.mxu0 %v112
  %1181 = vmatprep.subr.mxu0 %v119
  %1182 = vmatpush1.msra.mxu0 %v118
  %1183 = vmatprep.subr.mxu0 %v125
  %1184 = vmatpush1.msra.mxu0 %v124
  %1185 = vmatprep.subr.mxu0 %v131
  %1186 = vmatpush1.msra.mxu0 %v130
  %1187 = vmatprep.subr.mxu0 %v137
  %1188 = vmatpush1.msra.mxu0 %v136
  %1189 = vmatprep.subr.mxu0 %v143
  %1190 = vmatpush1.msra.mxu0 %v142
  %1191 = vmatprep.subr.mxu0 %v149
  %1192 = vmatpush1.msra.mxu0 %v148
  %1193 = vmatprep.subr.mxu0 %v155
  %1194 = vmatpush1.msra.mxu0 %v154
  %1195 = vmatprep.subr.mxu0 %v161
  %1196 = vmatpush1.msra.mxu0 %v160
  %1197 = vmatprep.subr.mxu0 %v167
  %1198 = vmatpush1.msra.mxu0 %v166
  %1199 = vmatprep.subr.mxu0 %v173
  %1200 = vmatpush1.msra.mxu0 %v172
  %1201 = vmatprep.subr.mxu0 %v179
  %1202 = vmatpush1.msra.mxu0 %v178
  %1203 = vmatprep.subr.mxu0 %v185
  %1204 = vmatpush1.msra.mxu0 %v184
  %1205 = vmatprep.subr.mxu0 %v191
  %1206 = vmatpush1.msra.mxu0 %v190
  %1207 = vmatprep.subr.mxu0 %v197
  %1208 = vmatpush1.msra.mxu0 %v196
  %1209 = vmatprep.subr.mxu0 %v203
  %1210 = vmatpush1.msra.mxu0 %v202
  %1211 = vmatprep.subr.mxu0 %v209
  %1212 = vmatpush1.msra.mxu0 %v208
  %1213 = vmatprep.mubr.f32.mxu0 %v1075
  %1214 = vmatmul.mubr.f32.gmra.mrb[0].mxu0 %v1074
  %v1215 = vpop.f32.mrb[0].mxu0
  %v1216 = vadd.f32 0.0, %v1215
  %v1217 = vpop.f32.mrb[0].mxu0
  %v1218 = vadd.f32 0.0, %v1217
  %1219 = vdwg.mxu0
  %1220 = vmatprep.subr.mxu0 %v25
  %1221 = vmatpush1.msra.mxu0 %v24
  %1222 = vmatprep.subr.mxu0 %v31
  %1223 = vmatpush1.msra.mxu0 %v30
  %1224 = vmatprep.subr.mxu0 %v37
  %1225 = vmatpush1.msra.mxu0 %v36
  %1226 = vmatprep.subr.mxu0 %v43
  %1227 = vmatpush1.msra.mxu0 %v42
  %1228 = vmatprep.subr.mxu0 %v49
  %1229 = vmatpush1.msra.mxu0 %v48
  %1230 = vmatprep.subr.mxu0 %v55
  %1231 = vmatpush1.msra.mxu0 %v54
  %1232 = vmatprep.subr.mxu0 %v61
  %1233 = vmatpush1.msra.mxu0 %v60
  %1234 = vmatprep.subr.mxu0 %v67
  %1235 = vmatpush1.msra.mxu0 %v66
  %1236 = vmatprep.subr.mxu0 %v73
  %1237 = vmatpush1.msra.mxu0 %v72
  %1238 = vmatprep.subr.mxu0 %v79
  %1239 = vmatpush1.msra.mxu0 %v78
  %1240 = vmatprep.subr.mxu0 %v85
  %1241 = vmatpush1.msra.mxu0 %v84
  %1242 = vmatprep.subr.mxu0 %v91
  %1243 = vmatpush1.msra.mxu0 %v90
  %1244 = vmatprep.subr.mxu0 %v97
  %1245 = vmatpush1.msra.mxu0 %v96
  %1246 = vmatprep.subr.mxu0 %v103
  %1247 = vmatpush1.msra.mxu0 %v102
  %1248 = vmatprep.subr.mxu0 %v109
  %1249 = vmatpush1.msra.mxu0 %v108
  %1250 = vmatprep.subr.mxu0 %v115
  %1251 = vmatpush1.msra.mxu0 %v114
  %1252 = vmatprep.subr.mxu0 %v121
  %1253 = vmatpush1.msra.mxu0 %v120
  %1254 = vmatprep.subr.mxu0 %v127
  %1255 = vmatpush1.msra.mxu0 %v126
  %1256 = vmatprep.subr.mxu0 %v133
  %1257 = vmatpush1.msra.mxu0 %v132
  %1258 = vmatprep.subr.mxu0 %v139
  %1259 = vmatpush1.msra.mxu0 %v138
  %1260 = vmatprep.subr.mxu0 %v145
  %1261 = vmatpush1.msra.mxu0 %v144
  %1262 = vmatprep.subr.mxu0 %v151
  %1263 = vmatpush1.msra.mxu0 %v150
  %1264 = vmatprep.subr.mxu0 %v157
  %1265 = vmatpush1.msra.mxu0 %v156
  %1266 = vmatprep.subr.mxu0 %v163
  %1267 = vmatpush1.msra.mxu0 %v162
  %1268 = vmatprep.subr.mxu0 %v169
  %1269 = vmatpush1.msra.mxu0 %v168
  %1270 = vmatprep.subr.mxu0 %v175
  %1271 = vmatpush1.msra.mxu0 %v174
  %1272 = vmatprep.subr.mxu0 %v181
  %1273 = vmatpush1.msra.mxu0 %v180
  %1274 = vmatprep.subr.mxu0 %v187
  %1275 = vmatpush1.msra.mxu0 %v186
  %1276 = vmatprep.subr.mxu0 %v193
  %1277 = vmatpush1.msra.mxu0 %v192
  %1278 = vmatprep.subr.mxu0 %v199
  %1279 = vmatpush1.msra.mxu0 %v198
  %1280 = vmatprep.subr.mxu0 %v205
  %1281 = vmatpush1.msra.mxu0 %v204
  %1282 = vmatprep.subr.mxu0 %v211
  %1283 = vmatpush1.msra.mxu0 %v210
  %1284 = vmatprep.mubr.f32.mxu0 %v1075
  %1285 = vmatmul.mubr.f32.gmra.mrb[0].mxu0 %v1074
  %v1286 = vpop.f32.mrb[0].mxu0
  %v1287 = vadd.f32 0.0, %v1286
  %v1288 = vpop.f32.mrb[0].mxu0
  %v1289 = vadd.f32 0.0, %v1288
  %1290 = vdwg.mxu0
  %v1293 = vcombine.low %v1145, %v1147
  %v1295 = vunpack.c.l.s4 1983009808
  %v1296 = vunpack.c.0.s8 %v1295
  %v1297 = vlaneseq
  %v1298 = vshrl.u32 %v1297, 7
  %v1299 = vsub.s32 %v1296, %v1298
  %v1300 = vrot.slane %v1293, %v1299
  %v1302 = vadd.f32 %v1065, %v1300
  %v1303 = vxor.u32 %v1302, 2147483648
  %v1304 = vmul.f32 %v1303, 1.442695
  %v1305 = vpow.pop %v1304
  %v1306 = vadd.f32 %v1305, 1.0
  %v1307 = vrcp.pop %v1306
  %v1308 = vmul.f32 1.0, %v1307
  %v1310 = vrot.slane %v1065, 4
  %v1314 = vcombine.low %v1216, %v1218
  %v1316 = vunpack.c.l.s4 1983009808
  %v1317 = vunpack.c.0.s8 %v1316
  %v1318 = vlaneseq
  %v1319 = vshrl.u32 %v1318, 7
  %v1320 = vsub.s32 %v1317, %v1319
  %v1321 = vrot.slane %v1314, %v1320
  %v1323 = vadd.f32 %v1310, %v1321
  %v1324 = vxor.u32 %v1323, 2147483648
  %v1325 = vmul.f32 %v1324, 1.442695
  %v1326 = vpow.pop %v1325
  %v1327 = vadd.f32 %v1326, 1.0
  %v1328 = vrcp.pop %v1327
  %v1329 = vmul.f32 1.0, %v1328
  %v1330 = vadd.f32 %v1287, %v471
  %v1331 = vadd.f32 %v1289, %v475
  %v1334 = vcombine.low %v1330, %v1331
  %v1336 = vunpack.c.l.s4 1983009808
  %v1337 = vunpack.c.0.s8 %v1336
  %v1338 = vlaneseq
  %v1339 = vshrl.u32 %v1338, 7
  %v1340 = vsub.s32 %v1337, %v1339
  %v1341 = vrot.slane %v1334, %v1340
  %v1343 = vmul.f32 %v1308, %v1341
  %v1344 = vadd.f32 %v1066, %v1343
  %v1345 = vtanh.pop %v1344
  %v1346 = vsub.f32 %v1064, %v1345
  %v1347 = vmul.f32 %v1329, %v1346
  %v1348 = vadd.f32 %v1345, %v1347
  %v1349 = vld [vmem:[%s3] sm:$0xff]
  %v1350 = vld [vmem:[%s3 + $0x8] sm:$0xff]
  %v1351 = vld [vmem:[%s3 + $0x10] sm:$0xff]
  %v1352 = vld [vmem:[%s3 + $0x18] sm:$0xff]
  %v1353 = vld [vmem:[%s3 + $0x20] sm:$0xff]
  %v1354 = vld [vmem:[%s3 + $0x28] sm:$0xff]
  %v1355 = vld [vmem:[%s3 + $0x30] sm:$0xff]
  %v1356 = vld [vmem:[%s3 + $0x38] sm:$0xff]
  %v1357 = vld [vmem:[%s3 + $0x40] sm:$0xff]
  %v1358 = vld [vmem:[%s3 + $0x48] sm:$0xff]
  %v1359 = vld [vmem:[%s3 + $0x50] sm:$0xff]
  %v1360 = vld [vmem:[%s3 + $0x58] sm:$0xff]
  %v1361 = vld [vmem:[%s3 + $0x60] sm:$0xff]
  %v1362 = vld [vmem:[%s3 + $0x68] sm:$0xff]
  %v1363 = vld [vmem:[%s3 + $0x70] sm:$0xff]
  %v1364 = vld [vmem:[%s3 + $0x78] sm:$0xff]
  %v1365 = vld [vmem:[%s3 + $0x80] sm:$0xff]
  %v1366 = vld [vmem:[%s3 + $0x88] sm:$0xff]
  %v1367 = vld [vmem:[%s3 + $0x90] sm:$0xff]
  %v1368 = vld [vmem:[%s3 + $0x98] sm:$0xff]
  %v1369 = vld [vmem:[%s3 + $0xa0] sm:$0xff]
  %v1370 = vld [vmem:[%s3 + $0xa8] sm:$0xff]
  %v1371 = vld [vmem:[%s3 + $0xb0] sm:$0xff]
  %v1372 = vld [vmem:[%s3 + $0xb8] sm:$0xff]
  %v1373 = vld [vmem:[%s3 + $0xc0] sm:$0xff]
  %v1374 = vld [vmem:[%s3 + $0xc8] sm:$0xff]
  %v1375 = vld [vmem:[%s3 + $0xd0] sm:$0xff]
  %v1376 = vld [vmem:[%s3 + $0xd8] sm:$0xff]
  %v1377 = vld [vmem:[%s3 + $0xe0] sm:$0xff]
  %v1378 = vld [vmem:[%s3 + $0xe8] sm:$0xff]
  %v1379 = vld [vmem:[%s3 + $0xf0] sm:$0xff]
  %v1380 = vld [vmem:[%s3 + $0xf8] sm:$0xff]
  %v1381 = vld [vmem:[%s4] sm:$0x1]
  %v1383 = vlaneseq
  %v1384 = vshrl.u32 %v1383, 7
  %v1385 = vsub.s32 0, %v1384
  %v1386 = vrot.slane %v1381, %v1385
  %v1390 = vunpack.c.l.s4 1983009808
  %v1391 = vunpack.c.0.s8 %v1390
  %v1392 = vlaneseq
  %v1393 = vshrl.u32 %v1392, 7
  %v1394 = vsub.s32 %v1391, %v1393
  %v1395 = vrot.slane %v1348, %v1394
  %v1396 = vcombine.high %v1395, %v1395
  %1399 = vmatprep.subr.mxu0 0.0
  %1400 = vmatpush1.msra.mxu0 %v1349
  %1401 = vmatprep.subr.mxu0 0.0
  %1402 = vmatpush1.msra.mxu0 %v1350
  %1403 = vmatprep.subr.mxu0 0.0
  %1404 = vmatpush1.msra.mxu0 %v1351
  %1405 = vmatprep.subr.mxu0 0.0
  %1406 = vmatpush1.msra.mxu0 %v1352
  %1407 = vmatprep.subr.mxu0 0.0
  %1408 = vmatpush1.msra.mxu0 %v1353
  %1409 = vmatprep.subr.mxu0 0.0
  %1410 = vmatpush1.msra.mxu0 %v1354
  %1411 = vmatprep.subr.mxu0 0.0
  %1412 = vmatpush1.msra.mxu0 %v1355
  %1413 = vmatprep.subr.mxu0 0.0
  %1414 = vmatpush1.msra.mxu0 %v1356
  %1415 = vmatprep.subr.mxu0 0.0
  %1416 = vmatpush1.msra.mxu0 %v1357
  %1417 = vmatprep.subr.mxu0 0.0
  %1418 = vmatpush1.msra.mxu0 %v1358
  %1419 = vmatprep.subr.mxu0 0.0
  %1420 = vmatpush1.msra.mxu0 %v1359
  %1421 = vmatprep.subr.mxu0 0.0
  %1422 = vmatpush1.msra.mxu0 %v1360
  %1423 = vmatprep.subr.mxu0 0.0
  %1424 = vmatpush1.msra.mxu0 %v1361
  %1425 = vmatprep.subr.mxu0 0.0
  %1426 = vmatpush1.msra.mxu0 %v1362
  %1427 = vmatprep.subr.mxu0 0.0
  %1428 = vmatpush1.msra.mxu0 %v1363
  %1429 = vmatprep.subr.mxu0 0.0
  %1430 = vmatpush1.msra.mxu0 %v1364
  %1431 = vmatprep.subr.mxu0 0.0
  %1432 = vmatpush1.msra.mxu0 %v1365
  %1433 = vmatprep.subr.mxu0 0.0
  %1434 = vmatpush1.msra.mxu0 %v1366
  %1435 = vmatprep.subr.mxu0 0.0
  %1436 = vmatpush1.msra.mxu0 %v1367
  %1437 = vmatprep.subr.mxu0 0.0
  %1438 = vmatpush1.msra.mxu0 %v1368
  %1439 = vmatprep.subr.mxu0 0.0
  %1440 = vmatpush1.msra.mxu0 %v1369
  %1441 = vmatprep.subr.mxu0 0.0
  %1442 = vmatpush1.msra.mxu0 %v1370
  %1443 = vmatprep.subr.mxu0 0.0
  %1444 = vmatpush1.msra.mxu0 %v1371
  %1445 = vmatprep.subr.mxu0 0.0
  %1446 = vmatpush1.msra.mxu0 %v1372
  %1447 = vmatprep.subr.mxu0 0.0
  %1448 = vmatpush1.msra.mxu0 %v1373
  %1449 = vmatprep.subr.mxu0 0.0
  %1450 = vmatpush1.msra.mxu0 %v1374
  %1451 = vmatprep.subr.mxu0 0.0
  %1452 = vmatpush1.msra.mxu0 %v1375
  %1453 = vmatprep.subr.mxu0 0.0
  %1454 = vmatpush1.msra.mxu0 %v1376
  %1455 = vmatprep.subr.mxu0 0.0
  %1456 = vmatpush1.msra.mxu0 %v1377
  %1457 = vmatprep.subr.mxu0 0.0
  %1458 = vmatpush1.msra.mxu0 %v1378
  %1459 = vmatprep.subr.mxu0 0.0
  %1460 = vmatpush1.msra.mxu0 %v1379
  %1461 = vmatprep.subr.mxu0 0.0
  %1462 = vmatpush1.msra.mxu0 %v1380
  %1463 = vmatprep.mubr.f32.mxu0 %v1396
  %1464 = vmatmul.mubr.f32.gmra.mrb[0].mxu0 %v1395
  %v1465 = vpop.f32.mrb[0].mxu0
  %v1466 = vadd.f32 %v1386, %v1465
  %v1467 = vpop.f32.mrb[0].mxu0
  %1468 = vdwg.mxu0
  %1469 = vst [vmem:[%s5] sm:$0x3] %v1466
  // Predicated region
  $region22: #{cpc_forward.5} parent=0 // pred_check
    _
  $region23: #{cpc_forward.5} parent=0 // pred_check_branch
    %1471 = sbr.rel (0) target = $region25
  $region24: #{cpc_forward.5} parent=0 // pred_region
    _
  $region25: #{cpc_forward.5} parent=0 // pred_fallthru
    _
  // Predicated region
  $region26: #{cpc_forward.5} parent=0 // pred_check
    _
  $region27: #{cpc_forward.5} parent=0 // pred_check_branch
    %1473 = sbr.rel (0) target = $region29
  $region28: #{cpc_forward.5} parent=0 // pred_region
    _
  $region29: #{cpc_forward.5} parent=0 // pred_fallthru
    _

// kernel: cpc_forward.4
$region0: #{cpc_forward.4}
  #allocation0 [shape = 'u32[]', space=smem, size = 0x4, offset = 0x4, fixed_abs, tag = 'smem constant byte address 0x4 - core index']
  #allocation1 [shape = 'u32[144,128]{1,0:T(1,128)}', space=vmem, size = 0x12000, scoped, tag = 'internal scratch']
  %s0 = inlined_call_operand.vmem [shape: f32[8,1024], index: 0, kind: input, shape index: {}]
  %s1 = inlined_call_operand.vmem [shape: bf16[1024,768], index: 1, kind: input, shape index: {}]
  %s2 = inlined_call_operand.vmem [shape: f32[1,768], index: 2, kind: input, shape index: {}]
  %s3 = inlined_call_operand.vmem [shape: f32[8,768], index: 3, kind: output, shape index: {}]
  %s4 = sld [smem:[#allocation0]]
  $region22: #{cpc_forward.4} parent=0
    _
  %s6 = ssub.s32 1, %s4
  %s7 = scalar_select 0, %s6, %s4
  // Predicated region
  $region2: #{cpc_forward.4} parent=0 // pred_check
    _
  $region3: #{cpc_forward.4} parent=0 // pred_check_branch
    %9 = sbr.rel (0) target = $region5
  $region4: #{cpc_forward.4} parent=0 // pred_region
    _
  $region5: #{cpc_forward.4} parent=0 // pred_fallthru
    _
  // Predicated region
  $region6: #{cpc_forward.4} parent=0 // pred_check
    _
  $region7: #{cpc_forward.4} parent=0 // pred_check_branch
    %11 = sbr.rel (0) target = $region9
  $region8: #{cpc_forward.4} parent=0 // pred_region
    _
  $region9: #{cpc_forward.4} parent=0 // pred_fallthru
    _
  // Predicated region
  $region10: #{cpc_forward.4} parent=0 // pred_check
    _
  $region11: #{cpc_forward.4} parent=0 // pred_check_branch
    %13 = sbr.rel (0) target = $region13
  $region12: #{cpc_forward.4} parent=0 // pred_region
    _
  $region13: #{cpc_forward.4} parent=0 // pred_fallthru
    _
  %v14 = vld [vmem:[%s0] sm:$0xff]
  %v15 = vld [vmem:[%s0 + $0x8] sm:$0xff]
  %v16 = vld [vmem:[%s0 + $0x10] sm:$0xff]
  %v17 = vld [vmem:[%s0 + $0x18] sm:$0xff]
  %v18 = vld [vmem:[%s0 + $0x20] sm:$0xff]
  %v19 = vld [vmem:[%s0 + $0x28] sm:$0xff]
  %v20 = vld [vmem:[%s0 + $0x30] sm:$0xff]
  %v21 = vld [vmem:[%s0 + $0x38] sm:$0xff]
  %v22 = vpack.c.bf16 %v14, %v14
  %v23 = vpack.c.bf16 %v15, %v15
  %v24 = vpack.c.bf16 %v16, %v16
  %v25 = vpack.c.bf16 %v17, %v17
  %v26 = vpack.c.bf16 %v18, %v18
  %v27 = vpack.c.bf16 %v19, %v19
  %v28 = vpack.c.bf16 %v20, %v20
  %v29 = vpack.c.bf16 %v21, %v21
  %v30 = vld [vmem:[%s1] sm:$0xff]
  %v31 = vld [vmem:[%s1 + $0x8] sm:$0xff]
  %v32 = vld [vmem:[%s1 + $0x10] sm:$0xff]
  %v33 = vld [vmem:[%s1 + $0x18] sm:$0xff]
  %v34 = vld [vmem:[%s1 + $0x20] sm:$0xff]
  %v35 = vld [vmem:[%s1 + $0x28] sm:$0xff]
  %v36 = vld [vmem:[%s1 + $0x30] sm:$0xff]
  %v37 = vld [vmem:[%s1 + $0x38] sm:$0xff]
  %v38 = vld [vmem:[%s1 + $0x40] sm:$0xff]
  %v39 = vld [vmem:[%s1 + $0x48] sm:$0xff]
  %v40 = vld [vmem:[%s1 + $0x50] sm:$0xff]
  %v41 = vld [vmem:[%s1 + $0x58] sm:$0xff]
  %v42 = vld [vmem:[%s1 + $0x60] sm:$0xff]
  %v43 = vld [vmem:[%s1 + $0x68] sm:$0xff]
  %v44 = vld [vmem:[%s1 + $0x70] sm:$0xff]
  %v45 = vld [vmem:[%s1 + $0x78] sm:$0xff]
  %v46 = vld [vmem:[%s1 + $0x80] sm:$0xff]
  %v47 = vld [vmem:[%s1 + $0x88] sm:$0xff]
  %v48 = vld [vmem:[%s1 + $0x90] sm:$0xff]
  %v49 = vld [vmem:[%s1 + $0x98] sm:$0xff]
  %v50 = vld [vmem:[%s1 + $0xa0] sm:$0xff]
  %v51 = vld [vmem:[%s1 + $0xa8] sm:$0xff]
  %v52 = vld [vmem:[%s1 + $0xb0] sm:$0xff]
  %v53 = vld [vmem:[%s1 + $0xb8] sm:$0xff]
  %v54 = vld [vmem:[%s1 + $0xc0] sm:$0xff]
  %v55 = vld [vmem:[%s1 + $0xc8] sm:$0xff]
  %v56 = vld [vmem:[%s1 + $0xd0] sm:$0xff]
  %v57 = vld [vmem:[%s1 + $0xd8] sm:$0xff]
  %v58 = vld [vmem:[%s1 + $0xe0] sm:$0xff]
  %v59 = vld [vmem:[%s1 + $0xe8] sm:$0xff]
  %v60 = vld [vmem:[%s1 + $0xf0] sm:$0xff]
  %v61 = vld [vmem:[%s1 + $0xf8] sm:$0xff]
  %v62 = vld [vmem:[%s1 + $0x100] sm:$0xff]
  %v63 = vld [vmem:[%s1 + $0x108] sm:$0xff]
  %v64 = vld [vmem:[%s1 + $0x110] sm:$0xff]
  %v65 = vld [vmem:[%s1 + $0x118] sm:$0xff]
  %v66 = vld [vmem:[%s1 + $0x120] sm:$0xff]
  %v67 = vld [vmem:[%s1 + $0x128] sm:$0xff]
  %v68 = vld [vmem:[%s1 + $0x130] sm:$0xff]
  %v69 = vld [vmem:[%s1 + $0x138] sm:$0xff]
  %v70 = vld [vmem:[%s1 + $0x140] sm:$0xff]
  %v71 = vld [vmem:[%s1 + $0x148] sm:$0xff]
  %v72 = vld [vmem:[%s1 + $0x150] sm:$0xff]
  %v73 = vld [vmem:[%s1 + $0x158] sm:$0xff]
  %v74 = vld [vmem:[%s1 + $0x160] sm:$0xff]
  %v75 = vld [vmem:[%s1 + $0x168] sm:$0xff]
  %v76 = vld [vmem:[%s1 + $0x170] sm:$0xff]
  %v77 = vld [vmem:[%s1 + $0x178] sm:$0xff]
  %v78 = vld [vmem:[%s1 + $0x180] sm:$0xff]
  %v79 = vld [vmem:[%s1 + $0x188] sm:$0xff]
  %v80 = vld [vmem:[%s1 + $0x190] sm:$0xff]
  %v81 = vld [vmem:[%s1 + $0x198] sm:$0xff]
  %v82 = vld [vmem:[%s1 + $0x1a0] sm:$0xff]
  %v83 = vld [vmem:[%s1 + $0x1a8] sm:$0xff]
  %v84 = vld [vmem:[%s1 + $0x1b0] sm:$0xff]
  %v85 = vld [vmem:[%s1 + $0x1b8] sm:$0xff]
  %v86 = vld [vmem:[%s1 + $0x1c0] sm:$0xff]
  %v87 = vld [vmem:[%s1 + $0x1c8] sm:$0xff]
  %v88 = vld [vmem:[%s1 + $0x1d0] sm:$0xff]
  %v89 = vld [vmem:[%s1 + $0x1d8] sm:$0xff]
  %v90 = vld [vmem:[%s1 + $0x1e0] sm:$0xff]
  %v91 = vld [vmem:[%s1 + $0x1e8] sm:$0xff]
  %v92 = vld [vmem:[%s1 + $0x1f0] sm:$0xff]
  %v93 = vld [vmem:[%s1 + $0x1f8] sm:$0xff]
  %v94 = vld [vmem:[%s1 + $0x200] sm:$0xff]
  %v95 = vld [vmem:[%s1 + $0x208] sm:$0xff]
  %v96 = vld [vmem:[%s1 + $0x210] sm:$0xff]
  %v97 = vld [vmem:[%s1 + $0x218] sm:$0xff]
  %v98 = vld [vmem:[%s1 + $0x220] sm:$0xff]
  %v99 = vld [vmem:[%s1 + $0x228] sm:$0xff]
  %v100 = vld [vmem:[%s1 + $0x230] sm:$0xff]
  %v101 = vld [vmem:[%s1 + $0x238] sm:$0xff]
  %v102 = vld [vmem:[%s1 + $0x240] sm:$0xff]
  %v103 = vld [vmem:[%s1 + $0x248] sm:$0xff]
  %v104 = vld [vmem:[%s1 + $0x250] sm:$0xff]
  %v105 = vld [vmem:[%s1 + $0x258] sm:$0xff]
  %v106 = vld [vmem:[%s1 + $0x260] sm:$0xff]
  %v107 = vld [vmem:[%s1 + $0x268] sm:$0xff]
  %v108 = vld [vmem:[%s1 + $0x270] sm:$0xff]
  %v109 = vld [vmem:[%s1 + $0x278] sm:$0xff]
  %v110 = vld [vmem:[%s1 + $0x280] sm:$0xff]
  %v111 = vld [vmem:[%s1 + $0x288] sm:$0xff]
  %v112 = vld [vmem:[%s1 + $0x290] sm:$0xff]
  %v113 = vld [vmem:[%s1 + $0x298] sm:$0xff]
  %v114 = vld [vmem:[%s1 + $0x2a0] sm:$0xff]
  %v115 = vld [vmem:[%s1 + $0x2a8] sm:$0xff]
  %v116 = vld [vmem:[%s1 + $0x2b0] sm:$0xff]
  %v117 = vld [vmem:[%s1 + $0x2b8] sm:$0xff]
  %v118 = vld [vmem:[%s1 + $0x2c0] sm:$0xff]
  %v119 = vld [vmem:[%s1 + $0x2c8] sm:$0xff]
  %v120 = vld [vmem:[%s1 + $0x2d0] sm:$0xff]
  %v121 = vld [vmem:[%s1 + $0x2d8] sm:$0xff]
  %v122 = vld [vmem:[%s1 + $0x2e0] sm:$0xff]
  %v123 = vld [vmem:[%s1 + $0x2e8] sm:$0xff]
  %v124 = vld [vmem:[%s1 + $0x2f0] sm:$0xff]
  %v125 = vld [vmem:[%s1 + $0x2f8] sm:$0xff]
  %v126 = vld [vmem:[%s1 + $0x300] sm:$0xff]
  %v127 = vld [vmem:[%s1 + $0x308] sm:$0xff]
  %v128 = vld [vmem:[%s1 + $0x310] sm:$0xff]
  %v129 = vld [vmem:[%s1 + $0x318] sm:$0xff]
  %v130 = vld [vmem:[%s1 + $0x320] sm:$0xff]
  %v131 = vld [vmem:[%s1 + $0x328] sm:$0xff]
  %v132 = vld [vmem:[%s1 + $0x330] sm:$0xff]
  %v133 = vld [vmem:[%s1 + $0x338] sm:$0xff]
  %v134 = vld [vmem:[%s1 + $0x340] sm:$0xff]
  %v135 = vld [vmem:[%s1 + $0x348] sm:$0xff]
  %v136 = vld [vmem:[%s1 + $0x350] sm:$0xff]
  %v137 = vld [vmem:[%s1 + $0x358] sm:$0xff]
  %v138 = vld [vmem:[%s1 + $0x360] sm:$0xff]
  %v139 = vld [vmem:[%s1 + $0x368] sm:$0xff]
  %v140 = vld [vmem:[%s1 + $0x370] sm:$0xff]
  %v141 = vld [vmem:[%s1 + $0x378] sm:$0xff]
  %v142 = vld [vmem:[%s1 + $0x380] sm:$0xff]
  %v143 = vld [vmem:[%s1 + $0x388] sm:$0xff]
  %v144 = vld [vmem:[%s1 + $0x390] sm:$0xff]
  %v145 = vld [vmem:[%s1 + $0x398] sm:$0xff]
  %v146 = vld [vmem:[%s1 + $0x3a0] sm:$0xff]
  %v147 = vld [vmem:[%s1 + $0x3a8] sm:$0xff]
  %v148 = vld [vmem:[%s1 + $0x3b0] sm:$0xff]
  %v149 = vld [vmem:[%s1 + $0x3b8] sm:$0xff]
  %v150 = vld [vmem:[%s1 + $0x3c0] sm:$0xff]
  %v151 = vld [vmem:[%s1 + $0x3c8] sm:$0xff]
  %v152 = vld [vmem:[%s1 + $0x3d0] sm:$0xff]
  %v153 = vld [vmem:[%s1 + $0x3d8] sm:$0xff]
  %v154 = vld [vmem:[%s1 + $0x3e0] sm:$0xff]
  %v155 = vld [vmem:[%s1 + $0x3e8] sm:$0xff]
  %v156 = vld [vmem:[%s1 + $0x3f0] sm:$0xff]
  %v157 = vld [vmem:[%s1 + $0x3f8] sm:$0xff]
  %v158 = vld [vmem:[%s1 + $0x400] sm:$0xff]
  %v159 = vld [vmem:[%s1 + $0x408] sm:$0xff]
  %v160 = vld [vmem:[%s1 + $0x410] sm:$0xff]
  %v161 = vld [vmem:[%s1 + $0x418] sm:$0xff]
  %v162 = vld [vmem:[%s1 + $0x420] sm:$0xff]
  %v163 = vld [vmem:[%s1 + $0x428] sm:$0xff]
  %v164 = vld [vmem:[%s1 + $0x430] sm:$0xff]
  %v165 = vld [vmem:[%s1 + $0x438] sm:$0xff]
  %v166 = vld [vmem:[%s1 + $0x440] sm:$0xff]
  %v167 = vld [vmem:[%s1 + $0x448] sm:$0xff]
  %v168 = vld [vmem:[%s1 + $0x450] sm:$0xff]
  %v169 = vld [vmem:[%s1 + $0x458] sm:$0xff]
  %v170 = vld [vmem:[%s1 + $0x460] sm:$0xff]
  %v171 = vld [vmem:[%s1 + $0x468] sm:$0xff]
  %v172 = vld [vmem:[%s1 + $0x470] sm:$0xff]
  %v173 = vld [vmem:[%s1 + $0x478] sm:$0xff]
  %v174 = vld [vmem:[%s1 + $0x480] sm:$0xff]
  %v175 = vld [vmem:[%s1 + $0x488] sm:$0xff]
  %v176 = vld [vmem:[%s1 + $0x490] sm:$0xff]
  %v177 = vld [vmem:[%s1 + $0x498] sm:$0xff]
  %v178 = vld [vmem:[%s1 + $0x4a0] sm:$0xff]
  %v179 = vld [vmem:[%s1 + $0x4a8] sm:$0xff]
  %v180 = vld [vmem:[%s1 + $0x4b0] sm:$0xff]
  %v181 = vld [vmem:[%s1 + $0x4b8] sm:$0xff]
  %v182 = vld [vmem:[%s1 + $0x4c0] sm:$0xff]
  %v183 = vld [vmem:[%s1 + $0x4c8] sm:$0xff]
  %v184 = vld [vmem:[%s1 + $0x4d0] sm:$0xff]
  %v185 = vld [vmem:[%s1 + $0x4d8] sm:$0xff]
  %v186 = vld [vmem:[%s1 + $0x4e0] sm:$0xff]
  %v187 = vld [vmem:[%s1 + $0x4e8] sm:$0xff]
  %v188 = vld [vmem:[%s1 + $0x4f0] sm:$0xff]
  %v189 = vld [vmem:[%s1 + $0x4f8] sm:$0xff]
  %v190 = vld [vmem:[%s1 + $0x500] sm:$0xff]
  %v191 = vld [vmem:[%s1 + $0x508] sm:$0xff]
  %v192 = vld [vmem:[%s1 + $0x510] sm:$0xff]
  %v193 = vld [vmem:[%s1 + $0x518] sm:$0xff]
  %v194 = vld [vmem:[%s1 + $0x520] sm:$0xff]
  %v195 = vld [vmem:[%s1 + $0x528] sm:$0xff]
  %v196 = vld [vmem:[%s1 + $0x530] sm:$0xff]
  %v197 = vld [vmem:[%s1 + $0x538] sm:$0xff]
  %v198 = vld [vmem:[%s1 + $0x540] sm:$0xff]
  %v199 = vld [vmem:[%s1 + $0x548] sm:$0xff]
  %v200 = vld [vmem:[%s1 + $0x550] sm:$0xff]
  %v201 = vld [vmem:[%s1 + $0x558] sm:$0xff]
  %v202 = vld [vmem:[%s1 + $0x560] sm:$0xff]
  %v203 = vld [vmem:[%s1 + $0x568] sm:$0xff]
  %v204 = vld [vmem:[%s1 + $0x570] sm:$0xff]
  %v205 = vld [vmem:[%s1 + $0x578] sm:$0xff]
  %v206 = vld [vmem:[%s1 + $0x580] sm:$0xff]
  %v207 = vld [vmem:[%s1 + $0x588] sm:$0xff]
  %v208 = vld [vmem:[%s1 + $0x590] sm:$0xff]
  %v209 = vld [vmem:[%s1 + $0x598] sm:$0xff]
  %v210 = vld [vmem:[%s1 + $0x5a0] sm:$0xff]
  %v211 = vld [vmem:[%s1 + $0x5a8] sm:$0xff]
  %v212 = vld [vmem:[%s1 + $0x5b0] sm:$0xff]
  %v213 = vld [vmem:[%s1 + $0x5b8] sm:$0xff]
  %v214 = vld [vmem:[%s1 + $0x5c0] sm:$0xff]
  %v215 = vld [vmem:[%s1 + $0x5c8] sm:$0xff]
  %v216 = vld [vmem:[%s1 + $0x5d0] sm:$0xff]
  %v217 = vld [vmem:[%s1 + $0x5d8] sm:$0xff]
  %v218 = vld [vmem:[%s1 + $0x5e0] sm:$0xff]
  %v219 = vld [vmem:[%s1 + $0x5e8] sm:$0xff]
  %v220 = vld [vmem:[%s1 + $0x5f0] sm:$0xff]
  %v221 = vld [vmem:[%s1 + $0x5f8] sm:$0xff]
  %v222 = vld [vmem:[%s1 + $0x600] sm:$0xff]
  %v223 = vld [vmem:[%s1 + $0x608] sm:$0xff]
  %v224 = vld [vmem:[%s1 + $0x610] sm:$0xff]
  %v225 = vld [vmem:[%s1 + $0x618] sm:$0xff]
  %v226 = vld [vmem:[%s1 + $0x620] sm:$0xff]
  %v227 = vld [vmem:[%s1 + $0x628] sm:$0xff]
  %v228 = vld [vmem:[%s1 + $0x630] sm:$0xff]
  %v229 = vld [vmem:[%s1 + $0x638] sm:$0xff]
  %v230 = vld [vmem:[%s1 + $0x640] sm:$0xff]
  %v231 = vld [vmem:[%s1 + $0x648] sm:$0xff]
  %v232 = vld [vmem:[%s1 + $0x650] sm:$0xff]
  %v233 = vld [vmem:[%s1 + $0x658] sm:$0xff]
  %v234 = vld [vmem:[%s1 + $0x660] sm:$0xff]
  %v235 = vld [vmem:[%s1 + $0x668] sm:$0xff]
  %v236 = vld [vmem:[%s1 + $0x670] sm:$0xff]
  %v237 = vld [vmem:[%s1 + $0x678] sm:$0xff]
  %v238 = vld [vmem:[%s1 + $0x680] sm:$0xff]
  %v239 = vld [vmem:[%s1 + $0x688] sm:$0xff]
  %v240 = vld [vmem:[%s1 + $0x690] sm:$0xff]
  %v241 = vld [vmem:[%s1 + $0x698] sm:$0xff]
  %v242 = vld [vmem:[%s1 + $0x6a0] sm:$0xff]
  %v243 = vld [vmem:[%s1 + $0x6a8] sm:$0xff]
  %v244 = vld [vmem:[%s1 + $0x6b0] sm:$0xff]
  %v245 = vld [vmem:[%s1 + $0x6b8] sm:$0xff]
  %v246 = vld [vmem:[%s1 + $0x6c0] sm:$0xff]
  %v247 = vld [vmem:[%s1 + $0x6c8] sm:$0xff]
  %v248 = vld [vmem:[%s1 + $0x6d0] sm:$0xff]
  %v249 = vld [vmem:[%s1 + $0x6d8] sm:$0xff]
  %v250 = vld [vmem:[%s1 + $0x6e0] sm:$0xff]
  %v251 = vld [vmem:[%s1 + $0x6e8] sm:$0xff]
  %v252 = vld [vmem:[%s1 + $0x6f0] sm:$0xff]
  %v253 = vld [vmem:[%s1 + $0x6f8] sm:$0xff]
  %v254 = vld [vmem:[%s1 + $0x700] sm:$0xff]
  %v255 = vld [vmem:[%s1 + $0x708] sm:$0xff]
  %v256 = vld [vmem:[%s1 + $0x710] sm:$0xff]
  %v257 = vld [vmem:[%s1 + $0x718] sm:$0xff]
  %v258 = vld [vmem:[%s1 + $0x720] sm:$0xff]
  %v259 = vld [vmem:[%s1 + $0x728] sm:$0xff]
  %v260 = vld [vmem:[%s1 + $0x730] sm:$0xff]
  %v261 = vld [vmem:[%s1 + $0x738] sm:$0xff]
  %v262 = vld [vmem:[%s1 + $0x740] sm:$0xff]
  %v263 = vld [vmem:[%s1 + $0x748] sm:$0xff]
  %v264 = vld [vmem:[%s1 + $0x750] sm:$0xff]
  %v265 = vld [vmem:[%s1 + $0x758] sm:$0xff]
  %v266 = vld [vmem:[%s1 + $0x760] sm:$0xff]
  %v267 = vld [vmem:[%s1 + $0x768] sm:$0xff]
  %v268 = vld [vmem:[%s1 + $0x770] sm:$0xff]
  %v269 = vld [vmem:[%s1 + $0x778] sm:$0xff]
  %v270 = vld [vmem:[%s1 + $0x780] sm:$0xff]
  %v271 = vld [vmem:[%s1 + $0x788] sm:$0xff]
  %v272 = vld [vmem:[%s1 + $0x790] sm:$0xff]
  %v273 = vld [vmem:[%s1 + $0x798] sm:$0xff]
  %v274 = vld [vmem:[%s1 + $0x7a0] sm:$0xff]
  %v275 = vld [vmem:[%s1 + $0x7a8] sm:$0xff]
  %v276 = vld [vmem:[%s1 + $0x7b0] sm:$0xff]
  %v277 = vld [vmem:[%s1 + $0x7b8] sm:$0xff]
  %v278 = vld [vmem:[%s1 + $0x7c0] sm:$0xff]
  %v279 = vld [vmem:[%s1 + $0x7c8] sm:$0xff]
  %v280 = vld [vmem:[%s1 + $0x7d0] sm:$0xff]
  %v281 = vld [vmem:[%s1 + $0x7d8] sm:$0xff]
  %v282 = vld [vmem:[%s1 + $0x7e0] sm:$0xff]
  %v283 = vld [vmem:[%s1 + $0x7e8] sm:$0xff]
  %v284 = vld [vmem:[%s1 + $0x7f0] sm:$0xff]
  %v285 = vld [vmem:[%s1 + $0x7f8] sm:$0xff]
  %v286 = vld [vmem:[%s1 + $0x800] sm:$0xff]
  %v287 = vld [vmem:[%s1 + $0x808] sm:$0xff]
  %v288 = vld [vmem:[%s1 + $0x810] sm:$0xff]
  %v289 = vld [vmem:[%s1 + $0x818] sm:$0xff]
  %v290 = vld [vmem:[%s1 + $0x820] sm:$0xff]
  %v291 = vld [vmem:[%s1 + $0x828] sm:$0xff]
  %v292 = vld [vmem:[%s1 + $0x830] sm:$0xff]
  %v293 = vld [vmem:[%s1 + $0x838] sm:$0xff]
  %v294 = vld [vmem:[%s1 + $0x840] sm:$0xff]
  %v295 = vld [vmem:[%s1 + $0x848] sm:$0xff]
  %v296 = vld [vmem:[%s1 + $0x850] sm:$0xff]
  %v297 = vld [vmem:[%s1 + $0x858] sm:$0xff]
  %v298 = vld [vmem:[%s1 + $0x860] sm:$0xff]
  %v299 = vld [vmem:[%s1 + $0x868] sm:$0xff]
  %v300 = vld [vmem:[%s1 + $0x870] sm:$0xff]
  %v301 = vld [vmem:[%s1 + $0x878] sm:$0xff]
  %v302 = vld [vmem:[%s1 + $0x880] sm:$0xff]
  %v303 = vld [vmem:[%s1 + $0x888] sm:$0xff]
  %v304 = vld [vmem:[%s1 + $0x890] sm:$0xff]
  %v305 = vld [vmem:[%s1 + $0x898] sm:$0xff]
  %v306 = vld [vmem:[%s1 + $0x8a0] sm:$0xff]
  %v307 = vld [vmem:[%s1 + $0x8a8] sm:$0xff]
  %v308 = vld [vmem:[%s1 + $0x8b0] sm:$0xff]
  %v309 = vld [vmem:[%s1 + $0x8b8] sm:$0xff]
  %v310 = vld [vmem:[%s1 + $0x8c0] sm:$0xff]
  %v311 = vld [vmem:[%s1 + $0x8c8] sm:$0xff]
  %v312 = vld [vmem:[%s1 + $0x8d0] sm:$0xff]
  %v313 = vld [vmem:[%s1 + $0x8d8] sm:$0xff]
  %v314 = vld [vmem:[%s1 + $0x8e0] sm:$0xff]
  %v315 = vld [vmem:[%s1 + $0x8e8] sm:$0xff]
  %v316 = vld [vmem:[%s1 + $0x8f0] sm:$0xff]
  %v317 = vld [vmem:[%s1 + $0x8f8] sm:$0xff]
  %v318 = vld [vmem:[%s1 + $0x900] sm:$0xff]
  %v319 = vld [vmem:[%s1 + $0x908] sm:$0xff]
  %v320 = vld [vmem:[%s1 + $0x910] sm:$0xff]
  %v321 = vld [vmem:[%s1 + $0x918] sm:$0xff]
  %v322 = vld [vmem:[%s1 + $0x920] sm:$0xff]
  %v323 = vld [vmem:[%s1 + $0x928] sm:$0xff]
  %v324 = vld [vmem:[%s1 + $0x930] sm:$0xff]
  %v325 = vld [vmem:[%s1 + $0x938] sm:$0xff]
  %v326 = vld [vmem:[%s1 + $0x940] sm:$0xff]
  %v327 = vld [vmem:[%s1 + $0x948] sm:$0xff]
  %v328 = vld [vmem:[%s1 + $0x950] sm:$0xff]
  %v329 = vld [vmem:[%s1 + $0x958] sm:$0xff]
  %v330 = vld [vmem:[%s1 + $0x960] sm:$0xff]
  %v331 = vld [vmem:[%s1 + $0x968] sm:$0xff]
  %v332 = vld [vmem:[%s1 + $0x970] sm:$0xff]
  %v333 = vld [vmem:[%s1 + $0x978] sm:$0xff]
  %v334 = vld [vmem:[%s1 + $0x980] sm:$0xff]
  %v335 = vld [vmem:[%s1 + $0x988] sm:$0xff]
  %v336 = vld [vmem:[%s1 + $0x990] sm:$0xff]
  %v337 = vld [vmem:[%s1 + $0x998] sm:$0xff]
  %v338 = vld [vmem:[%s1 + $0x9a0] sm:$0xff]
  %v339 = vld [vmem:[%s1 + $0x9a8] sm:$0xff]
  %v340 = vld [vmem:[%s1 + $0x9b0] sm:$0xff]
  %v341 = vld [vmem:[%s1 + $0x9b8] sm:$0xff]
  %v342 = vld [vmem:[%s1 + $0x9c0] sm:$0xff]
  %v343 = vld [vmem:[%s1 + $0x9c8] sm:$0xff]
  %v344 = vld [vmem:[%s1 + $0x9d0] sm:$0xff]
  %v345 = vld [vmem:[%s1 + $0x9d8] sm:$0xff]
  %v346 = vld [vmem:[%s1 + $0x9e0] sm:$0xff]
  %v347 = vld [vmem:[%s1 + $0x9e8] sm:$0xff]
  %v348 = vld [vmem:[%s1 + $0x9f0] sm:$0xff]
  %v349 = vld [vmem:[%s1 + $0x9f8] sm:$0xff]
  %v350 = vld [vmem:[%s1 + $0xa00] sm:$0xff]
  %v351 = vld [vmem:[%s1 + $0xa08] sm:$0xff]
  %v352 = vld [vmem:[%s1 + $0xa10] sm:$0xff]
  %v353 = vld [vmem:[%s1 + $0xa18] sm:$0xff]
  %v354 = vld [vmem:[%s1 + $0xa20] sm:$0xff]
  %v355 = vld [vmem:[%s1 + $0xa28] sm:$0xff]
  %v356 = vld [vmem:[%s1 + $0xa30] sm:$0xff]
  %v357 = vld [vmem:[%s1 + $0xa38] sm:$0xff]
  %v358 = vld [vmem:[%s1 + $0xa40] sm:$0xff]
  %v359 = vld [vmem:[%s1 + $0xa48] sm:$0xff]
  %v360 = vld [vmem:[%s1 + $0xa50] sm:$0xff]
  %v361 = vld [vmem:[%s1 + $0xa58] sm:$0xff]
  %v362 = vld [vmem:[%s1 + $0xa60] sm:$0xff]
  %v363 = vld [vmem:[%s1 + $0xa68] sm:$0xff]
  %v364 = vld [vmem:[%s1 + $0xa70] sm:$0xff]
  %v365 = vld [vmem:[%s1 + $0xa78] sm:$0xff]
  %v366 = vld [vmem:[%s1 + $0xa80] sm:$0xff]
  %v367 = vld [vmem:[%s1 + $0xa88] sm:$0xff]
  %v368 = vld [vmem:[%s1 + $0xa90] sm:$0xff]
  %v369 = vld [vmem:[%s1 + $0xa98] sm:$0xff]
  %v370 = vld [vmem:[%s1 + $0xaa0] sm:$0xff]
  %v371 = vld [vmem:[%s1 + $0xaa8] sm:$0xff]
  %v372 = vld [vmem:[%s1 + $0xab0] sm:$0xff]
  %v373 = vld [vmem:[%s1 + $0xab8] sm:$0xff]
  %v374 = vld [vmem:[%s1 + $0xac0] sm:$0xff]
  %v375 = vld [vmem:[%s1 + $0xac8] sm:$0xff]
  %v376 = vld [vmem:[%s1 + $0xad0] sm:$0xff]
  %v377 = vld [vmem:[%s1 + $0xad8] sm:$0xff]
  %v378 = vld [vmem:[%s1 + $0xae0] sm:$0xff]
  %v379 = vld [vmem:[%s1 + $0xae8] sm:$0xff]
  %v380 = vld [vmem:[%s1 + $0xaf0] sm:$0xff]
  %v381 = vld [vmem:[%s1 + $0xaf8] sm:$0xff]
  %v382 = vld [vmem:[%s1 + $0xb00] sm:$0xff]
  %v383 = vld [vmem:[%s1 + $0xb08] sm:$0xff]
  %v384 = vld [vmem:[%s1 + $0xb10] sm:$0xff]
  %v385 = vld [vmem:[%s1 + $0xb18] sm:$0xff]
  %v386 = vld [vmem:[%s1 + $0xb20] sm:$0xff]
  %v387 = vld [vmem:[%s1 + $0xb28] sm:$0xff]
  %v388 = vld [vmem:[%s1 + $0xb30] sm:$0xff]
  %v389 = vld [vmem:[%s1 + $0xb38] sm:$0xff]
  %v390 = vld [vmem:[%s1 + $0xb40] sm:$0xff]
  %v391 = vld [vmem:[%s1 + $0xb48] sm:$0xff]
  %v392 = vld [vmem:[%s1 + $0xb50] sm:$0xff]
  %v393 = vld [vmem:[%s1 + $0xb58] sm:$0xff]
  %v394 = vld [vmem:[%s1 + $0xb60] sm:$0xff]
  %v395 = vld [vmem:[%s1 + $0xb68] sm:$0xff]
  %v396 = vld [vmem:[%s1 + $0xb70] sm:$0xff]
  %v397 = vld [vmem:[%s1 + $0xb78] sm:$0xff]
  %v398 = vld [vmem:[%s1 + $0xb80] sm:$0xff]
  %v399 = vld [vmem:[%s1 + $0xb88] sm:$0xff]
  %v400 = vld [vmem:[%s1 + $0xb90] sm:$0xff]
  %v401 = vld [vmem:[%s1 + $0xb98] sm:$0xff]
  %v402 = vld [vmem:[%s1 + $0xba0] sm:$0xff]
  %v403 = vld [vmem:[%s1 + $0xba8] sm:$0xff]
  %v404 = vld [vmem:[%s1 + $0xbb0] sm:$0xff]
  %v405 = vld [vmem:[%s1 + $0xbb8] sm:$0xff]
  %v406 = vld [vmem:[%s1 + $0xbc0] sm:$0xff]
  %v407 = vld [vmem:[%s1 + $0xbc8] sm:$0xff]
  %v408 = vld [vmem:[%s1 + $0xbd0] sm:$0xff]
  %v409 = vld [vmem:[%s1 + $0xbd8] sm:$0xff]
  %v410 = vld [vmem:[%s1 + $0xbe0] sm:$0xff]
  %v411 = vld [vmem:[%s1 + $0xbe8] sm:$0xff]
  %v412 = vld [vmem:[%s1 + $0xbf0] sm:$0xff]
  %v413 = vld [vmem:[%s1 + $0xbf8] sm:$0xff]
  %v414 = vld [vmem:[%s2] sm:$0x3f]
  %v416 = vlaneseq
  %v417 = vshrl.u32 %v416, 7
  %v418 = vsub.s32 0, %v417
  %v419 = vrot.slane %v414, %v418
  %v420 = vlaneseq
  %v421 = vshrl.u32 %v420, 7
  %v422 = vsub.s32 1, %v421
  %v423 = vrot.slane %v414, %v422
  %v424 = vlaneseq
  %v425 = vshrl.u32 %v424, 7
  %v426 = vsub.s32 2, %v425
  %v427 = vrot.slane %v414, %v426
  %v428 = vlaneseq
  %v429 = vshrl.u32 %v428, 7
  %v430 = vsub.s32 3, %v429
  %v431 = vrot.slane %v414, %v430
  %v432 = vlaneseq
  %v433 = vshrl.u32 %v432, 7
  %v434 = vsub.s32 4, %v433
  %v435 = vrot.slane %v414, %v434
  %v436 = vlaneseq
  %v437 = vshrl.u32 %v436, 7
  %v438 = vsub.s32 5, %v437
  %v439 = vrot.slane %v414, %v438
  %v830 = vunpack.c.l.b16 %v30
  %v831 = vunpack.c.h.b16 %v30
  %v832 = vunpack.c.l.b16 %v31
  %v833 = vunpack.c.h.b16 %v31
  %v834 = vunpack.c.l.b16 %v32
  %v835 = vunpack.c.h.b16 %v32
  %v836 = vunpack.c.l.b16 %v33
  %v837 = vunpack.c.h.b16 %v33
  %v838 = vunpack.c.l.b16 %v34
  %v839 = vunpack.c.h.b16 %v34
  %v840 = vunpack.c.l.b16 %v35
  %v841 = vunpack.c.h.b16 %v35
  %v842 = vunpack.c.l.b16 %v36
  %v843 = vunpack.c.h.b16 %v36
  %v844 = vunpack.c.l.b16 %v37
  %v845 = vunpack.c.h.b16 %v37
  %v846 = vunpack.c.l.b16 %v38
  %v847 = vunpack.c.h.b16 %v38
  %v848 = vunpack.c.l.b16 %v39
  %v849 = vunpack.c.h.b16 %v39
  %v850 = vunpack.c.l.b16 %v40
  %v851 = vunpack.c.h.b16 %v40
  %v852 = vunpack.c.l.b16 %v41
  %v853 = vunpack.c.h.b16 %v41
  %v854 = vunpack.c.l.b16 %v42
  %v855 = vunpack.c.h.b16 %v42
  %v856 = vunpack.c.l.b16 %v43
  %v857 = vunpack.c.h.b16 %v43
  %v858 = vunpack.c.l.b16 %v44
  %v859 = vunpack.c.h.b16 %v44
  %v860 = vunpack.c.l.b16 %v45
  %v861 = vunpack.c.h.b16 %v45
  %v862 = vunpack.c.l.b16 %v46
  %v863 = vunpack.c.h.b16 %v46
  %v864 = vunpack.c.l.b16 %v47
  %v865 = vunpack.c.h.b16 %v47
  %v866 = vunpack.c.l.b16 %v48
  %v867 = vunpack.c.h.b16 %v48
  %v868 = vunpack.c.l.b16 %v49
  %v869 = vunpack.c.h.b16 %v49
  %v870 = vunpack.c.l.b16 %v50
  %v871 = vunpack.c.h.b16 %v50
  %v872 = vunpack.c.l.b16 %v51
  %v873 = vunpack.c.h.b16 %v51
  %v874 = vunpack.c.l.b16 %v52
  %v875 = vunpack.c.h.b16 %v52
  %v876 = vunpack.c.l.b16 %v53
  %v877 = vunpack.c.h.b16 %v53
  %v878 = vunpack.c.l.b16 %v54
  %v879 = vunpack.c.h.b16 %v54
  %v880 = vunpack.c.l.b16 %v55
  %v881 = vunpack.c.h.b16 %v55
  %v882 = vunpack.c.l.b16 %v56
  %v883 = vunpack.c.h.b16 %v56
  %v884 = vunpack.c.l.b16 %v57
  %v885 = vunpack.c.h.b16 %v57
  %v886 = vunpack.c.l.b16 %v58
  %v887 = vunpack.c.h.b16 %v58
  %v888 = vunpack.c.l.b16 %v59
  %v889 = vunpack.c.h.b16 %v59
  %v890 = vunpack.c.l.b16 %v60
  %v891 = vunpack.c.h.b16 %v60
  %v892 = vunpack.c.l.b16 %v61
  %v893 = vunpack.c.h.b16 %v61
  %v894 = vunpack.c.l.b16 %v62
  %v895 = vunpack.c.h.b16 %v62
  %v896 = vunpack.c.l.b16 %v63
  %v897 = vunpack.c.h.b16 %v63
  %v898 = vunpack.c.l.b16 %v64
  %v899 = vunpack.c.h.b16 %v64
  %v900 = vunpack.c.l.b16 %v65
  %v901 = vunpack.c.h.b16 %v65
  %v902 = vunpack.c.l.b16 %v66
  %v903 = vunpack.c.h.b16 %v66
  %v904 = vunpack.c.l.b16 %v67
  %v905 = vunpack.c.h.b16 %v67
  %v906 = vunpack.c.l.b16 %v68
  %v907 = vunpack.c.h.b16 %v68
  %v908 = vunpack.c.l.b16 %v69
  %v909 = vunpack.c.h.b16 %v69
  %v910 = vunpack.c.l.b16 %v70
  %v911 = vunpack.c.h.b16 %v70
  %v912 = vunpack.c.l.b16 %v71
  %v913 = vunpack.c.h.b16 %v71
  %v914 = vunpack.c.l.b16 %v72
  %v915 = vunpack.c.h.b16 %v72
  %v916 = vunpack.c.l.b16 %v73
  %v917 = vunpack.c.h.b16 %v73
  %v918 = vunpack.c.l.b16 %v74
  %v919 = vunpack.c.h.b16 %v74
  %v920 = vunpack.c.l.b16 %v75
  %v921 = vunpack.c.h.b16 %v75
  %v922 = vunpack.c.l.b16 %v76
  %v923 = vunpack.c.h.b16 %v76
  %v924 = vunpack.c.l.b16 %v77
  %v925 = vunpack.c.h.b16 %v77
  %v926 = vunpack.c.l.b16 %v78
  %v927 = vunpack.c.h.b16 %v78
  %v928 = vunpack.c.l.b16 %v79
  %v929 = vunpack.c.h.b16 %v79
  %v930 = vunpack.c.l.b16 %v80
  %v931 = vunpack.c.h.b16 %v80
  %v932 = vunpack.c.l.b16 %v81
  %v933 = vunpack.c.h.b16 %v81
  %v934 = vunpack.c.l.b16 %v82
  %v935 = vunpack.c.h.b16 %v82
  %v936 = vunpack.c.l.b16 %v83
  %v937 = vunpack.c.h.b16 %v83
  %v938 = vunpack.c.l.b16 %v84
  %v939 = vunpack.c.h.b16 %v84
  %v940 = vunpack.c.l.b16 %v85
  %v941 = vunpack.c.h.b16 %v85
  %v942 = vunpack.c.l.b16 %v86
  %v943 = vunpack.c.h.b16 %v86
  %v944 = vunpack.c.l.b16 %v87
  %v945 = vunpack.c.h.b16 %v87
  %v946 = vunpack.c.l.b16 %v88
  %v947 = vunpack.c.h.b16 %v88
  %v948 = vunpack.c.l.b16 %v89
  %v949 = vunpack.c.h.b16 %v89
  %v950 = vunpack.c.l.b16 %v90
  %v951 = vunpack.c.h.b16 %v90
  %v952 = vunpack.c.l.b16 %v91
  %v953 = vunpack.c.h.b16 %v91
  %v954 = vunpack.c.l.b16 %v92
  %v955 = vunpack.c.h.b16 %v92
  %v956 = vunpack.c.l.b16 %v93
  %v957 = vunpack.c.h.b16 %v93
  %v958 = vunpack.c.l.b16 %v94
  %v959 = vunpack.c.h.b16 %v94
  %v960 = vunpack.c.l.b16 %v95
  %v961 = vunpack.c.h.b16 %v95
  %v962 = vunpack.c.l.b16 %v96
  %v963 = vunpack.c.h.b16 %v96
  %v964 = vunpack.c.l.b16 %v97
  %v965 = vunpack.c.h.b16 %v97
  %v966 = vunpack.c.l.b16 %v98
  %v967 = vunpack.c.h.b16 %v98
  %v968 = vunpack.c.l.b16 %v99
  %v969 = vunpack.c.h.b16 %v99
  %v970 = vunpack.c.l.b16 %v100
  %v971 = vunpack.c.h.b16 %v100
  %v972 = vunpack.c.l.b16 %v101
  %v973 = vunpack.c.h.b16 %v101
  %v974 = vunpack.c.l.b16 %v102
  %v975 = vunpack.c.h.b16 %v102
  %v976 = vunpack.c.l.b16 %v103
  %v977 = vunpack.c.h.b16 %v103
  %v978 = vunpack.c.l.b16 %v104
  %v979 = vunpack.c.h.b16 %v104
  %v980 = vunpack.c.l.b16 %v105
  %v981 = vunpack.c.h.b16 %v105
  %v982 = vunpack.c.l.b16 %v106
  %v983 = vunpack.c.h.b16 %v106
  %v984 = vunpack.c.l.b16 %v107
  %v985 = vunpack.c.h.b16 %v107
  %v986 = vunpack.c.l.b16 %v108
  %v987 = vunpack.c.h.b16 %v108
  %v988 = vunpack.c.l.b16 %v109
  %v989 = vunpack.c.h.b16 %v109
  %v990 = vunpack.c.l.b16 %v110
  %v991 = vunpack.c.h.b16 %v110
  %v992 = vunpack.c.l.b16 %v111
  %v993 = vunpack.c.h.b16 %v111
  %v994 = vunpack.c.l.b16 %v112
  %v995 = vunpack.c.h.b16 %v112
  %v996 = vunpack.c.l.b16 %v113
  %v997 = vunpack.c.h.b16 %v113
  %v998 = vunpack.c.l.b16 %v114
  %v999 = vunpack.c.h.b16 %v114
  %v1000 = vunpack.c.l.b16 %v115
  %v1001 = vunpack.c.h.b16 %v115
  %v1002 = vunpack.c.l.b16 %v116
  %v1003 = vunpack.c.h.b16 %v116
  %v1004 = vunpack.c.l.b16 %v117
  %v1005 = vunpack.c.h.b16 %v117
  %v1006 = vunpack.c.l.b16 %v118
  %v1007 = vunpack.c.h.b16 %v118
  %v1008 = vunpack.c.l.b16 %v119
  %v1009 = vunpack.c.h.b16 %v119
  %v1010 = vunpack.c.l.b16 %v120
  %v1011 = vunpack.c.h.b16 %v120
  %v1012 = vunpack.c.l.b16 %v121
  %v1013 = vunpack.c.h.b16 %v121
  %v1014 = vunpack.c.l.b16 %v122
  %v1015 = vunpack.c.h.b16 %v122
  %v1016 = vunpack.c.l.b16 %v123
  %v1017 = vunpack.c.h.b16 %v123
  %v1018 = vunpack.c.l.b16 %v124
  %v1019 = vunpack.c.h.b16 %v124
  %v1020 = vunpack.c.l.b16 %v125
  %v1021 = vunpack.c.h.b16 %v125
  %v1022 = vunpack.c.l.b16 %v126
  %v1023 = vunpack.c.h.b16 %v126
  %v1024 = vunpack.c.l.b16 %v127
  %v1025 = vunpack.c.h.b16 %v127
  %v1026 = vunpack.c.l.b16 %v128
  %v1027 = vunpack.c.h.b16 %v128
  %v1028 = vunpack.c.l.b16 %v129
  %v1029 = vunpack.c.h.b16 %v129
  %v1030 = vunpack.c.l.b16 %v130
  %v1031 = vunpack.c.h.b16 %v130
  %v1032 = vunpack.c.l.b16 %v131
  %v1033 = vunpack.c.h.b16 %v131
  %v1034 = vunpack.c.l.b16 %v132
  %v1035 = vunpack.c.h.b16 %v132
  %v1036 = vunpack.c.l.b16 %v133
  %v1037 = vunpack.c.h.b16 %v133
  %v1038 = vunpack.c.l.b16 %v134
  %v1039 = vunpack.c.h.b16 %v134
  %v1040 = vunpack.c.l.b16 %v135
  %v1041 = vunpack.c.h.b16 %v135
  %v1042 = vunpack.c.l.b16 %v136
  %v1043 = vunpack.c.h.b16 %v136
  %v1044 = vunpack.c.l.b16 %v137
  %v1045 = vunpack.c.h.b16 %v137
  %v1046 = vunpack.c.l.b16 %v138
  %v1047 = vunpack.c.h.b16 %v138
  %v1048 = vunpack.c.l.b16 %v139
  %v1049 = vunpack.c.h.b16 %v139
  %v1050 = vunpack.c.l.b16 %v140
  %v1051 = vunpack.c.h.b16 %v140
  %v1052 = vunpack.c.l.b16 %v141
  %v1053 = vunpack.c.h.b16 %v141
  %v1054 = vunpack.c.l.b16 %v142
  %v1055 = vunpack.c.h.b16 %v142
  %v1056 = vunpack.c.l.b16 %v143
  %v1057 = vunpack.c.h.b16 %v143
  %v1058 = vunpack.c.l.b16 %v144
  %v1059 = vunpack.c.h.b16 %v144
  %v1060 = vunpack.c.l.b16 %v145
  %v1061 = vunpack.c.h.b16 %v145
  %v1062 = vunpack.c.l.b16 %v146
  %v1063 = vunpack.c.h.b16 %v146
  %v1064 = vunpack.c.l.b16 %v147
  %v1065 = vunpack.c.h.b16 %v147
  %v1066 = vunpack.c.l.b16 %v148
  %v1067 = vunpack.c.h.b16 %v148
  %v1068 = vunpack.c.l.b16 %v149
  %v1069 = vunpack.c.h.b16 %v149
  %v1070 = vunpack.c.l.b16 %v150
  %v1071 = vunpack.c.h.b16 %v150
  %v1072 = vunpack.c.l.b16 %v151
  %v1073 = vunpack.c.h.b16 %v151
  %v1074 = vunpack.c.l.b16 %v152
  %v1075 = vunpack.c.h.b16 %v152
  %v1076 = vunpack.c.l.b16 %v153
  %v1077 = vunpack.c.h.b16 %v153
  %v1078 = vunpack.c.l.b16 %v154
  %v1079 = vunpack.c.h.b16 %v154
  %v1080 = vunpack.c.l.b16 %v155
  %v1081 = vunpack.c.h.b16 %v155
  %v1082 = vunpack.c.l.b16 %v156
  %v1083 = vunpack.c.h.b16 %v156
  %v1084 = vunpack.c.l.b16 %v157
  %v1085 = vunpack.c.h.b16 %v157
  %v1086 = vunpack.c.l.b16 %v158
  %v1087 = vunpack.c.h.b16 %v158
  %v1088 = vunpack.c.l.b16 %v159
  %v1089 = vunpack.c.h.b16 %v159
  %v1090 = vunpack.c.l.b16 %v160
  %v1091 = vunpack.c.h.b16 %v160
  %v1092 = vunpack.c.l.b16 %v161
  %v1093 = vunpack.c.h.b16 %v161
  %v1094 = vunpack.c.l.b16 %v162
  %v1095 = vunpack.c.h.b16 %v162
  %v1096 = vunpack.c.l.b16 %v163
  %v1097 = vunpack.c.h.b16 %v163
  %v1098 = vunpack.c.l.b16 %v164
  %v1099 = vunpack.c.h.b16 %v164
  %v1100 = vunpack.c.l.b16 %v165
  %v1101 = vunpack.c.h.b16 %v165
  %v1102 = vunpack.c.l.b16 %v166
  %v1103 = vunpack.c.h.b16 %v166
  %v1104 = vunpack.c.l.b16 %v167
  %v1105 = vunpack.c.h.b16 %v167
  %v1106 = vunpack.c.l.b16 %v168
  %v1107 = vunpack.c.h.b16 %v168
  %v1108 = vunpack.c.l.b16 %v169
  %v1109 = vunpack.c.h.b16 %v169
  %v1110 = vunpack.c.l.b16 %v170
  %v1111 = vunpack.c.h.b16 %v170
  %v1112 = vunpack.c.l.b16 %v171
  %v1113 = vunpack.c.h.b16 %v171
  %v1114 = vunpack.c.l.b16 %v172
  %v1115 = vunpack.c.h.b16 %v172
  %v1116 = vunpack.c.l.b16 %v173
  %v1117 = vunpack.c.h.b16 %v173
  %v1118 = vunpack.c.l.b16 %v174
  %v1119 = vunpack.c.h.b16 %v174
  %v1120 = vunpack.c.l.b16 %v175
  %v1121 = vunpack.c.h.b16 %v175
  %v1122 = vunpack.c.l.b16 %v176
  %v1123 = vunpack.c.h.b16 %v176
  %v1124 = vunpack.c.l.b16 %v177
  %v1125 = vunpack.c.h.b16 %v177
  %v1126 = vunpack.c.l.b16 %v178
  %v1127 = vunpack.c.h.b16 %v178
  %v1128 = vunpack.c.l.b16 %v179
  %v1129 = vunpack.c.h.b16 %v179
  %v1130 = vunpack.c.l.b16 %v180
  %v1131 = vunpack.c.h.b16 %v180
  %v1132 = vunpack.c.l.b16 %v181
  %v1133 = vunpack.c.h.b16 %v181
  %v1134 = vunpack.c.l.b16 %v182
  %v1135 = vunpack.c.h.b16 %v182
  %v1136 = vunpack.c.l.b16 %v183
  %v1137 = vunpack.c.h.b16 %v183
  %v1138 = vunpack.c.l.b16 %v184
  %v1139 = vunpack.c.h.b16 %v184
  %v1140 = vunpack.c.l.b16 %v185
  %v1141 = vunpack.c.h.b16 %v185
  %v1142 = vunpack.c.l.b16 %v186
  %v1143 = vunpack.c.h.b16 %v186
  %v1144 = vunpack.c.l.b16 %v187
  %v1145 = vunpack.c.h.b16 %v187
  %v1146 = vunpack.c.l.b16 %v188
  %v1147 = vunpack.c.h.b16 %v188
  %v1148 = vunpack.c.l.b16 %v189
  %v1149 = vunpack.c.h.b16 %v189
  %v1150 = vunpack.c.l.b16 %v190
  %v1151 = vunpack.c.h.b16 %v190
  %v1152 = vunpack.c.l.b16 %v191
  %v1153 = vunpack.c.h.b16 %v191
  %v1154 = vunpack.c.l.b16 %v192
  %v1155 = vunpack.c.h.b16 %v192
  %v1156 = vunpack.c.l.b16 %v193
  %v1157 = vunpack.c.h.b16 %v193
  %v1158 = vunpack.c.l.b16 %v194
  %v1159 = vunpack.c.h.b16 %v194
  %v1160 = vunpack.c.l.b16 %v195
  %v1161 = vunpack.c.h.b16 %v195
  %v1162 = vunpack.c.l.b16 %v196
  %v1163 = vunpack.c.h.b16 %v196
  %v1164 = vunpack.c.l.b16 %v197
  %v1165 = vunpack.c.h.b16 %v197
  %v1166 = vunpack.c.l.b16 %v198
  %v1167 = vunpack.c.h.b16 %v198
  %v1168 = vunpack.c.l.b16 %v199
  %v1169 = vunpack.c.h.b16 %v199
  %v1170 = vunpack.c.l.b16 %v200
  %v1171 = vunpack.c.h.b16 %v200
  %v1172 = vunpack.c.l.b16 %v201
  %v1173 = vunpack.c.h.b16 %v201
  %v1174 = vunpack.c.l.b16 %v202
  %v1175 = vunpack.c.h.b16 %v202
  %v1176 = vunpack.c.l.b16 %v203
  %v1177 = vunpack.c.h.b16 %v203
  %v1178 = vunpack.c.l.b16 %v204
  %v1179 = vunpack.c.h.b16 %v204
  %v1180 = vunpack.c.l.b16 %v205
  %v1181 = vunpack.c.h.b16 %v205
  %v1182 = vunpack.c.l.b16 %v206
  %v1183 = vunpack.c.h.b16 %v206
  %v1184 = vunpack.c.l.b16 %v207
  %v1185 = vunpack.c.h.b16 %v207
  %v1186 = vunpack.c.l.b16 %v208
  %v1187 = vunpack.c.h.b16 %v208
  %v1188 = vunpack.c.l.b16 %v209
  %v1189 = vunpack.c.h.b16 %v209
  %v1190 = vunpack.c.l.b16 %v210
  %v1191 = vunpack.c.h.b16 %v210
  %v1192 = vunpack.c.l.b16 %v211
  %v1193 = vunpack.c.h.b16 %v211
  %v1194 = vunpack.c.l.b16 %v212
  %v1195 = vunpack.c.h.b16 %v212
  %v1196 = vunpack.c.l.b16 %v213
  %v1197 = vunpack.c.h.b16 %v213
  %v1198 = vunpack.c.l.b16 %v214
  %v1199 = vunpack.c.h.b16 %v214
  %v1200 = vunpack.c.l.b16 %v215
  %v1201 = vunpack.c.h.b16 %v215
  %v1202 = vunpack.c.l.b16 %v216
  %v1203 = vunpack.c.h.b16 %v216
  %v1204 = vunpack.c.l.b16 %v217
  %v1205 = vunpack.c.h.b16 %v217
  %v1206 = vunpack.c.l.b16 %v218
  %v1207 = vunpack.c.h.b16 %v218
  %v1208 = vunpack.c.l.b16 %v219
  %v1209 = vunpack.c.h.b16 %v219
  %v1210 = vunpack.c.l.b16 %v220
  %v1211 = vunpack.c.h.b16 %v220
  %v1212 = vunpack.c.l.b16 %v221
  %v1213 = vunpack.c.h.b16 %v221
  %v1214 = vunpack.c.l.b16 %v222
  %v1215 = vunpack.c.h.b16 %v222
  %v1216 = vunpack.c.l.b16 %v223
  %v1217 = vunpack.c.h.b16 %v223
  %v1218 = vunpack.c.l.b16 %v224
  %v1219 = vunpack.c.h.b16 %v224
  %v1220 = vunpack.c.l.b16 %v225
  %v1221 = vunpack.c.h.b16 %v225
  %v1222 = vunpack.c.l.b16 %v226
  %v1223 = vunpack.c.h.b16 %v226
  %v1224 = vunpack.c.l.b16 %v227
  %v1225 = vunpack.c.h.b16 %v227
  %v1226 = vunpack.c.l.b16 %v228
  %v1227 = vunpack.c.h.b16 %v228
  %v1228 = vunpack.c.l.b16 %v229
  %v1229 = vunpack.c.h.b16 %v229
  %v1230 = vunpack.c.l.b16 %v230
  %v1231 = vunpack.c.h.b16 %v230
  %v1232 = vunpack.c.l.b16 %v231
  %v1233 = vunpack.c.h.b16 %v231
  %v1234 = vunpack.c.l.b16 %v232
  %v1235 = vunpack.c.h.b16 %v232
  %v1236 = vunpack.c.l.b16 %v233
  %v1237 = vunpack.c.h.b16 %v233
  %v1238 = vunpack.c.l.b16 %v234
  %v1239 = vunpack.c.h.b16 %v234
  %v1240 = vunpack.c.l.b16 %v235
  %v1241 = vunpack.c.h.b16 %v235
  %v1242 = vunpack.c.l.b16 %v236
  %v1243 = vunpack.c.h.b16 %v236
  %v1244 = vunpack.c.l.b16 %v237
  %v1245 = vunpack.c.h.b16 %v237
  %v1246 = vunpack.c.l.b16 %v238
  %v1247 = vunpack.c.h.b16 %v238
  %v1248 = vunpack.c.l.b16 %v239
  %v1249 = vunpack.c.h.b16 %v239
  %v1250 = vunpack.c.l.b16 %v240
  %v1251 = vunpack.c.h.b16 %v240
  %v1252 = vunpack.c.l.b16 %v241
  %v1253 = vunpack.c.h.b16 %v241
  %v1254 = vunpack.c.l.b16 %v242
  %v1255 = vunpack.c.h.b16 %v242
  %v1256 = vunpack.c.l.b16 %v243
  %v1257 = vunpack.c.h.b16 %v243
  %v1258 = vunpack.c.l.b16 %v244
  %v1259 = vunpack.c.h.b16 %v244
  %v1260 = vunpack.c.l.b16 %v245
  %v1261 = vunpack.c.h.b16 %v245
  %v1262 = vunpack.c.l.b16 %v246
  %v1263 = vunpack.c.h.b16 %v246
  %v1264 = vunpack.c.l.b16 %v247
  %v1265 = vunpack.c.h.b16 %v247
  %v1266 = vunpack.c.l.b16 %v248
  %v1267 = vunpack.c.h.b16 %v248
  %v1268 = vunpack.c.l.b16 %v249
  %v1269 = vunpack.c.h.b16 %v249
  %v1270 = vunpack.c.l.b16 %v250
  %v1271 = vunpack.c.h.b16 %v250
  %v1272 = vunpack.c.l.b16 %v251
  %v1273 = vunpack.c.h.b16 %v251
  %v1274 = vunpack.c.l.b16 %v252
  %v1275 = vunpack.c.h.b16 %v252
  %v1276 = vunpack.c.l.b16 %v253
  %v1277 = vunpack.c.h.b16 %v253
  %v1278 = vunpack.c.l.b16 %v254
  %v1279 = vunpack.c.h.b16 %v254
  %v1280 = vunpack.c.l.b16 %v255
  %v1281 = vunpack.c.h.b16 %v255
  %v1282 = vunpack.c.l.b16 %v256
  %v1283 = vunpack.c.h.b16 %v256
  %v1284 = vunpack.c.l.b16 %v257
  %v1285 = vunpack.c.h.b16 %v257
  %v1286 = vunpack.c.l.b16 %v258
  %v1287 = vunpack.c.h.b16 %v258
  %v1288 = vunpack.c.l.b16 %v259
  %v1289 = vunpack.c.h.b16 %v259
  %v1290 = vunpack.c.l.b16 %v260
  %v1291 = vunpack.c.h.b16 %v260
  %v1292 = vunpack.c.l.b16 %v261
  %v1293 = vunpack.c.h.b16 %v261
  %v1294 = vunpack.c.l.b16 %v262
  %v1295 = vunpack.c.h.b16 %v262
  %v1296 = vunpack.c.l.b16 %v263
  %v1297 = vunpack.c.h.b16 %v263
  %v1298 = vunpack.c.l.b16 %v264
  %v1299 = vunpack.c.h.b16 %v264
  %v1300 = vunpack.c.l.b16 %v265
  %v1301 = vunpack.c.h.b16 %v265
  %v1302 = vunpack.c.l.b16 %v266
  %v1303 = vunpack.c.h.b16 %v266
  %v1304 = vunpack.c.l.b16 %v267
  %v1305 = vunpack.c.h.b16 %v267
  %v1306 = vunpack.c.l.b16 %v268
  %v1307 = vunpack.c.h.b16 %v268
  %v1308 = vunpack.c.l.b16 %v269
  %v1309 = vunpack.c.h.b16 %v269
  %v1310 = vunpack.c.l.b16 %v270
  %v1311 = vunpack.c.h.b16 %v270
  %v1312 = vunpack.c.l.b16 %v271
  %v1313 = vunpack.c.h.b16 %v271
  %v1314 = vunpack.c.l.b16 %v272
  %v1315 = vunpack.c.h.b16 %v272
  %v1316 = vunpack.c.l.b16 %v273
  %v1317 = vunpack.c.h.b16 %v273
  %v1318 = vunpack.c.l.b16 %v274
  %v1319 = vunpack.c.h.b16 %v274
  %v1320 = vunpack.c.l.b16 %v275
  %v1321 = vunpack.c.h.b16 %v275
  %v1322 = vunpack.c.l.b16 %v276
  %v1323 = vunpack.c.h.b16 %v276
  %v1324 = vunpack.c.l.b16 %v277
  %v1325 = vunpack.c.h.b16 %v277
  %v1326 = vunpack.c.l.b16 %v278
  %v1327 = vunpack.c.h.b16 %v278
  %v1328 = vunpack.c.l.b16 %v279
  %v1329 = vunpack.c.h.b16 %v279
  %v1330 = vunpack.c.l.b16 %v280
  %v1331 = vunpack.c.h.b16 %v280
  %v1332 = vunpack.c.l.b16 %v281
  %v1333 = vunpack.c.h.b16 %v281
  %v1334 = vunpack.c.l.b16 %v282
  %v1335 = vunpack.c.h.b16 %v282
  %v1336 = vunpack.c.l.b16 %v283
  %v1337 = vunpack.c.h.b16 %v283
  %v1338 = vunpack.c.l.b16 %v284
  %v1339 = vunpack.c.h.b16 %v284
  %v1340 = vunpack.c.l.b16 %v285
  %v1341 = vunpack.c.h.b16 %v285
  %v1342 = vunpack.c.l.b16 %v286
  %v1343 = vunpack.c.h.b16 %v286
  %v1344 = vunpack.c.l.b16 %v287
  %v1345 = vunpack.c.h.b16 %v287
  %v1346 = vunpack.c.l.b16 %v288
  %v1347 = vunpack.c.h.b16 %v288
  %v1348 = vunpack.c.l.b16 %v289
  %v1349 = vunpack.c.h.b16 %v289
  %v1350 = vunpack.c.l.b16 %v290
  %v1351 = vunpack.c.h.b16 %v290
  %v1352 = vunpack.c.l.b16 %v291
  %v1353 = vunpack.c.h.b16 %v291
  %v1354 = vunpack.c.l.b16 %v292
  %v1355 = vunpack.c.h.b16 %v292
  %v1356 = vunpack.c.l.b16 %v293
  %v1357 = vunpack.c.h.b16 %v293
  %v1358 = vunpack.c.l.b16 %v294
  %v1359 = vunpack.c.h.b16 %v294
  %v1360 = vunpack.c.l.b16 %v295
  %v1361 = vunpack.c.h.b16 %v295
  %v1362 = vunpack.c.l.b16 %v296
  %v1363 = vunpack.c.h.b16 %v296
  %v1364 = vunpack.c.l.b16 %v297
  %v1365 = vunpack.c.h.b16 %v297
  %v1366 = vunpack.c.l.b16 %v298
  %v1367 = vunpack.c.h.b16 %v298
  %v1368 = vunpack.c.l.b16 %v299
  %v1369 = vunpack.c.h.b16 %v299
  %v1370 = vunpack.c.l.b16 %v300
  %v1371 = vunpack.c.h.b16 %v300
  %v1372 = vunpack.c.l.b16 %v301
  %v1373 = vunpack.c.h.b16 %v301
  %v1374 = vunpack.c.l.b16 %v302
  %v1375 = vunpack.c.h.b16 %v302
  %v1376 = vunpack.c.l.b16 %v303
  %v1377 = vunpack.c.h.b16 %v303
  %v1378 = vunpack.c.l.b16 %v304
  %v1379 = vunpack.c.h.b16 %v304
  %v1380 = vunpack.c.l.b16 %v305
  %v1381 = vunpack.c.h.b16 %v305
  %v1382 = vunpack.c.l.b16 %v306
  %v1383 = vunpack.c.h.b16 %v306
  %v1384 = vunpack.c.l.b16 %v307
  %v1385 = vunpack.c.h.b16 %v307
  %v1386 = vunpack.c.l.b16 %v308
  %v1387 = vunpack.c.h.b16 %v308
  %v1388 = vunpack.c.l.b16 %v309
  %v1389 = vunpack.c.h.b16 %v309
  %v1390 = vunpack.c.l.b16 %v310
  %v1391 = vunpack.c.h.b16 %v310
  %v1392 = vunpack.c.l.b16 %v311
  %v1393 = vunpack.c.h.b16 %v311
  %v1394 = vunpack.c.l.b16 %v312
  %v1395 = vunpack.c.h.b16 %v312
  %v1396 = vunpack.c.l.b16 %v313
  %v1397 = vunpack.c.h.b16 %v313
  %v1398 = vunpack.c.l.b16 %v314
  %v1399 = vunpack.c.h.b16 %v314
  %v1400 = vunpack.c.l.b16 %v315
  %v1401 = vunpack.c.h.b16 %v315
  %v1402 = vunpack.c.l.b16 %v316
  %v1403 = vunpack.c.h.b16 %v316
  %v1404 = vunpack.c.l.b16 %v317
  %v1405 = vunpack.c.h.b16 %v317
  %v1406 = vunpack.c.l.b16 %v318
  %v1407 = vunpack.c.h.b16 %v318
  %v1408 = vunpack.c.l.b16 %v319
  %v1409 = vunpack.c.h.b16 %v319
  %v1410 = vunpack.c.l.b16 %v320
  %v1411 = vunpack.c.h.b16 %v320
  %v1412 = vunpack.c.l.b16 %v321
  %v1413 = vunpack.c.h.b16 %v321
  %v1414 = vunpack.c.l.b16 %v322
  %v1415 = vunpack.c.h.b16 %v322
  %v1416 = vunpack.c.l.b16 %v323
  %v1417 = vunpack.c.h.b16 %v323
  %v1418 = vunpack.c.l.b16 %v324
  %v1419 = vunpack.c.h.b16 %v324
  %v1420 = vunpack.c.l.b16 %v325
  %v1421 = vunpack.c.h.b16 %v325
  %v1422 = vunpack.c.l.b16 %v326
  %v1423 = vunpack.c.h.b16 %v326
  %v1424 = vunpack.c.l.b16 %v327
  %v1425 = vunpack.c.h.b16 %v327
  %v1426 = vunpack.c.l.b16 %v328
  %v1427 = vunpack.c.h.b16 %v328
  %v1428 = vunpack.c.l.b16 %v329
  %v1429 = vunpack.c.h.b16 %v329
  %v1430 = vunpack.c.l.b16 %v330
  %v1431 = vunpack.c.h.b16 %v330
  %v1432 = vunpack.c.l.b16 %v331
  %v1433 = vunpack.c.h.b16 %v331
  %v1434 = vunpack.c.l.b16 %v332
  %v1435 = vunpack.c.h.b16 %v332
  %v1436 = vunpack.c.l.b16 %v333
  %v1437 = vunpack.c.h.b16 %v333
  %v1438 = vunpack.c.l.b16 %v334
  %v1439 = vunpack.c.h.b16 %v334
  %v1440 = vunpack.c.l.b16 %v335
  %v1441 = vunpack.c.h.b16 %v335
  %v1442 = vunpack.c.l.b16 %v336
  %v1443 = vunpack.c.h.b16 %v336
  %v1444 = vunpack.c.l.b16 %v337
  %v1445 = vunpack.c.h.b16 %v337
  %v1446 = vunpack.c.l.b16 %v338
  %v1447 = vunpack.c.h.b16 %v338
  %v1448 = vunpack.c.l.b16 %v339
  %v1449 = vunpack.c.h.b16 %v339
  %v1450 = vunpack.c.l.b16 %v340
  %v1451 = vunpack.c.h.b16 %v340
  %v1452 = vunpack.c.l.b16 %v341
  %v1453 = vunpack.c.h.b16 %v341
  %v1454 = vunpack.c.l.b16 %v342
  %v1455 = vunpack.c.h.b16 %v342
  %v1456 = vunpack.c.l.b16 %v343
  %v1457 = vunpack.c.h.b16 %v343
  %v1458 = vunpack.c.l.b16 %v344
  %v1459 = vunpack.c.h.b16 %v344
  %v1460 = vunpack.c.l.b16 %v345
  %v1461 = vunpack.c.h.b16 %v345
  %v1462 = vunpack.c.l.b16 %v346
  %v1463 = vunpack.c.h.b16 %v346
  %v1464 = vunpack.c.l.b16 %v347
  %v1465 = vunpack.c.h.b16 %v347
  %v1466 = vunpack.c.l.b16 %v348
  %v1467 = vunpack.c.h.b16 %v348
  %v1468 = vunpack.c.l.b16 %v349
  %v1469 = vunpack.c.h.b16 %v349
  %v1470 = vunpack.c.l.b16 %v350
  %v1471 = vunpack.c.h.b16 %v350
  %v1472 = vunpack.c.l.b16 %v351
  %v1473 = vunpack.c.h.b16 %v351
  %v1474 = vunpack.c.l.b16 %v352
  %v1475 = vunpack.c.h.b16 %v352
  %v1476 = vunpack.c.l.b16 %v353
  %v1477 = vunpack.c.h.b16 %v353
  %v1478 = vunpack.c.l.b16 %v354
  %v1479 = vunpack.c.h.b16 %v354
  %v1480 = vunpack.c.l.b16 %v355
  %v1481 = vunpack.c.h.b16 %v355
  %v1482 = vunpack.c.l.b16 %v356
  %v1483 = vunpack.c.h.b16 %v356
  %v1484 = vunpack.c.l.b16 %v357
  %v1485 = vunpack.c.h.b16 %v357
  %v1486 = vunpack.c.l.b16 %v358
  %v1487 = vunpack.c.h.b16 %v358
  %v1488 = vunpack.c.l.b16 %v359
  %v1489 = vunpack.c.h.b16 %v359
  %v1490 = vunpack.c.l.b16 %v360
  %v1491 = vunpack.c.h.b16 %v360
  %v1492 = vunpack.c.l.b16 %v361
  %v1493 = vunpack.c.h.b16 %v361
  %v1494 = vunpack.c.l.b16 %v362
  %v1495 = vunpack.c.h.b16 %v362
  %v1496 = vunpack.c.l.b16 %v363
  %v1497 = vunpack.c.h.b16 %v363
  %v1498 = vunpack.c.l.b16 %v364
  %v1499 = vunpack.c.h.b16 %v364
  %v1500 = vunpack.c.l.b16 %v365
  %v1501 = vunpack.c.h.b16 %v365
  %v1502 = vunpack.c.l.b16 %v366
  %v1503 = vunpack.c.h.b16 %v366
  %v1504 = vunpack.c.l.b16 %v367
  %v1505 = vunpack.c.h.b16 %v367
  %v1506 = vunpack.c.l.b16 %v368
  %v1507 = vunpack.c.h.b16 %v368
  %v1508 = vunpack.c.l.b16 %v369
  %v1509 = vunpack.c.h.b16 %v369
  %v1510 = vunpack.c.l.b16 %v370
  %v1511 = vunpack.c.h.b16 %v370
  %v1512 = vunpack.c.l.b16 %v371
  %v1513 = vunpack.c.h.b16 %v371
  %v1514 = vunpack.c.l.b16 %v372
  %v1515 = vunpack.c.h.b16 %v372
  %v1516 = vunpack.c.l.b16 %v373
  %v1517 = vunpack.c.h.b16 %v373
  %v1518 = vunpack.c.l.b16 %v374
  %v1519 = vunpack.c.h.b16 %v374
  %v1520 = vunpack.c.l.b16 %v375
  %v1521 = vunpack.c.h.b16 %v375
  %v1522 = vunpack.c.l.b16 %v376
  %v1523 = vunpack.c.h.b16 %v376
  %v1524 = vunpack.c.l.b16 %v377
  %v1525 = vunpack.c.h.b16 %v377
  %v1526 = vunpack.c.l.b16 %v378
  %v1527 = vunpack.c.h.b16 %v378
  %v1528 = vunpack.c.l.b16 %v379
  %v1529 = vunpack.c.h.b16 %v379
  %v1530 = vunpack.c.l.b16 %v380
  %v1531 = vunpack.c.h.b16 %v380
  %v1532 = vunpack.c.l.b16 %v381
  %v1533 = vunpack.c.h.b16 %v381
  %v1534 = vunpack.c.l.b16 %v382
  %v1535 = vunpack.c.h.b16 %v382
  %v1536 = vunpack.c.l.b16 %v383
  %v1537 = vunpack.c.h.b16 %v383
  %v1538 = vunpack.c.l.b16 %v384
  %v1539 = vunpack.c.h.b16 %v384
  %v1540 = vunpack.c.l.b16 %v385
  %v1541 = vunpack.c.h.b16 %v385
  %v1542 = vunpack.c.l.b16 %v386
  %v1543 = vunpack.c.h.b16 %v386
  %v1544 = vunpack.c.l.b16 %v387
  %v1545 = vunpack.c.h.b16 %v387
  %v1546 = vunpack.c.l.b16 %v388
  %v1547 = vunpack.c.h.b16 %v388
  %v1548 = vunpack.c.l.b16 %v389
  %v1549 = vunpack.c.h.b16 %v389
  %v1550 = vunpack.c.l.b16 %v390
  %v1551 = vunpack.c.h.b16 %v390
  %v1552 = vunpack.c.l.b16 %v391
  %v1553 = vunpack.c.h.b16 %v391
  %v1554 = vunpack.c.l.b16 %v392
  %v1555 = vunpack.c.h.b16 %v392
  %v1556 = vunpack.c.l.b16 %v393
  %v1557 = vunpack.c.h.b16 %v393
  %v1558 = vunpack.c.l.b16 %v394
  %v1559 = vunpack.c.h.b16 %v394
  %v1560 = vunpack.c.l.b16 %v395
  %v1561 = vunpack.c.h.b16 %v395
  %v1562 = vunpack.c.l.b16 %v396
  %v1563 = vunpack.c.h.b16 %v396
  %v1564 = vunpack.c.l.b16 %v397
  %v1565 = vunpack.c.h.b16 %v397
  %v1566 = vunpack.c.l.b16 %v398
  %v1567 = vunpack.c.h.b16 %v398
  %v1568 = vunpack.c.l.b16 %v399
  %v1569 = vunpack.c.h.b16 %v399
  %v1570 = vunpack.c.l.b16 %v400
  %v1571 = vunpack.c.h.b16 %v400
  %v1572 = vunpack.c.l.b16 %v401
  %v1573 = vunpack.c.h.b16 %v401
  %v1574 = vunpack.c.l.b16 %v402
  %v1575 = vunpack.c.h.b16 %v402
  %v1576 = vunpack.c.l.b16 %v403
  %v1577 = vunpack.c.h.b16 %v403
  %v1578 = vunpack.c.l.b16 %v404
  %v1579 = vunpack.c.h.b16 %v404
  %v1580 = vunpack.c.l.b16 %v405
  %v1581 = vunpack.c.h.b16 %v405
  %v1582 = vunpack.c.l.b16 %v406
  %v1583 = vunpack.c.h.b16 %v406
  %v1584 = vunpack.c.l.b16 %v407
  %v1585 = vunpack.c.h.b16 %v407
  %v1586 = vunpack.c.l.b16 %v408
  %v1587 = vunpack.c.h.b16 %v408
  %v1588 = vunpack.c.l.b16 %v409
  %v1589 = vunpack.c.h.b16 %v409
  %v1590 = vunpack.c.l.b16 %v410
  %v1591 = vunpack.c.h.b16 %v410
  %v1592 = vunpack.c.l.b16 %v411
  %v1593 = vunpack.c.h.b16 %v411
  %v1594 = vunpack.c.l.b16 %v412
  %v1595 = vunpack.c.h.b16 %v412
  %v1596 = vunpack.c.l.b16 %v413
  %v1597 = vunpack.c.h.b16 %v413
  %v1598 = vpack.c.b16 %v836, %v830
  %v1599 = vpack.c.b16 %v837, %v831
  %v1600 = vpack.c.b16 %v838, %v832
  %v1601 = vpack.c.b16 %v839, %v833
  %v1602 = vpack.c.b16 %v840, %v834
  %v1603 = vpack.c.b16 %v841, %v835
  %v1604 = vpack.c.b16 %v848, %v842
  %v1605 = vpack.c.b16 %v849, %v843
  %v1606 = vpack.c.b16 %v850, %v844
  %v1607 = vpack.c.b16 %v851, %v845
  %v1608 = vpack.c.b16 %v852, %v846
  %v1609 = vpack.c.b16 %v853, %v847
  %v1610 = vpack.c.b16 %v860, %v854
  %v1611 = vpack.c.b16 %v861, %v855
  %v1612 = vpack.c.b16 %v862, %v856
  %v1613 = vpack.c.b16 %v863, %v857
  %v1614 = vpack.c.b16 %v864, %v858
  %v1615 = vpack.c.b16 %v865, %v859
  %v1616 = vpack.c.b16 %v872, %v866
  %v1617 = vpack.c.b16 %v873, %v867
  %v1618 = vpack.c.b16 %v874, %v868
  %v1619 = vpack.c.b16 %v875, %v869
  %v1620 = vpack.c.b16 %v876, %v870
  %v1621 = vpack.c.b16 %v877, %v871
  %v1622 = vpack.c.b16 %v884, %v878
  %v1623 = vpack.c.b16 %v885, %v879
  %v1624 = vpack.c.b16 %v886, %v880
  %v1625 = vpack.c.b16 %v887, %v881
  %v1626 = vpack.c.b16 %v888, %v882
  %v1627 = vpack.c.b16 %v889, %v883
  %v1628 = vpack.c.b16 %v896, %v890
  %v1629 = vpack.c.b16 %v897, %v891
  %v1630 = vpack.c.b16 %v898, %v892
  %v1631 = vpack.c.b16 %v899, %v893
  %v1632 = vpack.c.b16 %v900, %v894
  %v1633 = vpack.c.b16 %v901, %v895
  %v1634 = vpack.c.b16 %v908, %v902
  %v1635 = vpack.c.b16 %v909, %v903
  %v1636 = vpack.c.b16 %v910, %v904
  %v1637 = vpack.c.b16 %v911, %v905
  %v1638 = vpack.c.b16 %v912, %v906
  %v1639 = vpack.c.b16 %v913, %v907
  %v1640 = vpack.c.b16 %v920, %v914
  %v1641 = vpack.c.b16 %v921, %v915
  %v1642 = vpack.c.b16 %v922, %v916
  %v1643 = vpack.c.b16 %v923, %v917
  %v1644 = vpack.c.b16 %v924, %v918
  %v1645 = vpack.c.b16 %v925, %v919
  %v1646 = vpack.c.b16 %v932, %v926
  %v1647 = vpack.c.b16 %v933, %v927
  %v1648 = vpack.c.b16 %v934, %v928
  %v1649 = vpack.c.b16 %v935, %v929
  %v1650 = vpack.c.b16 %v936, %v930
  %v1651 = vpack.c.b16 %v937, %v931
  %v1652 = vpack.c.b16 %v944, %v938
  %v1653 = vpack.c.b16 %v945, %v939
  %v1654 = vpack.c.b16 %v946, %v940
  %v1655 = vpack.c.b16 %v947, %v941
  %v1656 = vpack.c.b16 %v948, %v942
  %v1657 = vpack.c.b16 %v949, %v943
  %v1658 = vpack.c.b16 %v956, %v950
  %v1659 = vpack.c.b16 %v957, %v951
  %v1660 = vpack.c.b16 %v958, %v952
  %v1661 = vpack.c.b16 %v959, %v953
  %v1662 = vpack.c.b16 %v960, %v954
  %v1663 = vpack.c.b16 %v961, %v955
  %v1664 = vpack.c.b16 %v968, %v962
  %v1665 = vpack.c.b16 %v969, %v963
  %v1666 = vpack.c.b16 %v970, %v964
  %v1667 = vpack.c.b16 %v971, %v965
  %v1668 = vpack.c.b16 %v972, %v966
  %v1669 = vpack.c.b16 %v973, %v967
  %v1670 = vpack.c.b16 %v980, %v974
  %v1671 = vpack.c.b16 %v981, %v975
  %v1672 = vpack.c.b16 %v982, %v976
  %v1673 = vpack.c.b16 %v983, %v977
  %v1674 = vpack.c.b16 %v984, %v978
  %v1675 = vpack.c.b16 %v985, %v979
  %v1676 = vpack.c.b16 %v992, %v986
  %v1677 = vpack.c.b16 %v993, %v987
  %v1678 = vpack.c.b16 %v994, %v988
  %v1679 = vpack.c.b16 %v995, %v989
  %v1680 = vpack.c.b16 %v996, %v990
  %v1681 = vpack.c.b16 %v997, %v991
  %v1682 = vpack.c.b16 %v1004, %v998
  %v1683 = vpack.c.b16 %v1005, %v999
  %v1684 = vpack.c.b16 %v1006, %v1000
  %v1685 = vpack.c.b16 %v1007, %v1001
  %v1686 = vpack.c.b16 %v1008, %v1002
  %v1687 = vpack.c.b16 %v1009, %v1003
  %v1688 = vpack.c.b16 %v1016, %v1010
  %v1689 = vpack.c.b16 %v1017, %v1011
  %v1690 = vpack.c.b16 %v1018, %v1012
  %v1691 = vpack.c.b16 %v1019, %v1013
  %v1692 = vpack.c.b16 %v1020, %v1014
  %v1693 = vpack.c.b16 %v1021, %v1015
  %v1694 = vpack.c.b16 %v1028, %v1022
  %v1695 = vpack.c.b16 %v1029, %v1023
  %v1696 = vpack.c.b16 %v1030, %v1024
  %v1697 = vpack.c.b16 %v1031, %v1025
  %v1698 = vpack.c.b16 %v1032, %v1026
  %v1699 = vpack.c.b16 %v1033, %v1027
  %v1700 = vpack.c.b16 %v1040, %v1034
  %v1701 = vpack.c.b16 %v1041, %v1035
  %v1702 = vpack.c.b16 %v1042, %v1036
  %v1703 = vpack.c.b16 %v1043, %v1037
  %v1704 = vpack.c.b16 %v1044, %v1038
  %v1705 = vpack.c.b16 %v1045, %v1039
  %v1706 = vpack.c.b16 %v1052, %v1046
  %v1707 = vpack.c.b16 %v1053, %v1047
  %v1708 = vpack.c.b16 %v1054, %v1048
  %v1709 = vpack.c.b16 %v1055, %v1049
  %v1710 = vpack.c.b16 %v1056, %v1050
  %v1711 = vpack.c.b16 %v1057, %v1051
  %v1712 = vpack.c.b16 %v1064, %v1058
  %v1713 = vpack.c.b16 %v1065, %v1059
  %v1714 = vpack.c.b16 %v1066, %v1060
  %v1715 = vpack.c.b16 %v1067, %v1061
  %v1716 = vpack.c.b16 %v1068, %v1062
  %v1717 = vpack.c.b16 %v1069, %v1063
  %v1718 = vpack.c.b16 %v1076, %v1070
  %v1719 = vpack.c.b16 %v1077, %v1071
  %v1720 = vpack.c.b16 %v1078, %v1072
  %v1721 = vpack.c.b16 %v1079, %v1073
  %v1722 = vpack.c.b16 %v1080, %v1074
  %v1723 = vpack.c.b16 %v1081, %v1075
  %v1724 = vpack.c.b16 %v1088, %v1082
  %v1725 = vpack.c.b16 %v1089, %v1083
  %v1726 = vpack.c.b16 %v1090, %v1084
  %v1727 = vpack.c.b16 %v1091, %v1085
  %v1728 = vpack.c.b16 %v1092, %v1086
  %v1729 = vpack.c.b16 %v1093, %v1087
  %v1730 = vpack.c.b16 %v1100, %v1094
  %v1731 = vpack.c.b16 %v1101, %v1095
  %v1732 = vpack.c.b16 %v1102, %v1096
  %v1733 = vpack.c.b16 %v1103, %v1097
  %v1734 = vpack.c.b16 %v1104, %v1098
  %v1735 = vpack.c.b16 %v1105, %v1099
  %v1736 = vpack.c.b16 %v1112, %v1106
  %v1737 = vpack.c.b16 %v1113, %v1107
  %v1738 = vpack.c.b16 %v1114, %v1108
  %v1739 = vpack.c.b16 %v1115, %v1109
  %v1740 = vpack.c.b16 %v1116, %v1110
  %v1741 = vpack.c.b16 %v1117, %v1111
  %v1742 = vpack.c.b16 %v1124, %v1118
  %v1743 = vpack.c.b16 %v1125, %v1119
  %v1744 = vpack.c.b16 %v1126, %v1120
  %v1745 = vpack.c.b16 %v1127, %v1121
  %v1746 = vpack.c.b16 %v1128, %v1122
  %v1747 = vpack.c.b16 %v1129, %v1123
  %v1748 = vpack.c.b16 %v1136, %v1130
  %v1749 = vpack.c.b16 %v1137, %v1131
  %v1750 = vpack.c.b16 %v1138, %v1132
  %v1751 = vpack.c.b16 %v1139, %v1133
  %v1752 = vpack.c.b16 %v1140, %v1134
  %v1753 = vpack.c.b16 %v1141, %v1135
  %v1754 = vpack.c.b16 %v1148, %v1142
  %v1755 = vpack.c.b16 %v1149, %v1143
  %v1756 = vpack.c.b16 %v1150, %v1144
  %v1757 = vpack.c.b16 %v1151, %v1145
  %v1758 = vpack.c.b16 %v1152, %v1146
  %v1759 = vpack.c.b16 %v1153, %v1147
  %v1760 = vpack.c.b16 %v1160, %v1154
  %v1761 = vpack.c.b16 %v1161, %v1155
  %v1762 = vpack.c.b16 %v1162, %v1156
  %v1763 = vpack.c.b16 %v1163, %v1157
  %v1764 = vpack.c.b16 %v1164, %v1158
  %v1765 = vpack.c.b16 %v1165, %v1159
  %v1766 = vpack.c.b16 %v1172, %v1166
  %v1767 = vpack.c.b16 %v1173, %v1167
  %v1768 = vpack.c.b16 %v1174, %v1168
  %v1769 = vpack.c.b16 %v1175, %v1169
  %v1770 = vpack.c.b16 %v1176, %v1170
  %v1771 = vpack.c.b16 %v1177, %v1171
  %v1772 = vpack.c.b16 %v1184, %v1178
  %v1773 = vpack.c.b16 %v1185, %v1179
  %v1774 = vpack.c.b16 %v1186, %v1180
  %v1775 = vpack.c.b16 %v1187, %v1181
  %v1776 = vpack.c.b16 %v1188, %v1182
  %v1777 = vpack.c.b16 %v1189, %v1183
  %v1778 = vpack.c.b16 %v1196, %v1190
  %v1779 = vpack.c.b16 %v1197, %v1191
  %v1780 = vpack.c.b16 %v1198, %v1192
  %v1781 = vpack.c.b16 %v1199, %v1193
  %v1782 = vpack.c.b16 %v1200, %v1194
  %v1783 = vpack.c.b16 %v1201, %v1195
  %v1784 = vpack.c.b16 %v1208, %v1202
  %v1785 = vpack.c.b16 %v1209, %v1203
  %v1786 = vpack.c.b16 %v1210, %v1204
  %v1787 = vpack.c.b16 %v1211, %v1205
  %v1788 = vpack.c.b16 %v1212, %v1206
  %v1789 = vpack.c.b16 %v1213, %v1207
  %v1790 = vpack.c.b16 %v1220, %v1214
  %v1791 = vpack.c.b16 %v1221, %v1215
  %v1792 = vpack.c.b16 %v1222, %v1216
  %v1793 = vpack.c.b16 %v1223, %v1217
  %v1794 = vpack.c.b16 %v1224, %v1218
  %v1795 = vpack.c.b16 %v1225, %v1219
  %v1796 = vpack.c.b16 %v1232, %v1226
  %v1797 = vpack.c.b16 %v1233, %v1227
  %v1798 = vpack.c.b16 %v1234, %v1228
  %v1799 = vpack.c.b16 %v1235, %v1229
  %v1800 = vpack.c.b16 %v1236, %v1230
  %v1801 = vpack.c.b16 %v1237, %v1231
  %v1802 = vpack.c.b16 %v1244, %v1238
  %v1803 = vpack.c.b16 %v1245, %v1239
  %v1804 = vpack.c.b16 %v1246, %v1240
  %v1805 = vpack.c.b16 %v1247, %v1241
  %v1806 = vpack.c.b16 %v1248, %v1242
  %v1807 = vpack.c.b16 %v1249, %v1243
  %v1808 = vpack.c.b16 %v1256, %v1250
  %v1809 = vpack.c.b16 %v1257, %v1251
  %v1810 = vpack.c.b16 %v1258, %v1252
  %v1811 = vpack.c.b16 %v1259, %v1253
  %v1812 = vpack.c.b16 %v1260, %v1254
  %v1813 = vpack.c.b16 %v1261, %v1255
  %v1814 = vpack.c.b16 %v1268, %v1262
  %v1815 = vpack.c.b16 %v1269, %v1263
  %v1816 = vpack.c.b16 %v1270, %v1264
  %v1817 = vpack.c.b16 %v1271, %v1265
  %v1818 = vpack.c.b16 %v1272, %v1266
  %v1819 = vpack.c.b16 %v1273, %v1267
  %v1820 = vpack.c.b16 %v1280, %v1274
  %v1821 = vpack.c.b16 %v1281, %v1275
  %v1822 = vpack.c.b16 %v1282, %v1276
  %v1823 = vpack.c.b16 %v1283, %v1277
  %v1824 = vpack.c.b16 %v1284, %v1278
  %v1825 = vpack.c.b16 %v1285, %v1279
  %v1826 = vpack.c.b16 %v1292, %v1286
  %v1827 = vpack.c.b16 %v1293, %v1287
  %v1828 = vpack.c.b16 %v1294, %v1288
  %v1829 = vpack.c.b16 %v1295, %v1289
  %v1830 = vpack.c.b16 %v1296, %v1290
  %v1831 = vpack.c.b16 %v1297, %v1291
  %v1832 = vpack.c.b16 %v1304, %v1298
  %v1833 = vpack.c.b16 %v1305, %v1299
  %v1834 = vpack.c.b16 %v1306, %v1300
  %v1835 = vpack.c.b16 %v1307, %v1301
  %v1836 = vpack.c.b16 %v1308, %v1302
  %v1837 = vpack.c.b16 %v1309, %v1303
  %v1838 = vpack.c.b16 %v1316, %v1310
  %v1839 = vpack.c.b16 %v1317, %v1311
  %v1840 = vpack.c.b16 %v1318, %v1312
  %v1841 = vpack.c.b16 %v1319, %v1313
  %v1842 = vpack.c.b16 %v1320, %v1314
  %v1843 = vpack.c.b16 %v1321, %v1315
  %v1844 = vpack.c.b16 %v1328, %v1322
  %v1845 = vpack.c.b16 %v1329, %v1323
  %v1846 = vpack.c.b16 %v1330, %v1324
  %v1847 = vpack.c.b16 %v1331, %v1325
  %v1848 = vpack.c.b16 %v1332, %v1326
  %v1849 = vpack.c.b16 %v1333, %v1327
  %v1850 = vpack.c.b16 %v1340, %v1334
  %v1851 = vpack.c.b16 %v1341, %v1335
  %v1852 = vpack.c.b16 %v1342, %v1336
  %v1853 = vpack.c.b16 %v1343, %v1337
  %v1854 = vpack.c.b16 %v1344, %v1338
  %v1855 = vpack.c.b16 %v1345, %v1339
  %v1856 = vpack.c.b16 %v1352, %v1346
  %v1857 = vpack.c.b16 %v1353, %v1347
  %v1858 = vpack.c.b16 %v1354, %v1348
  %v1859 = vpack.c.b16 %v1355, %v1349
  %v1860 = vpack.c.b16 %v1356, %v1350
  %v1861 = vpack.c.b16 %v1357, %v1351
  %v1862 = vpack.c.b16 %v1364, %v1358
  %v1863 = vpack.c.b16 %v1365, %v1359
  %v1864 = vpack.c.b16 %v1366, %v1360
  %v1865 = vpack.c.b16 %v1367, %v1361
  %v1866 = vpack.c.b16 %v1368, %v1362
  %v1867 = vpack.c.b16 %v1369, %v1363
  %v1868 = vpack.c.b16 %v1376, %v1370
  %v1869 = vpack.c.b16 %v1377, %v1371
  %v1870 = vpack.c.b16 %v1378, %v1372
  %v1871 = vpack.c.b16 %v1379, %v1373
  %v1872 = vpack.c.b16 %v1380, %v1374
  %v1873 = vpack.c.b16 %v1381, %v1375
  %v1874 = vpack.c.b16 %v1388, %v1382
  %v1875 = vpack.c.b16 %v1389, %v1383
  %v1876 = vpack.c.b16 %v1390, %v1384
  %v1877 = vpack.c.b16 %v1391, %v1385
  %v1878 = vpack.c.b16 %v1392, %v1386
  %v1879 = vpack.c.b16 %v1393, %v1387
  %v1880 = vpack.c.b16 %v1400, %v1394
  %v1881 = vpack.c.b16 %v1401, %v1395
  %v1882 = vpack.c.b16 %v1402, %v1396
  %v1883 = vpack.c.b16 %v1403, %v1397
  %v1884 = vpack.c.b16 %v1404, %v1398
  %v1885 = vpack.c.b16 %v1405, %v1399
  %v1886 = vpack.c.b16 %v1412, %v1406
  %v1887 = vpack.c.b16 %v1413, %v1407
  %v1888 = vpack.c.b16 %v1414, %v1408
  %v1889 = vpack.c.b16 %v1415, %v1409
  %v1890 = vpack.c.b16 %v1416, %v1410
  %v1891 = vpack.c.b16 %v1417, %v1411
  %v1892 = vpack.c.b16 %v1424, %v1418
  %v1893 = vpack.c.b16 %v1425, %v1419
  %v1894 = vpack.c.b16 %v1426, %v1420
  %v1895 = vpack.c.b16 %v1427, %v1421
  %v1896 = vpack.c.b16 %v1428, %v1422
  %v1897 = vpack.c.b16 %v1429, %v1423
  %v1898 = vpack.c.b16 %v1436, %v1430
  %v1899 = vpack.c.b16 %v1437, %v1431
  %v1900 = vpack.c.b16 %v1438, %v1432
  %v1901 = vpack.c.b16 %v1439, %v1433
  %v1902 = vpack.c.b16 %v1440, %v1434
  %v1903 = vpack.c.b16 %v1441, %v1435
  %v1904 = vpack.c.b16 %v1448, %v1442
  %v1905 = vpack.c.b16 %v1449, %v1443
  %v1906 = vpack.c.b16 %v1450, %v1444
  %v1907 = vpack.c.b16 %v1451, %v1445
  %v1908 = vpack.c.b16 %v1452, %v1446
  %v1909 = vpack.c.b16 %v1453, %v1447
  %v1910 = vpack.c.b16 %v1460, %v1454
  %v1911 = vpack.c.b16 %v1461, %v1455
  %v1912 = vpack.c.b16 %v1462, %v1456
  %v1913 = vpack.c.b16 %v1463, %v1457
  %v1914 = vpack.c.b16 %v1464, %v1458
  %v1915 = vpack.c.b16 %v1465, %v1459
  %v1916 = vpack.c.b16 %v1472, %v1466
  %v1917 = vpack.c.b16 %v1473, %v1467
  %v1918 = vpack.c.b16 %v1474, %v1468
  %v1919 = vpack.c.b16 %v1475, %v1469
  %v1920 = vpack.c.b16 %v1476, %v1470
  %v1921 = vpack.c.b16 %v1477, %v1471
  %v1922 = vpack.c.b16 %v1484, %v1478
  %v1923 = vpack.c.b16 %v1485, %v1479
  %v1924 = vpack.c.b16 %v1486, %v1480
  %v1925 = vpack.c.b16 %v1487, %v1481
  %v1926 = vpack.c.b16 %v1488, %v1482
  %v1927 = vpack.c.b16 %v1489, %v1483
  %v1928 = vpack.c.b16 %v1496, %v1490
  %v1929 = vpack.c.b16 %v1497, %v1491
  %v1930 = vpack.c.b16 %v1498, %v1492
  %v1931 = vpack.c.b16 %v1499, %v1493
  %v1932 = vpack.c.b16 %v1500, %v1494
  %v1933 = vpack.c.b16 %v1501, %v1495
  %v1934 = vpack.c.b16 %v1508, %v1502
  %v1935 = vpack.c.b16 %v1509, %v1503
  %v1936 = vpack.c.b16 %v1510, %v1504
  %v1937 = vpack.c.b16 %v1511, %v1505
  %v1938 = vpack.c.b16 %v1512, %v1506
  %v1939 = vpack.c.b16 %v1513, %v1507
  %v1940 = vpack.c.b16 %v1520, %v1514
  %v1941 = vpack.c.b16 %v1521, %v1515
  %v1942 = vpack.c.b16 %v1522, %v1516
  %v1943 = vpack.c.b16 %v1523, %v1517
  %v1944 = vpack.c.b16 %v1524, %v1518
  %v1945 = vpack.c.b16 %v1525, %v1519
  %v1946 = vpack.c.b16 %v1532, %v1526
  %v1947 = vpack.c.b16 %v1533, %v1527
  %v1948 = vpack.c.b16 %v1534, %v1528
  %v1949 = vpack.c.b16 %v1535, %v1529
  %v1950 = vpack.c.b16 %v1536, %v1530
  %v1951 = vpack.c.b16 %v1537, %v1531
  %v1952 = vpack.c.b16 %v1544, %v1538
  %v1953 = vpack.c.b16 %v1545, %v1539
  %v1954 = vpack.c.b16 %v1546, %v1540
  %v1955 = vpack.c.b16 %v1547, %v1541
  %v1956 = vpack.c.b16 %v1548, %v1542
  %v1957 = vpack.c.b16 %v1549, %v1543
  %v1958 = vpack.c.b16 %v1556, %v1550
  %v1959 = vpack.c.b16 %v1557, %v1551
  %v1960 = vpack.c.b16 %v1558, %v1552
  %v1961 = vpack.c.b16 %v1559, %v1553
  %v1962 = vpack.c.b16 %v1560, %v1554
  %v1963 = vpack.c.b16 %v1561, %v1555
  %v1964 = vpack.c.b16 %v1568, %v1562
  %v1965 = vpack.c.b16 %v1569, %v1563
  %v1966 = vpack.c.b16 %v1570, %v1564
  %v1967 = vpack.c.b16 %v1571, %v1565
  %v1968 = vpack.c.b16 %v1572, %v1566
  %v1969 = vpack.c.b16 %v1573, %v1567
  %v1970 = vpack.c.b16 %v1580, %v1574
  %v1971 = vpack.c.b16 %v1581, %v1575
  %v1972 = vpack.c.b16 %v1582, %v1576
  %v1973 = vpack.c.b16 %v1583, %v1577
  %v1974 = vpack.c.b16 %v1584, %v1578
  %v1975 = vpack.c.b16 %v1585, %v1579
  %v1976 = vpack.c.b16 %v1592, %v1586
  %v1977 = vpack.c.b16 %v1593, %v1587
  %v1978 = vpack.c.b16 %v1594, %v1588
  %v1979 = vpack.c.b16 %v1595, %v1589
  %v1980 = vpack.c.b16 %v1596, %v1590
  %v1981 = vpack.c.b16 %v1597, %v1591
  %2366 = vmatprep.subr.bf16.mxu0 %v1599
  %2367 = vmatpush1.bf16.msra.mxu0 %v1598
  %2368 = vmatprep.subr.bf16.mxu0 %v1605
  %2369 = vmatpush1.bf16.msra.mxu0 %v1604
  %2370 = vmatprep.subr.bf16.mxu0 %v1611
  %2371 = vmatpush1.bf16.msra.mxu0 %v1610
  %2372 = vmatprep.subr.bf16.mxu0 %v1617
  %2373 = vmatpush1.bf16.msra.mxu0 %v1616
  %2374 = vmatprep.subr.bf16.mxu0 %v1623
  %2375 = vmatpush1.bf16.msra.mxu0 %v1622
  %2376 = vmatprep.subr.bf16.mxu0 %v1629
  %2377 = vmatpush1.bf16.msra.mxu0 %v1628
  %2378 = vmatprep.subr.bf16.mxu0 %v1635
  %2379 = vmatpush1.bf16.msra.mxu0 %v1634
  %2380 = vmatprep.subr.bf16.mxu0 %v1641
  %2381 = vmatpush1.bf16.msra.mxu0 %v1640
  %2382 = vmatprep.subr.bf16.mxu0 %v1647
  %2383 = vmatpush1.bf16.msra.mxu0 %v1646
  %2384 = vmatprep.subr.bf16.mxu0 %v1653
  %2385 = vmatpush1.bf16.msra.mxu0 %v1652
  %2386 = vmatprep.subr.bf16.mxu0 %v1659
  %2387 = vmatpush1.bf16.msra.mxu0 %v1658
  %2388 = vmatprep.subr.bf16.mxu0 %v1665
  %2389 = vmatpush1.bf16.msra.mxu0 %v1664
  %2390 = vmatprep.subr.bf16.mxu0 %v1671
  %2391 = vmatpush1.bf16.msra.mxu0 %v1670
  %2392 = vmatprep.subr.bf16.mxu0 %v1677
  %2393 = vmatpush1.bf16.msra.mxu0 %v1676
  %2394 = vmatprep.subr.bf16.mxu0 %v1683
  %2395 = vmatpush1.bf16.msra.mxu0 %v1682
  %2396 = vmatprep.subr.bf16.mxu0 %v1689
  %2397 = vmatpush1.bf16.msra.mxu0 %v1688
  %2398 = vmatprep.mubr.bf16.mxu0 %v23
  %2399 = vmatmul.mubr.bf16.gmra.mrb[0].mxu0 %v22
  %v2400 = vpop.f32.mrb[0].mxu0
  %v2401 = vadd.f32 %v419, %v2400
  %v2402 = vpop.f32.mrb[0].mxu0
  %v2403 = vadd.f32 %v423, %v2402
  %v2404 = vpop.f32.mrb[0].mxu0
  %v2405 = vpop.f32.mrb[0].mxu0
  %2406 = vdwg.mxu0
  %2407 = vmatprep.subr.bf16.mxu0 %v1695
  %2408 = vmatpush1.bf16.msra.mxu0 %v1694
  %2409 = vmatprep.subr.bf16.mxu0 %v1701
  %2410 = vmatpush1.bf16.msra.mxu0 %v1700
  %2411 = vmatprep.subr.bf16.mxu0 %v1707
  %2412 = vmatpush1.bf16.msra.mxu0 %v1706
  %2413 = vmatprep.subr.bf16.mxu0 %v1713
  %2414 = vmatpush1.bf16.msra.mxu0 %v1712
  %2415 = vmatprep.subr.bf16.mxu0 %v1719
  %2416 = vmatpush1.bf16.msra.mxu0 %v1718
  %2417 = vmatprep.subr.bf16.mxu0 %v1725
  %2418 = vmatpush1.bf16.msra.mxu0 %v1724
  %2419 = vmatprep.subr.bf16.mxu0 %v1731
  %2420 = vmatpush1.bf16.msra.mxu0 %v1730
  %2421 = vmatprep.subr.bf16.mxu0 %v1737
  %2422 = vmatpush1.bf16.msra.mxu0 %v1736
  %2423 = vmatprep.subr.bf16.mxu0 %v1743
  %2424 = vmatpush1.bf16.msra.mxu0 %v1742
  %2425 = vmatprep.subr.bf16.mxu0 %v1749
  %2426 = vmatpush1.bf16.msra.mxu0 %v1748
  %2427 = vmatprep.subr.bf16.mxu0 %v1755
  %2428 = vmatpush1.bf16.msra.mxu0 %v1754
  %2429 = vmatprep.subr.bf16.mxu0 %v1761
  %2430 = vmatpush1.bf16.msra.mxu0 %v1760
  %2431 = vmatprep.subr.bf16.mxu0 %v1767
  %2432 = vmatpush1.bf16.msra.mxu0 %v1766
  %2433 = vmatprep.subr.bf16.mxu0 %v1773
  %2434 = vmatpush1.bf16.msra.mxu0 %v1772
  %2435 = vmatprep.subr.bf16.mxu0 %v1779
  %2436 = vmatpush1.bf16.msra.mxu0 %v1778
  %2437 = vmatprep.subr.bf16.mxu0 %v1785
  %2438 = vmatpush1.bf16.msra.mxu0 %v1784
  %2439 = vmatprep.mubr.bf16.mxu0 %v25
  %2440 = vmatmul.mubr.bf16.gmra.mrb[0].mxu0 %v24
  %v2441 = vpop.f32.mrb[0].mxu0
  %v2442 = vadd.f32 %v2401, %v2441
  %v2443 = vpop.f32.mrb[0].mxu0
  %v2444 = vadd.f32 %v2403, %v2443
  %v2445 = vpop.f32.mrb[0].mxu0
  %v2446 = vpop.f32.mrb[0].mxu0
  %2447 = vdwg.mxu0
  %2448 = vmatprep.subr.bf16.mxu0 %v1791
  %2449 = vmatpush1.bf16.msra.mxu0 %v1790
  %2450 = vmatprep.subr.bf16.mxu0 %v1797
  %2451 = vmatpush1.bf16.msra.mxu0 %v1796
  %2452 = vmatprep.subr.bf16.mxu0 %v1803
  %2453 = vmatpush1.bf16.msra.mxu0 %v1802
  %2454 = vmatprep.subr.bf16.mxu0 %v1809
  %2455 = vmatpush1.bf16.msra.mxu0 %v1808
  %2456 = vmatprep.subr.bf16.mxu0 %v1815
  %2457 = vmatpush1.bf16.msra.mxu0 %v1814
  %2458 = vmatprep.subr.bf16.mxu0 %v1821
  %2459 = vmatpush1.bf16.msra.mxu0 %v1820
  %2460 = vmatprep.subr.bf16.mxu0 %v1827
  %2461 = vmatpush1.bf16.msra.mxu0 %v1826
  %2462 = vmatprep.subr.bf16.mxu0 %v1833
  %2463 = vmatpush1.bf16.msra.mxu0 %v1832
  %2464 = vmatprep.subr.bf16.mxu0 %v1839
  %2465 = vmatpush1.bf16.msra.mxu0 %v1838
  %2466 = vmatprep.subr.bf16.mxu0 %v1845
  %2467 = vmatpush1.bf16.msra.mxu0 %v1844
  %2468 = vmatprep.subr.bf16.mxu0 %v1851
  %2469 = vmatpush1.bf16.msra.mxu0 %v1850
  %2470 = vmatprep.subr.bf16.mxu0 %v1857
  %2471 = vmatpush1.bf16.msra.mxu0 %v1856
  %2472 = vmatprep.subr.bf16.mxu0 %v1863
  %2473 = vmatpush1.bf16.msra.mxu0 %v1862
  %2474 = vmatprep.subr.bf16.mxu0 %v1869
  %2475 = vmatpush1.bf16.msra.mxu0 %v1868
  %2476 = vmatprep.subr.bf16.mxu0 %v1875
  %2477 = vmatpush1.bf16.msra.mxu0 %v1874
  %2478 = vmatprep.subr.bf16.mxu0 %v1881
  %2479 = vmatpush1.bf16.msra.mxu0 %v1880
  %2480 = vmatprep.mubr.bf16.mxu0 %v27
  %2481 = vmatmul.mubr.bf16.gmra.mrb[0].mxu0 %v26
  %v2482 = vpop.f32.mrb[0].mxu0
  %v2483 = vadd.f32 %v2442, %v2482
  %v2484 = vpop.f32.mrb[0].mxu0
  %v2485 = vadd.f32 %v2444, %v2484
  %v2486 = vpop.f32.mrb[0].mxu0
  %v2487 = vpop.f32.mrb[0].mxu0
  %2488 = vdwg.mxu0
  %2489 = vmatprep.subr.bf16.mxu0 %v1887
  %2490 = vmatpush1.bf16.msra.mxu0 %v1886
  %2491 = vmatprep.subr.bf16.mxu0 %v1893
  %2492 = vmatpush1.bf16.msra.mxu0 %v1892
  %2493 = vmatprep.subr.bf16.mxu0 %v1899
  %2494 = vmatpush1.bf16.msra.mxu0 %v1898
  %2495 = vmatprep.subr.bf16.mxu0 %v1905
  %2496 = vmatpush1.bf16.msra.mxu0 %v1904
  %2497 = vmatprep.subr.bf16.mxu0 %v1911
  %2498 = vmatpush1.bf16.msra.mxu0 %v1910
  %2499 = vmatprep.subr.bf16.mxu0 %v1917
  %2500 = vmatpush1.bf16.msra.mxu0 %v1916
  %2501 = vmatprep.subr.bf16.mxu0 %v1923
  %2502 = vmatpush1.bf16.msra.mxu0 %v1922
  %2503 = vmatprep.subr.bf16.mxu0 %v1929
  %2504 = vmatpush1.bf16.msra.mxu0 %v1928
  %2505 = vmatprep.subr.bf16.mxu0 %v1935
  %2506 = vmatpush1.bf16.msra.mxu0 %v1934
  %2507 = vmatprep.subr.bf16.mxu0 %v1941
  %2508 = vmatpush1.bf16.msra.mxu0 %v1940
  %2509 = vmatprep.subr.bf16.mxu0 %v1947
  %2510 = vmatpush1.bf16.msra.mxu0 %v1946
  %2511 = vmatprep.subr.bf16.mxu0 %v1953
  %2512 = vmatpush1.bf16.msra.mxu0 %v1952
  %2513 = vmatprep.subr.bf16.mxu0 %v1959
  %2514 = vmatpush1.bf16.msra.mxu0 %v1958
  %2515 = vmatprep.subr.bf16.mxu0 %v1965
  %2516 = vmatpush1.bf16.msra.mxu0 %v1964
  %2517 = vmatprep.subr.bf16.mxu0 %v1971
  %2518 = vmatpush1.bf16.msra.mxu0 %v1970
  %2519 = vmatprep.subr.bf16.mxu0 %v1977
  %2520 = vmatpush1.bf16.msra.mxu0 %v1976
  %2521 = vmatprep.mubr.bf16.mxu0 %v29
  %2522 = vmatmul.mubr.bf16.gmra.mrb[0].mxu0 %v28
  %v2523 = vpop.f32.mrb[0].mxu0
  %v2524 = vadd.f32 %v2483, %v2523
  %v2525 = vpop.f32.mrb[0].mxu0
  %v2526 = vadd.f32 %v2485, %v2525
  %v2527 = vpop.f32.mrb[0].mxu0
  %v2528 = vpop.f32.mrb[0].mxu0
  %2529 = vdwg.mxu0
  %2530 = vmatprep.subr.bf16.mxu0 %v1601
  %2531 = vmatpush1.bf16.msra.mxu0 %v1600
  %2532 = vmatprep.subr.bf16.mxu0 %v1607
  %2533 = vmatpush1.bf16.msra.mxu0 %v1606
  %2534 = vmatprep.subr.bf16.mxu0 %v1613
  %2535 = vmatpush1.bf16.msra.mxu0 %v1612
  %2536 = vmatprep.subr.bf16.mxu0 %v1619
  %2537 = vmatpush1.bf16.msra.mxu0 %v1618
  %2538 = vmatprep.subr.bf16.mxu0 %v1625
  %2539 = vmatpush1.bf16.msra.mxu0 %v1624
  %2540 = vmatprep.subr.bf16.mxu0 %v1631
  %2541 = vmatpush1.bf16.msra.mxu0 %v1630
  %2542 = vmatprep.subr.bf16.mxu0 %v1637
  %2543 = vmatpush1.bf16.msra.mxu0 %v1636
  %2544 = vmatprep.subr.bf16.mxu0 %v1643
  %2545 = vmatpush1.bf16.msra.mxu0 %v1642
  %2546 = vmatprep.subr.bf16.mxu0 %v1649
  %2547 = vmatpush1.bf16.msra.mxu0 %v1648
  %2548 = vmatprep.subr.bf16.mxu0 %v1655
  %2549 = vmatpush1.bf16.msra.mxu0 %v1654
  %2550 = vmatprep.subr.bf16.mxu0 %v1661
  %2551 = vmatpush1.bf16.msra.mxu0 %v1660
  %2552 = vmatprep.subr.bf16.mxu0 %v1667
  %2553 = vmatpush1.bf16.msra.mxu0 %v1666
  %2554 = vmatprep.subr.bf16.mxu0 %v1673
  %2555 = vmatpush1.bf16.msra.mxu0 %v1672
  %2556 = vmatprep.subr.bf16.mxu0 %v1679
  %2557 = vmatpush1.bf16.msra.mxu0 %v1678
  %2558 = vmatprep.subr.bf16.mxu0 %v1685
  %2559 = vmatpush1.bf16.msra.mxu0 %v1684
  %2560 = vmatprep.subr.bf16.mxu0 %v1691
  %2561 = vmatpush1.bf16.msra.mxu0 %v1690
  %2562 = vmatprep.mubr.bf16.mxu0 %v23
  %2563 = vmatmul.mubr.bf16.gmra.mrb[0].mxu0 %v22
  %v2564 = vpop.f32.mrb[0].mxu0
  %v2565 = vadd.f32 %v427, %v2564
  %v2566 = vpop.f32.mrb[0].mxu0
  %v2567 = vadd.f32 %v431, %v2566
  %v2568 = vpop.f32.mrb[0].mxu0
  %v2569 = vpop.f32.mrb[0].mxu0
  %2570 = vdwg.mxu0
  %2571 = vmatprep.subr.bf16.mxu0 %v1697
  %2572 = vmatpush1.bf16.msra.mxu0 %v1696
  %2573 = vmatprep.subr.bf16.mxu0 %v1703
  %2574 = vmatpush1.bf16.msra.mxu0 %v1702
  %2575 = vmatprep.subr.bf16.mxu0 %v1709
  %2576 = vmatpush1.bf16.msra.mxu0 %v1708
  %2577 = vmatprep.subr.bf16.mxu0 %v1715
  %2578 = vmatpush1.bf16.msra.mxu0 %v1714
  %2579 = vmatprep.subr.bf16.mxu0 %v1721
  %2580 = vmatpush1.bf16.msra.mxu0 %v1720
  %2581 = vmatprep.subr.bf16.mxu0 %v1727
  %2582 = vmatpush1.bf16.msra.mxu0 %v1726
  %2583 = vmatprep.subr.bf16.mxu0 %v1733
  %2584 = vmatpush1.bf16.msra.mxu0 %v1732
  %2585 = vmatprep.subr.bf16.mxu0 %v1739
  %2586 = vmatpush1.bf16.msra.mxu0 %v1738
  %2587 = vmatprep.subr.bf16.mxu0 %v1745
  %2588 = vmatpush1.bf16.msra.mxu0 %v1744
  %2589 = vmatprep.subr.bf16.mxu0 %v1751
  %2590 = vmatpush1.bf16.msra.mxu0 %v1750
  %2591 = vmatprep.subr.bf16.mxu0 %v1757
  %2592 = vmatpush1.bf16.msra.mxu0 %v1756
  %2593 = vmatprep.subr.bf16.mxu0 %v1763
  %2594 = vmatpush1.bf16.msra.mxu0 %v1762
  %2595 = vmatprep.subr.bf16.mxu0 %v1769
  %2596 = vmatpush1.bf16.msra.mxu0 %v1768
  %2597 = vmatprep.subr.bf16.mxu0 %v1775
  %2598 = vmatpush1.bf16.msra.mxu0 %v1774
  %2599 = vmatprep.subr.bf16.mxu0 %v1781
  %2600 = vmatpush1.bf16.msra.mxu0 %v1780
  %2601 = vmatprep.subr.bf16.mxu0 %v1787
  %2602 = vmatpush1.bf16.msra.mxu0 %v1786
  %2603 = vmatprep.mubr.bf16.mxu0 %v25
  %2604 = vmatmul.mubr.bf16.gmra.mrb[0].mxu0 %v24
  %v2605 = vpop.f32.mrb[0].mxu0
  %v2606 = vadd.f32 %v2565, %v2605
  %v2607 = vpop.f32.mrb[0].mxu0
  %v2608 = vadd.f32 %v2567, %v2607
  %v2609 = vpop.f32.mrb[0].mxu0
  %v2610 = vpop.f32.mrb[0].mxu0
  %2611 = vdwg.mxu0
  %2612 = vmatprep.subr.bf16.mxu0 %v1793
  %2613 = vmatpush1.bf16.msra.mxu0 %v1792
  %2614 = vmatprep.subr.bf16.mxu0 %v1799
  %2615 = vmatpush1.bf16.msra.mxu0 %v1798
  %2616 = vmatprep.subr.bf16.mxu0 %v1805
  %2617 = vmatpush1.bf16.msra.mxu0 %v1804
  %2618 = vmatprep.subr.bf16.mxu0 %v1811
  %2619 = vmatpush1.bf16.msra.mxu0 %v1810
  %2620 = vmatprep.subr.bf16.mxu0 %v1817
  %2621 = vmatpush1.bf16.msra.mxu0 %v1816
  %2622 = vmatprep.subr.bf16.mxu0 %v1823
  %2623 = vmatpush1.bf16.msra.mxu0 %v1822
  %2624 = vmatprep.subr.bf16.mxu0 %v1829
  %2625 = vmatpush1.bf16.msra.mxu0 %v1828
  %2626 = vmatprep.subr.bf16.mxu0 %v1835
  %2627 = vmatpush1.bf16.msra.mxu0 %v1834
  %2628 = vmatprep.subr.bf16.mxu0 %v1841
  %2629 = vmatpush1.bf16.msra.mxu0 %v1840
  %2630 = vmatprep.subr.bf16.mxu0 %v1847
  %2631 = vmatpush1.bf16.msra.mxu0 %v1846
  %2632 = vmatprep.subr.bf16.mxu0 %v1853
  %2633 = vmatpush1.bf16.msra.mxu0 %v1852
  %2634 = vmatprep.subr.bf16.mxu0 %v1859
  %2635 = vmatpush1.bf16.msra.mxu0 %v1858
  %2636 = vmatprep.subr.bf16.mxu0 %v1865
  %2637 = vmatpush1.bf16.msra.mxu0 %v1864
  %2638 = vmatprep.subr.bf16.mxu0 %v1871
  %2639 = vmatpush1.bf16.msra.mxu0 %v1870
  %2640 = vmatprep.subr.bf16.mxu0 %v1877
  %2641 = vmatpush1.bf16.msra.mxu0 %v1876
  %2642 = vmatprep.subr.bf16.mxu0 %v1883
  %2643 = vmatpush1.bf16.msra.mxu0 %v1882
  %2644 = vmatprep.mubr.bf16.mxu0 %v27
  %2645 = vmatmul.mubr.bf16.gmra.mrb[0].mxu0 %v26
  %v2646 = vpop.f32.mrb[0].mxu0
  %v2647 = vadd.f32 %v2606, %v2646
  %v2648 = vpop.f32.mrb[0].mxu0
  %v2649 = vadd.f32 %v2608, %v2648
  %v2650 = vpop.f32.mrb[0].mxu0
  %v2651 = vpop.f32.mrb[0].mxu0
  %2652 = vdwg.mxu0
  %2653 = vmatprep.subr.bf16.mxu0 %v1889
  %2654 = vmatpush1.bf16.msra.mxu0 %v1888
  %2655 = vmatprep.subr.bf16.mxu0 %v1895
  %2656 = vmatpush1.bf16.msra.mxu0 %v1894
  %2657 = vmatprep.subr.bf16.mxu0 %v1901
  %2658 = vmatpush1.bf16.msra.mxu0 %v1900
  %2659 = vmatprep.subr.bf16.mxu0 %v1907
  %2660 = vmatpush1.bf16.msra.mxu0 %v1906
  %2661 = vmatprep.subr.bf16.mxu0 %v1913
  %2662 = vmatpush1.bf16.msra.mxu0 %v1912
  %2663 = vmatprep.subr.bf16.mxu0 %v1919
  %2664 = vmatpush1.bf16.msra.mxu0 %v1918
  %2665 = vmatprep.subr.bf16.mxu0 %v1925
  %2666 = vmatpush1.bf16.msra.mxu0 %v1924
  %2667 = vmatprep.subr.bf16.mxu0 %v1931
  %2668 = vmatpush1.bf16.msra.mxu0 %v1930
  %2669 = vmatprep.subr.bf16.mxu0 %v1937
  %2670 = vmatpush1.bf16.msra.mxu0 %v1936
  %2671 = vmatprep.subr.bf16.mxu0 %v1943
  %2672 = vmatpush1.bf16.msra.mxu0 %v1942
  %2673 = vmatprep.subr.bf16.mxu0 %v1949
  %2674 = vmatpush1.bf16.msra.mxu0 %v1948
  %2675 = vmatprep.subr.bf16.mxu0 %v1955
  %2676 = vmatpush1.bf16.msra.mxu0 %v1954
  %2677 = vmatprep.subr.bf16.mxu0 %v1961
  %2678 = vmatpush1.bf16.msra.mxu0 %v1960
  %2679 = vmatprep.subr.bf16.mxu0 %v1967
  %2680 = vmatpush1.bf16.msra.mxu0 %v1966
  %2681 = vmatprep.subr.bf16.mxu0 %v1973
  %2682 = vmatpush1.bf16.msra.mxu0 %v1972
  %2683 = vmatprep.subr.bf16.mxu0 %v1979
  %2684 = vmatpush1.bf16.msra.mxu0 %v1978
  %2685 = vmatprep.mubr.bf16.mxu0 %v29
  %2686 = vmatmul.mubr.bf16.gmra.mrb[0].mxu0 %v28
  %v2687 = vpop.f32.mrb[0].mxu0
  %v2688 = vadd.f32 %v2647, %v2687
  %v2689 = vpop.f32.mrb[0].mxu0
  %v2690 = vadd.f32 %v2649, %v2689
  %v2691 = vpop.f32.mrb[0].mxu0
  %v2692 = vpop.f32.mrb[0].mxu0
  %2693 = vdwg.mxu0
  %2694 = vmatprep.subr.bf16.mxu0 %v1603
  %2695 = vmatpush1.bf16.msra.mxu0 %v1602
  %2696 = vmatprep.subr.bf16.mxu0 %v1609
  %2697 = vmatpush1.bf16.msra.mxu0 %v1608
  %2698 = vmatprep.subr.bf16.mxu0 %v1615
  %2699 = vmatpush1.bf16.msra.mxu0 %v1614
  %2700 = vmatprep.subr.bf16.mxu0 %v1621
  %2701 = vmatpush1.bf16.msra.mxu0 %v1620
  %2702 = vmatprep.subr.bf16.mxu0 %v1627
  %2703 = vmatpush1.bf16.msra.mxu0 %v1626
  %2704 = vmatprep.subr.bf16.mxu0 %v1633
  %2705 = vmatpush1.bf16.msra.mxu0 %v1632
  %2706 = vmatprep.subr.bf16.mxu0 %v1639
  %2707 = vmatpush1.bf16.msra.mxu0 %v1638
  %2708 = vmatprep.subr.bf16.mxu0 %v1645
  %2709 = vmatpush1.bf16.msra.mxu0 %v1644
  %2710 = vmatprep.subr.bf16.mxu0 %v1651
  %2711 = vmatpush1.bf16.msra.mxu0 %v1650
  %2712 = vmatprep.subr.bf16.mxu0 %v1657
  %2713 = vmatpush1.bf16.msra.mxu0 %v1656
  %2714 = vmatprep.subr.bf16.mxu0 %v1663
  %2715 = vmatpush1.bf16.msra.mxu0 %v1662
  %2716 = vmatprep.subr.bf16.mxu0 %v1669
  %2717 = vmatpush1.bf16.msra.mxu0 %v1668
  %2718 = vmatprep.subr.bf16.mxu0 %v1675
  %2719 = vmatpush1.bf16.msra.mxu0 %v1674
  %2720 = vmatprep.subr.bf16.mxu0 %v1681
  %2721 = vmatpush1.bf16.msra.mxu0 %v1680
  %2722 = vmatprep.subr.bf16.mxu0 %v1687
  %2723 = vmatpush1.bf16.msra.mxu0 %v1686
  %2724 = vmatprep.subr.bf16.mxu0 %v1693
  %2725 = vmatpush1.bf16.msra.mxu0 %v1692
  %2726 = vmatprep.mubr.bf16.mxu0 %v23
  %2727 = vmatmul.mubr.bf16.gmra.mrb[0].mxu0 %v22
  %v2728 = vpop.f32.mrb[0].mxu0
  %v2729 = vadd.f32 %v435, %v2728
  %v2730 = vpop.f32.mrb[0].mxu0
  %v2731 = vadd.f32 %v439, %v2730
  %v2732 = vpop.f32.mrb[0].mxu0
  %v2733 = vpop.f32.mrb[0].mxu0
  %2734 = vdwg.mxu0
  %2735 = vmatprep.subr.bf16.mxu0 %v1699
  %2736 = vmatpush1.bf16.msra.mxu0 %v1698
  %2737 = vmatprep.subr.bf16.mxu0 %v1705
  %2738 = vmatpush1.bf16.msra.mxu0 %v1704
  %2739 = vmatprep.subr.bf16.mxu0 %v1711
  %2740 = vmatpush1.bf16.msra.mxu0 %v1710
  %2741 = vmatprep.subr.bf16.mxu0 %v1717
  %2742 = vmatpush1.bf16.msra.mxu0 %v1716
  %2743 = vmatprep.subr.bf16.mxu0 %v1723
  %2744 = vmatpush1.bf16.msra.mxu0 %v1722
  %2745 = vmatprep.subr.bf16.mxu0 %v1729
  %2746 = vmatpush1.bf16.msra.mxu0 %v1728
  %2747 = vmatprep.subr.bf16.mxu0 %v1735
  %2748 = vmatpush1.bf16.msra.mxu0 %v1734
  %2749 = vmatprep.subr.bf16.mxu0 %v1741
  %2750 = vmatpush1.bf16.msra.mxu0 %v1740
  %2751 = vmatprep.subr.bf16.mxu0 %v1747
  %2752 = vmatpush1.bf16.msra.mxu0 %v1746
  %2753 = vmatprep.subr.bf16.mxu0 %v1753
  %2754 = vmatpush1.bf16.msra.mxu0 %v1752
  %2755 = vmatprep.subr.bf16.mxu0 %v1759
  %2756 = vmatpush1.bf16.msra.mxu0 %v1758
  %2757 = vmatprep.subr.bf16.mxu0 %v1765
  %2758 = vmatpush1.bf16.msra.mxu0 %v1764
  %2759 = vmatprep.subr.bf16.mxu0 %v1771
  %2760 = vmatpush1.bf16.msra.mxu0 %v1770
  %2761 = vmatprep.subr.bf16.mxu0 %v1777
  %2762 = vmatpush1.bf16.msra.mxu0 %v1776
  %2763 = vmatprep.subr.bf16.mxu0 %v1783
  %2764 = vmatpush1.bf16.msra.mxu0 %v1782
  %2765 = vmatprep.subr.bf16.mxu0 %v1789
  %2766 = vmatpush1.bf16.msra.mxu0 %v1788
  %2767 = vmatprep.mubr.bf16.mxu0 %v25
  %2768 = vmatmul.mubr.bf16.gmra.mrb[0].mxu0 %v24
  %v2769 = vpop.f32.mrb[0].mxu0
  %v2770 = vadd.f32 %v2729, %v2769
  %v2771 = vpop.f32.mrb[0].mxu0
  %v2772 = vadd.f32 %v2731, %v2771
  %v2773 = vpop.f32.mrb[0].mxu0
  %v2774 = vpop.f32.mrb[0].mxu0
  %2775 = vdwg.mxu0
  %2776 = vmatprep.subr.bf16.mxu0 %v1795
  %2777 = vmatpush1.bf16.msra.mxu0 %v1794
  %2778 = vmatprep.subr.bf16.mxu0 %v1801
  %2779 = vmatpush1.bf16.msra.mxu0 %v1800
  %2780 = vmatprep.subr.bf16.mxu0 %v1807
  %2781 = vmatpush1.bf16.msra.mxu0 %v1806
  %2782 = vmatprep.subr.bf16.mxu0 %v1813
  %2783 = vmatpush1.bf16.msra.mxu0 %v1812
  %2784 = vmatprep.subr.bf16.mxu0 %v1819
  %2785 = vmatpush1.bf16.msra.mxu0 %v1818
  %2786 = vmatprep.subr.bf16.mxu0 %v1825
  %2787 = vmatpush1.bf16.msra.mxu0 %v1824
  %2788 = vmatprep.subr.bf16.mxu0 %v1831
  %2789 = vmatpush1.bf16.msra.mxu0 %v1830
  %2790 = vmatprep.subr.bf16.mxu0 %v1837
  %2791 = vmatpush1.bf16.msra.mxu0 %v1836
  %2792 = vmatprep.subr.bf16.mxu0 %v1843
  %2793 = vmatpush1.bf16.msra.mxu0 %v1842
  %2794 = vmatprep.subr.bf16.mxu0 %v1849
  %2795 = vmatpush1.bf16.msra.mxu0 %v1848
  %2796 = vmatprep.subr.bf16.mxu0 %v1855
  %2797 = vmatpush1.bf16.msra.mxu0 %v1854
  %2798 = vmatprep.subr.bf16.mxu0 %v1861
  %2799 = vmatpush1.bf16.msra.mxu0 %v1860
  %2800 = vmatprep.subr.bf16.mxu0 %v1867
  %2801 = vmatpush1.bf16.msra.mxu0 %v1866
  %2802 = vmatprep.subr.bf16.mxu0 %v1873
  %2803 = vmatpush1.bf16.msra.mxu0 %v1872
  %2804 = vmatprep.subr.bf16.mxu0 %v1879
  %2805 = vmatpush1.bf16.msra.mxu0 %v1878
  %2806 = vmatprep.subr.bf16.mxu0 %v1885
  %2807 = vmatpush1.bf16.msra.mxu0 %v1884
  %2808 = vmatprep.mubr.bf16.mxu0 %v27
  %2809 = vmatmul.mubr.bf16.gmra.mrb[0].mxu0 %v26
  %v2810 = vpop.f32.mrb[0].mxu0
  %v2811 = vadd.f32 %v2770, %v2810
  %v2812 = vpop.f32.mrb[0].mxu0
  %v2813 = vadd.f32 %v2772, %v2812
  %v2814 = vpop.f32.mrb[0].mxu0
  %v2815 = vpop.f32.mrb[0].mxu0
  %2816 = vdwg.mxu0
  %2817 = vmatprep.subr.bf16.mxu0 %v1891
  %2818 = vmatpush1.bf16.msra.mxu0 %v1890
  %2819 = vmatprep.subr.bf16.mxu0 %v1897
  %2820 = vmatpush1.bf16.msra.mxu0 %v1896
  %2821 = vmatprep.subr.bf16.mxu0 %v1903
  %2822 = vmatpush1.bf16.msra.mxu0 %v1902
  %2823 = vmatprep.subr.bf16.mxu0 %v1909
  %2824 = vmatpush1.bf16.msra.mxu0 %v1908
  %2825 = vmatprep.subr.bf16.mxu0 %v1915
  %2826 = vmatpush1.bf16.msra.mxu0 %v1914
  %2827 = vmatprep.subr.bf16.mxu0 %v1921
  %2828 = vmatpush1.bf16.msra.mxu0 %v1920
  %2829 = vmatprep.subr.bf16.mxu0 %v1927
  %2830 = vmatpush1.bf16.msra.mxu0 %v1926
  %2831 = vmatprep.subr.bf16.mxu0 %v1933
  %2832 = vmatpush1.bf16.msra.mxu0 %v1932
  %2833 = vmatprep.subr.bf16.mxu0 %v1939
  %2834 = vmatpush1.bf16.msra.mxu0 %v1938
  %2835 = vmatprep.subr.bf16.mxu0 %v1945
  %2836 = vmatpush1.bf16.msra.mxu0 %v1944
  %2837 = vmatprep.subr.bf16.mxu0 %v1951
  %2838 = vmatpush1.bf16.msra.mxu0 %v1950
  %2839 = vmatprep.subr.bf16.mxu0 %v1957
  %2840 = vmatpush1.bf16.msra.mxu0 %v1956
  %2841 = vmatprep.subr.bf16.mxu0 %v1963
  %2842 = vmatpush1.bf16.msra.mxu0 %v1962
  %2843 = vmatprep.subr.bf16.mxu0 %v1969
  %2844 = vmatpush1.bf16.msra.mxu0 %v1968
  %2845 = vmatprep.subr.bf16.mxu0 %v1975
  %2846 = vmatpush1.bf16.msra.mxu0 %v1974
  %2847 = vmatprep.subr.bf16.mxu0 %v1981
  %2848 = vmatpush1.bf16.msra.mxu0 %v1980
  %2849 = vmatprep.mubr.bf16.mxu0 %v29
  %2850 = vmatmul.mubr.bf16.gmra.mrb[0].mxu0 %v28
  %v2851 = vpop.f32.mrb[0].mxu0
  %v2852 = vadd.f32 %v2811, %v2851
  %v2853 = vpop.f32.mrb[0].mxu0
  %v2854 = vadd.f32 %v2813, %v2853
  %v2855 = vpop.f32.mrb[0].mxu0
  %v2856 = vpop.f32.mrb[0].mxu0
  %2857 = vdwg.mxu0
  %2858 = vst [vmem:[%s3] sm:$0xff] %v2524
  %2859 = vst [vmem:[%s3 + $0x8] sm:$0xff] %v2526
  %2860 = vst [vmem:[%s3 + $0x10] sm:$0xff] %v2688
  %2861 = vst [vmem:[%s3 + $0x18] sm:$0xff] %v2690
  %2862 = vst [vmem:[%s3 + $0x20] sm:$0xff] %v2852
  %2863 = vst [vmem:[%s3 + $0x28] sm:$0xff] %v2854
  // Predicated region
  $region14: #{cpc_forward.4} parent=0 // pred_check
    _
  $region15: #{cpc_forward.4} parent=0 // pred_check_branch
    %2865 = sbr.rel (0) target = $region17
  $region16: #{cpc_forward.4} parent=0 // pred_region
    _
  $region17: #{cpc_forward.4} parent=0 // pred_fallthru
    _
  // Predicated region
  $region18: #{cpc_forward.4} parent=0 // pred_check
    _
  $region19: #{cpc_forward.4} parent=0 // pred_check_branch
    %2867 = sbr.rel (0) target = $region21
  $region20: #{cpc_forward.4} parent=0 // pred_region
    _
  $region21: #{cpc_forward.4} parent=0 // pred_fallthru
    _

</llo_original>
